<compile_context>
chip_gen: v5e
topology: v5e:2x2
jax: 0.10.0
libtpu: 0.0.40
codegen_flags: <defaults>
</compile_context>

<pallas_src>
import numpy as np
import jax
import jax.numpy as jnp
from jax.experimental import pallas as pl
from jax.experimental.pallas import tpu as pltpu


# ---------------------------------------------------------------------------
# MelSpec module defaults
# ---------------------------------------------------------------------------
N_FFT = 1024
HOP = 256
WIN_LENGTH = 1024
N_MELS = 100
SAMPLE_RATE = 24000
LOG_CLAMP = 1e-5

N_FREQS = N_FFT // 2 + 1            # 513 one-sided rfft bins
F_PAD = 640                         # 513 -> next multiple of 128 (lane-dense)
M_PAD = 128                         # 100 -> 128 (lane-dense output stores)
R = N_FFT // HOP                    # hop-blocks per frame (must divide evenly)
assert N_FFT % HOP == 0


# ---------------------------------------------------------------------------
# Host-side constant weights (window-fused DFT matrix, mel filterbank)
# ---------------------------------------------------------------------------
def _hann_periodic(n):
    i = np.arange(n, dtype=np.float64)
    return 0.5 - 0.5 * np.cos(2.0 * np.pi * i / n)


def _hz_to_mel_htk(f):
    return 2595.0 * np.log10(1.0 + np.asarray(f, np.float64) / 700.0)


def _mel_to_hz_htk(m):
    return 700.0 * (10.0 ** (np.asarray(m, np.float64) / 2595.0) - 1.0)


def melscale_fbanks(n_freqs, f_min, f_max, n_mels, sample_rate):
    """torchaudio.functional.melscale_fbanks with norm=None, mel_scale='htk'."""
    all_freqs = np.linspace(0.0, sample_rate // 2, n_freqs)
    m_pts = np.linspace(_hz_to_mel_htk(f_min), _hz_to_mel_htk(f_max), n_mels + 2)
    f_pts = _mel_to_hz_htk(m_pts)
    f_diff = f_pts[1:] - f_pts[:-1]
    slopes = f_pts[None, :] - all_freqs[:, None]          # (n_freqs, n_mels+2)
    down = -slopes[:, :-2] / f_diff[:-1]
    up = slopes[:, 2:] / f_diff[1:]
    fb = np.maximum(0.0, np.minimum(down, up))
    return fb.astype(np.float32)                           # (n_freqs, n_mels)


def build_weights():
    """Window-fused real-DFT matrix (n_fft, 2*F_PAD) and padded mel fb."""
    win = _hann_periodic(WIN_LENGTH)
    n = np.arange(N_FFT, dtype=np.float64)[:, None]
    f = np.arange(N_FREQS, dtype=np.float64)[None, :]
    ang = 2.0 * np.pi * n * f / N_FFT
    cos_m = np.cos(ang) * win[:, None]                     # window folded in
    sin_m = -np.sin(ang) * win[:, None]

    trig = np.zeros((N_FFT, 2 * F_PAD), np.float32)        # [cos | sin], padded
    trig[:, :N_FREQS] = cos_m
    trig[:, F_PAD:F_PAD + N_FREQS] = sin_m

    fb = melscale_fbanks(N_FREQS, 0.0, SAMPLE_RATE / 2.0, N_MELS, SAMPLE_RATE)
    fb_pad = np.zeros((F_PAD, M_PAD), np.float32)
    fb_pad[:N_FREQS, :N_MELS] = fb
    return jnp.asarray(trig), jnp.asarray(fb_pad), jnp.asarray(fb)


# ---------------------------------------------------------------------------
# Pallas kernel
# ---------------------------------------------------------------------------
def _melspec_kernel(tT):
    """One (batch, frame_tile) grid step: tT frames -> log-mel (tT, M_PAD)."""

    def kernel(wav_ref, trig_ref, fb_ref, out_ref):
        t = pl.program_id(1)
        base = pl.multiple_of(t * tT, tT)                  # aligned sublane start
        # hop-blocks covering this tile's frames (halo of R-1 blocks)
        seg = wav_ref[0, pl.ds(base, tT + R - 1), :]       # (tT+R-1, HOP)
        # im2col: frame i = hop-blocks [i, i+R) concatenated -> (tT, N_FFT)
        frames = jnp.concatenate([seg[r:r + tT, :] for r in range(R)], axis=1)
        # windowed one-sided DFT: single MXU matmul, contraction = N_FFT
        res = jnp.dot(frames, trig_ref[...],
                      preferred_element_type=jnp.float32)  # (tT, 2*F_PAD)
        re = res[:, :F_PAD]
        im = res[:, F_PAD:]
        mag = jnp.sqrt(re * re + im * im)                  # power=1 magnitude
        # mel projection: second MXU matmul (F_PAD x M_PAD filterbank)
        mel = jnp.dot(mag, fb_ref[...], preferred_element_type=jnp.float32)
        out_ref[0] = jnp.log(jnp.maximum(mel, LOG_CLAMP))  # clamp(1e-5).log()

    return kernel


def mel_spec(inp, trig, fb_pad, *, frames_per_tile=8):
    """inp: (B, N) or (B, 1, N) waveform -> (B, n_mels, T) log-mel."""
    if inp.ndim == 3:
        inp = inp[:, 0, :]                                  # == squeeze(1)
    assert inp.ndim == 2
    B, N = inp.shape
    x = inp.astype(jnp.float32)

    pad = N_FFT // 2
    xp = jnp.pad(x, ((0, 0), (pad, pad)), mode="reflect")   # center=True

    T = 1 + N // HOP                                        # number of frames
    tT = frames_per_tile
    n_tiles = pl.cdiv(T, tT)
    T_pad = n_tiles * tT
    n_blocks = T_pad + R - 1                                # hop blocks needed
    need = n_blocks * HOP
    cur = N + 2 * pad
    if need > cur:
        xp = jnp.pad(xp, ((0, 0), (0, need - cur)))         # zero tail for pad frames
    else:
        xp = xp[:, :need]
    wav_blocks = xp.reshape(B, n_blocks, HOP)               # hop-blocked view

    out = pl.pallas_call(
        _melspec_kernel(tT),
        out_shape=jax.ShapeDtypeStruct((B, T_pad, M_PAD), jnp.float32),
        grid_spec=pltpu.PrefetchScalarGridSpec(
            num_scalar_prefetch=0,
            grid=(B, n_tiles),
            in_specs=[
                # per-batch hop-blocked waveform (re-used across frame tiles)
                pl.BlockSpec((1, n_blocks, HOP), lambda b, t: (b, 0, 0)),
                # grid-invariant window-fused DFT matrix and mel filterbank
                pl.BlockSpec((N_FFT, 2 * F_PAD), lambda b, t: (0, 0)),
                pl.BlockSpec((F_PAD, M_PAD), lambda b, t: (0, 0)),
            ],
            out_specs=pl.BlockSpec((1, tT, M_PAD), lambda b, t: (b, t, 0)),
        ),
        compiler_params=pltpu.CompilerParams(
            dimension_semantics=("parallel", "parallel"),
            vmem_limit_bytes=32 * 1024 * 1024,
        ),
    )(wav_blocks, trig, fb_pad)

    mel = out[:, :T, :N_MELS]                               # drop frame/mel padding
    return jnp.transpose(mel, (0, 2, 1))                    # (B, n_mels, T)


# ---------------------------------------------------------------------------
# Pure-JAX reference (rfft path) mirroring the PyTorch module
# ---------------------------------------------------------------------------
def reference_melspec(inp, fb):
    if inp.ndim == 3:
        inp = inp[:, 0, :]
    B, N = inp.shape
    pad = N_FFT // 2
    xp = jnp.pad(inp.astype(jnp.float32), ((0, 0), (pad, pad)), mode="reflect")
    T = 1 + N // HOP
    win = jnp.asarray(_hann_periodic(N_FFT), jnp.float32)
    idx = jnp.arange(T)[:, None] * HOP + jnp.arange(N_FFT)[None, :]
    frames = xp[:, idx] * win                               # (B, T, N_FFT)
    spec = jnp.abs(jnp.fft.rfft(frames, axis=-1))           # power=1 magnitude
    mel = jnp.einsum("btf,fm->btm", spec, fb)               # (B, T, n_mels)
    mel = jnp.transpose(mel, (0, 2, 1))                     # (B, n_mels, T)
    return jnp.log(jnp.maximum(mel, LOG_CLAMP))


if __name__ == "__main__":
    B, N = 2, 4096                                          # ~0.17 s of 24 kHz audio
    key = jax.random.PRNGKey(0)
    wav = 0.5 * jax.random.normal(key, (B, 1, N), dtype=jnp.float32)  # (B, 1, samples)

    trig, fb_pad, fb = build_weights()

    out = mel_spec(wav, trig, fb_pad, frames_per_tile=8)
    out = jax.block_until_ready(out)

    ref = reference_melspec(wav, fb)
    assert out.shape == (B, N_MELS, 1 + N // HOP)
    np.testing.assert_allclose(np.asarray(out), np.asarray(ref), atol=2e-3, rtol=2e-3)

    print("KERNEL_OK")
</pallas_src>

<mosaic_0001>
module attributes {stable_mosaic.version = 11 : i64} {
  func.func @kernel(%arg0: i32, %arg1: i32, %arg2: memref<1x27x256xf32, #tpu.memory_space<vmem>>, %arg3: memref<1024x1280xf32, #tpu.memory_space<vmem>>, %arg4: memref<640x128xf32, #tpu.memory_space<vmem>>, %arg5: memref<1x8x128xf32, #tpu.memory_space<vmem>>) attributes {dimension_semantics = [#tpu.dimension_semantics<parallel>, #tpu.dimension_semantics<parallel>], iteration_bounds = array<i64: 2, 3>, scalar_prefetch = 0 : i64, scratch_operands = 0 : i64, tpu.core_type = #tpu.core_type<tc>, window_params = [{transform_indices = @transform_0, window_bounds = array<i64: 1, 27, 256>}, {pipeline_mode = #tpu.pipeline_mode<synchronous>, transform_indices = @transform_1, window_bounds = array<i64: 1024, 1280>}, {pipeline_mode = #tpu.pipeline_mode<synchronous>, transform_indices = @transform_2, window_bounds = array<i64: 640, 128>}, {transform_indices = @transform_3, window_bounds = array<i64: 1, 8, 128>}]} {
    %c8_i32 = arith.constant 8 : i32
    %0 = arith.muli %arg1, %c8_i32 : i32
    %1 = tpu.assume_multiple %0, 8 : i32
    %c0 = arith.constant 0 : index
    %2 = arith.index_cast %1 : i32 to index
    %c0_0 = arith.constant 0 : index
    %3 = vector.load %arg2[%c0, %2, %c0_0] : memref<1x27x256xf32, #tpu.memory_space<vmem>>, vector<1x11x256xf32>
    %4 = vector.shape_cast %3 : vector<1x11x256xf32> to vector<11x256xf32>
    %5 = vector.extract_strided_slice %4 {offsets = [0, 0], sizes = [8, 256], strides = [1, 1]} : vector<11x256xf32> to vector<8x256xf32>
    %6 = vector.extract_strided_slice %4 {offsets = [1, 0], sizes = [8, 256], strides = [1, 1]} : vector<11x256xf32> to vector<8x256xf32>
    %7 = vector.extract_strided_slice %4 {offsets = [2, 0], sizes = [8, 256], strides = [1, 1]} : vector<11x256xf32> to vector<8x256xf32>
    %8 = vector.extract_strided_slice %4 {offsets = [3, 0], sizes = [8, 256], strides = [1, 1]} : vector<11x256xf32> to vector<8x256xf32>
    %9 = tpu.concatenate %5, %6, %7, %8 in 1 : vector<8x256xf32>, vector<8x256xf32>, vector<8x256xf32>, vector<8x256xf32> -> vector<8x1024xf32>
    %c0_1 = arith.constant 0 : index
    %c0_2 = arith.constant 0 : index
    %10 = vector.load %arg3[%c0_1, %c0_2] : memref<1024x1280xf32, #tpu.memory_space<vmem>>, vector<1024x1280xf32>
    %cst = arith.constant dense<0.000000e+00> : vector<8x1280xf32>
    %11 = tpu.matmul %9, %10, %cst {dimension_numbers = #tpu.dot_dimension_numbers<[1], [0], [0], [1], [0, 0, 1, 1], [], []>} : vector<8x1024xf32>, vector<1024x1280xf32>, vector<8x1280xf32> -> vector<8x1280xf32>
    %12 = vector.extract_strided_slice %11 {offsets = [0, 0], sizes = [8, 640], strides = [1, 1]} : vector<8x1280xf32> to vector<8x640xf32>
    %13 = vector.extract_strided_slice %11 {offsets = [0, 640], sizes = [8, 640], strides = [1, 1]} : vector<8x1280xf32> to vector<8x640xf32>
    %14 = arith.mulf %12, %12 : vector<8x640xf32>
    %15 = arith.mulf %13, %13 : vector<8x640xf32>
    %16 = arith.addf %14, %15 : vector<8x640xf32>
    %17 = math.sqrt %16 : vector<8x640xf32>
    %c0_3 = arith.constant 0 : index
    %c0_4 = arith.constant 0 : index
    %18 = vector.load %arg4[%c0_3, %c0_4] : memref<640x128xf32, #tpu.memory_space<vmem>>, vector<640x128xf32>
    %cst_5 = arith.constant dense<0.000000e+00> : vector<8x128xf32>
    %19 = tpu.matmul %17, %18, %cst_5 {dimension_numbers = #tpu.dot_dimension_numbers<[1], [0], [0], [1], [0, 0, 1, 1], [], []>} : vector<8x640xf32>, vector<640x128xf32>, vector<8x128xf32> -> vector<8x128xf32>
    %cst_6 = arith.constant 9.99999974E-6 : f32
    %20 = vector.broadcast %cst_6 : f32 to vector<8x128xf32>
    %21 = arith.maximumf %19, %20 : vector<8x128xf32>
    %22 = math.log %21 : vector<8x128xf32>
    %c0_7 = arith.constant 0 : index
    %c0_8 = arith.constant 0 : index
    %c0_9 = arith.constant 0 : index
    %23 = vector.load %arg5[%c0_7, %c0_8, %c0_9] : memref<1x8x128xf32, #tpu.memory_space<vmem>>, vector<1x8x128xf32>
    %24 = vector.shape_cast %23 : vector<1x8x128xf32> to vector<8x128xf32>
    %25 = vector.shape_cast %22 : vector<8x128xf32> to vector<1x8x128xf32>
    tpu.vector_store %arg5[%c0_7, %c0_8, %c0_9], %25 {strides = array<i32>} : memref<1x8x128xf32, #tpu.memory_space<vmem>>, vector<1x8x128xf32>,
    return
  }
  func.func @transform_0(%arg0: i32, %arg1: i32) -> (i32, i32, i32) {
    %c0_i32 = arith.constant 0 : i32
    %c0_i32_0 = arith.constant 0 : i32
    %c0_i32_1 = arith.constant 0 : i32
    return %arg0, %c0_i32, %c0_i32_0 : i32, i32, i32
  }
  func.func @transform_1(%arg0: i32, %arg1: i32) -> (i32, i32) {
    %c0_i32 = arith.constant 0 : i32
    %c0_i32_0 = arith.constant 0 : i32
    %c0_i32_1 = arith.constant 0 : i32
    return %c0_i32, %c0_i32_0 : i32, i32
  }
  func.func @transform_2(%arg0: i32, %arg1: i32) -> (i32, i32) {
    %c0_i32 = arith.constant 0 : i32
    %c0_i32_0 = arith.constant 0 : i32
    %c0_i32_1 = arith.constant 0 : i32
    return %c0_i32, %c0_i32_0 : i32, i32
  }
  func.func @transform_3(%arg0: i32, %arg1: i32) -> (i32, i32, i32) {
    %c0_i32 = arith.constant 0 : i32
    %c0_i32_0 = arith.constant 0 : i32
    return %arg0, %arg1, %c0_i32 : i32, i32, i32
  }
}

</mosaic_0001>

<llo_original>
// kernel: tpu_custom_call.1
$region0: #{tpu_custom_call.1}
  #allocation0 [shape = 'u32[]', space=smem, size = 0x4, offset = 0x4, fixed_abs, tag = 'smem constant byte address 0x4 - core index']
  #allocation1 [shape = 'u32[72,128]{1,0:T(1,128)}', space=vmem, size = 0x9000, scoped, tag = 'internal scratch']
  %s0 = inlined_call_operand.vmem [shape: f32[2,27,256], index: 0, kind: input, shape index: {}]
  %s1 = inlined_call_operand.hbm [shape: f32[1024,1280], index: 1, kind: input, shape index: {}]
  %s2 = inlined_call_operand.hbm [shape: f32[640,128], index: 2, kind: input, shape index: {}]
  %s3 = inlined_call_operand.hbm [shape: f32[2,24,128], index: 3, kind: output, shape index: {}]
  %s4 = sld [smem:[#allocation0]]
  $region53: #{tpu_custom_call.1} parent=0
    _
  %s6 = ssub.s32 1, %s4
  %s7 = scalar_select 0, %s6, %s4
  $region1: #{tpu_custom_call.1} parent=0
    #allocation2 [shape = 'u8[5242880]{0}', space=vmem, size = 0x500000, scoped, tag = 'input window, operand 1, single buffered']
    #allocation3 [shape = 's32[2]{0}', space=sflag, size = 0x8, scoped, tag = 'scoped memory for tpu_custom_call.1']
    #allocation4 [shape = 's32[2]{0}', space=sflag, size = 0x8, scoped, tag = 'scoped memory for tpu_custom_call.1']
    #allocation5 [shape = 'u8[327680]{0}', space=vmem, size = 0x50000, scoped, tag = 'input window, operand 2, single buffered']
    #allocation6 [shape = 's32[1]{0}', space=sflag, size = 0x4, scoped, tag = 'scoped memory for tpu_custom_call.1']
    #allocation7 [shape = 'u8[8192]{0}', space=vmem, size = 0x2000, scoped, tag = 'output window, operand 0']
    %8 = vsyncpa [#allocation3], 0
    %9 = vsyncpa [#allocation6], 0
    %10 = vsyncpa [#allocation4], 0
    %s11 = scalar_lea.sflag [#allocation4], 1
    %12 = vsyncpa %s11, 0
    loop: start=0, step=1, limit=8
    $region2: #{tpu_custom_call.1} parent=1 // loop_pre_header
      _
    $region3: #{tpu_custom_call.1} parent=1 // loop_header
      %s14 = sphi 0, %s18
      %p15 = scmp.ge.s32.totalorder %s14, 8
      %s21 = sphi 0, %s33
      %s22 = sphi 0, %s29
      %s23 = sphi 0, %s21
      %s24 = sphi 0, %s22
      %s25 = sphi 0, %s23
      %s26 = sphi 0, %s24
      %s36 = sphi 0, %s38
      %s39 = sphi 0, %s36
      %s40 = sphi 0, %s39
      %s56 = sphi 0, %s40
      %s60 = sphi 0, %s60
      %s62 = sphi 0, %s60
      %s63 = sphi 0, %s62
      %s77 = sphi 0, %s63
      %s81 = sphi 0, %s81
      %s83 = sphi 0, %s81
      %s84 = sphi 0, %s83
      %s98 = sphi 0, %s84
      %s106 = sphi 0, %s108
      %s109 = sphi 0, %s106
      %s110 = sphi 0, %s109
      %s126 = sphi 0, %s110
    $region4: #{tpu_custom_call.1} parent=1 // loop_header_branch
      %17 = sbr.rel (%p15) target = $region8
    $region5: #{tpu_custom_call.1} parent=1 // loop_body
      %s19 = ssub.s32 %s14, 1
      %s20 = ssub.s32 %s14, 2
      %s27 = sadd.s32 1, %s22
      %p28 = scmp.ge.s32.totalorder %s27, 3
      %s29 = scalar_select %p28, 0, %s27
      %s30 = sadd.s32 1, %s21
      %s31 = scalar_select %p28, %s30, %s21
      %p32 = scmp.ge.s32.totalorder %s31, 2
      %s33 = scalar_select %p32, 0, %s31
      %s34 = ssub.s32 %s21, %s33
      %p35 = scmp.eq.s32.totalorder %s34, 0
      %s37 = sadd.s32 %s36, 1
      %s38 = scalar_select %p35, %s36, %s37
      %p41 = pneg %p35
      %p42 = scmp.eq.s32.totalorder %s14, 5
      %p43 = por %p41, %p42
      %p44 = scmp.ne.s32.totalorder %s36, %s39
      %p45 = scmp.eq.s32.totalorder %s14, 0
      %p46 = por %p44, %p45
      %p47 = scmp.ne.s32.totalorder %s36, %s39
      %p48 = scmp.eq.s32.totalorder %s19, 5
      %p49 = por %p47, %p48
      %p50 = scmp.ne.s32.totalorder %s39, %s40
      %p51 = scmp.eq.s32.totalorder %s19, 0
      %p52 = por %p50, %p51
      %p53 = scmp.ne.s32.totalorder %s39, %s40
      %p54 = scmp.eq.s32.totalorder %s20, 5
      %p55 = por %p53, %p54
      %p57 = scmp.ne.s32.totalorder %s40, %s56
      %p58 = scmp.eq.s32.totalorder %s20, 0
      %p59 = por %p57, %p58
      %s61 = sadd.s32 %s60, 1
      %p64 = scmp.eq.s32.totalorder %s14, 5
      %p65 = scmp.ne.s32.totalorder %s60, %s62
      %p66 = scmp.eq.s32.totalorder %s14, 0
      %p67 = por %p65, %p66
      %p68 = scmp.ne.s32.totalorder %s60, %s62
      %p69 = scmp.eq.s32.totalorder %s19, 5
      %p70 = por %p68, %p69
      %p71 = scmp.ne.s32.totalorder %s62, %s63
      %p72 = scmp.eq.s32.totalorder %s19, 0
      %p73 = por %p71, %p72
      %p74 = scmp.ne.s32.totalorder %s62, %s63
      %p75 = scmp.eq.s32.totalorder %s20, 5
      %p76 = por %p74, %p75
      %p78 = scmp.ne.s32.totalorder %s63, %s77
      %p79 = scmp.eq.s32.totalorder %s20, 0
      %p80 = por %p78, %p79
      %s82 = sadd.s32 %s81, 1
      %p85 = scmp.eq.s32.totalorder %s14, 5
      %p86 = scmp.ne.s32.totalorder %s81, %s83
      %p87 = scmp.eq.s32.totalorder %s14, 0
      %p88 = por %p86, %p87
      %p89 = scmp.ne.s32.totalorder %s81, %s83
      %p90 = scmp.eq.s32.totalorder %s19, 5
      %p91 = por %p89, %p90
      %p92 = scmp.ne.s32.totalorder %s83, %s84
      %p93 = scmp.eq.s32.totalorder %s19, 0
      %p94 = por %p92, %p93
      %p95 = scmp.ne.s32.totalorder %s83, %s84
      %p96 = scmp.eq.s32.totalorder %s20, 5
      %p97 = por %p95, %p96
      %p99 = scmp.ne.s32.totalorder %s84, %s98
      %p100 = scmp.eq.s32.totalorder %s20, 0
      %p101 = por %p99, %p100
      %s102 = ssub.s32 %s21, %s33
      %s103 = ssub.s32 %s22, %s29
      %s104 = sor.u32 %s102, %s103
      %p105 = scmp.eq.s32.totalorder %s104, 0
      %s107 = sadd.s32 %s106, 1
      %s108 = scalar_select %p105, %s106, %s107
      %p111 = pneg %p105
      %p112 = scmp.eq.s32.totalorder %s14, 5
      %p113 = por %p111, %p112
      %p114 = scmp.ne.s32.totalorder %s106, %s109
      %p115 = scmp.eq.s32.totalorder %s14, 0
      %p116 = por %p114, %p115
      %p117 = scmp.ne.s32.totalorder %s106, %s109
      %p118 = scmp.eq.s32.totalorder %s19, 5
      %p119 = por %p117, %p118
      %p120 = scmp.ne.s32.totalorder %s109, %s110
      %p121 = scmp.eq.s32.totalorder %s19, 0
      %p122 = por %p120, %p121
      %p123 = scmp.ne.s32.totalorder %s109, %s110
      %p124 = scmp.eq.s32.totalorder %s20, 5
      %p125 = por %p123, %p124
      %p127 = scmp.ne.s32.totalorder %s110, %s126
      %p128 = scmp.eq.s32.totalorder %s20, 0
      %p129 = por %p127, %p128
      %p130 = scmp.le.s32.totalorder 1, %s14
      %p131 = scmp.lt.s32.totalorder %s14, 7
      %p132 = pnand %p130, %p131
      %p133 = pneg %p132
      // Predicated region
      $region9: #{tpu_custom_call.1} parent=5 // pred_check
        _
      $region10: #{tpu_custom_call.1} parent=5 // pred_check_branch
        %135 = sbr.rel (%p132) target = $region12
      $region11: #{tpu_custom_call.1} parent=5 // pred_region
        %s136 = ssub.s32 %s14, 1
        // Predicated region
        $region13: #{tpu_custom_call.1} parent=11 // pred_check
          %p137 = pneg %p73
        $region14: #{tpu_custom_call.1} parent=11 // pred_check_branch
          %139 = sbr.rel (%p137) target = $region16
        $region15: #{tpu_custom_call.1} parent=11 // pred_region
          %141 = vsyncadd [#allocation3], 0
          %s142 = sshll.u32 %s1, 4
          %s143 = int_to_ptr.hbm [resolvable:$true] %s142
          %s144 = sshll.u32 [#allocation2], 4
          %s145 = int_to_ptr.vmem [resolvable:$true] %s144
          %150 = dma.hbm_to_vmem [thread:$0]  %s143, 163840, %s145, [#allocation3], 1280, 1280, 80
        $region16: #{tpu_custom_call.1} parent=11 // pred_fallthru
          _
        // Predicated region
        $region17: #{tpu_custom_call.1} parent=11 // pred_check
          %p151 = pneg %p94
        $region18: #{tpu_custom_call.1} parent=11 // pred_check_branch
          %153 = sbr.rel (%p151) target = $region20
        $region19: #{tpu_custom_call.1} parent=11 // pred_region
          %155 = vsyncadd [#allocation6], 0
          %s156 = sshll.u32 %s2, 4
          %s157 = int_to_ptr.hbm [resolvable:$true] %s156
          %s158 = sshll.u32 [#allocation5], 4
          %s159 = int_to_ptr.vmem [resolvable:$true] %s158
          %164 = dma.hbm_to_vmem [thread:$0]  %s157, 10240, %s159, [#allocation6], 128, 128, 8
        $region20: #{tpu_custom_call.1} parent=11 // pred_fallthru
          _
      $region12: #{tpu_custom_call.1} parent=5 // pred_fallthru
        _
      %p165 = scmp.lt.s32.totalorder %s14, 6
      // Predicated region
      $region21: #{tpu_custom_call.1} parent=5 // pred_check
        %p166 = pneg %p165
      $region22: #{tpu_custom_call.1} parent=5 // pred_check_branch
        %168 = sbr.rel (%p166) target = $region24
      $region23: #{tpu_custom_call.1} parent=5 // pred_region
        // Predicated region
        $region25: #{tpu_custom_call.1} parent=23 // pred_check
          %p169 = pneg %p46
        $region26: #{tpu_custom_call.1} parent=23 // pred_check_branch
          %171 = sbr.rel (%p169) target = $region28
        $region27: #{tpu_custom_call.1} parent=23 // pred_region
          %p172 = scmp.lt.s32.totalorder %s21, 1
          %s173 = scalar_select %p172, %s21, 1
          %s174 = smul.addr %s173, 8
          %s175 = smul.addr %s174, 8
          %s176 = scalar_lea.vmem %s0, %s175
        $region28: #{tpu_custom_call.1} parent=23 // pred_fallthru
          _
      $region24: #{tpu_custom_call.1} parent=5 // pred_fallthru
        _
      %p177 = scmp.le.s32.totalorder 1, %s14
      %p178 = scmp.lt.s32.totalorder %s14, 7
      %p179 = pnand %p177, %p178
      %p180 = pneg %p179
      // Predicated region
      $region29: #{tpu_custom_call.1} parent=5 // pred_check
        _
      $region30: #{tpu_custom_call.1} parent=5 // pred_check_branch
        %182 = sbr.rel (%p179) target = $region32
      $region31: #{tpu_custom_call.1} parent=5 // pred_region
        %s183 = ssub.s32 %s14, 1
        // Predicated region
        $region33: #{tpu_custom_call.1} parent=31 // pred_check
          %p184 = pneg %p73
        $region34: #{tpu_custom_call.1} parent=31 // pred_check_branch
          %186 = sbr.rel (%p184) target = $region36
        $region35: #{tpu_custom_call.1} parent=31 // pred_region
          %188 = dma.done [#allocation3], 163840
        $region36: #{tpu_custom_call.1} parent=31 // pred_fallthru
          _
        // Predicated region
        $region37: #{tpu_custom_call.1} parent=31 // pred_check
          %p189 = pneg %p94
        $region38: #{tpu_custom_call.1} parent=31 // pred_check_branch
          %191 = sbr.rel (%p189) target = $region40
        $region39: #{tpu_custom_call.1} parent=31 // pred_region
          %193 = dma.done [#allocation6], 10240
        $region40: #{tpu_custom_call.1} parent=31 // pred_fallthru
          _
        %p194 = scmp.lt.s32.totalorder %s23, 1
        %s195 = scalar_select %p194, %s23, 1
        %s196 = smul.addr %s195, 8
        %s197 = smul.addr %s196, 8
        %s198 = scalar_lea.vmem %s0, %s197
        %p199 = pneg %p52
        %p200 = pneg %p49
        %p201 = pneg %p73
        %p202 = pneg %p70
        %p203 = pneg %p94
        %p204 = pneg %p91
        %p205 = pneg %p122
        %p206 = pneg %p119
        %s207 = sand.u32 %s109, 1
        %s208 = scalar_lea.sflag [#allocation4], %s207
        %s209 = sand.u32 %s109, 1
        %s210 = smul.addr %s209, 8
        %s211 = scalar_lea.vmem [#allocation7], %s210
        %p212 = scmp.lt.s32.totalorder %s23, 1
        %s213 = scalar_select %p212, %s23, 1
        %s214 = smul.addr %s213, 8
        %s215 = smul.addr %s214, 8
        %s216 = scalar_lea.vmem %s0, %s215
        %s217 = smul.u32 %s24, 8
        %s218 = sshra.s32 %s217, 3
        %s219 = sand.u32 %s217, 7
        %s220 = smul.u32 %s218, 2
        %s221 = smul.addr %s220, 8
        %s222 = scalar_lea.vmem %s216, %s221
        %v223 = vld [vmem:[%s222] sm:$0xff]
        %v224 = vld [vmem:[%s222 + $0x8] sm:$0xff]
        %v225 = vld [vmem:[%s222 + $0x10] sm:$0x7]
        %v226 = vld [vmem:[%s222 + $0x18] sm:$0x7]
        %vm231 = vcmask 1046528
        %v232 = vrot.slane %v223, 1
        %v233 = vrot.slane %v225, 1
        %v234 = vsel %vm231, %v232, %v233
        %v235 = vrot.slane %v224, 1
        %v236 = vrot.slane %v226, 1
        %v237 = vsel %vm231, %v235, %v236
        %vm240 = vcmask 1045504
        %v241 = vrot.slane %v223, 2
        %v242 = vrot.slane %v225, 2
        %v243 = vsel %vm240, %v241, %v242
        %v244 = vrot.slane %v224, 2
        %v245 = vrot.slane %v226, 2
        %v246 = vsel %vm240, %v244, %v245
        %vm249 = vcmask 1044480
        %v250 = vrot.slane %v223, 3
        %v251 = vrot.slane %v225, 3
        %v252 = vsel %vm249, %v250, %v251
        %v253 = vrot.slane %v224, 3
        %v254 = vrot.slane %v226, 3
        %v255 = vsel %vm249, %v253, %v254
        %v258 = vld [vmem:[#allocation2] sm:$0xff]
        %v259 = vld [vmem:[#allocation2 + $0x8] sm:$0xff]
        %v260 = vld [vmem:[#allocation2 + $0x10] sm:$0xff]
        %v261 = vld [vmem:[#allocation2 + $0x18] sm:$0xff]
        %v262 = vld [vmem:[#allocation2 + $0x20] sm:$0xff]
        %v263 = vld [vmem:[#allocation2 + $0x28] sm:$0xff]
        %v264 = vld [vmem:[#allocation2 + $0x30] sm:$0xff]
        %v265 = vld [vmem:[#allocation2 + $0x38] sm:$0xff]
        %v266 = vld [vmem:[#allocation2 + $0x40] sm:$0xff]
        %v267 = vld [vmem:[#allocation2 + $0x48] sm:$0xff]
        %v268 = vld [vmem:[#allocation2 + $0x50] sm:$0xff]
        %v269 = vld [vmem:[#allocation2 + $0x58] sm:$0xff]
        %v270 = vld [vmem:[#allocation2 + $0x60] sm:$0xff]
        %v271 = vld [vmem:[#allocation2 + $0x68] sm:$0xff]
        %v272 = vld [vmem:[#allocation2 + $0x70] sm:$0xff]
        %v273 = vld [vmem:[#allocation2 + $0x78] sm:$0xff]
        %v274 = vld [vmem:[#allocation2 + $0x80] sm:$0xff]
        %v275 = vld [vmem:[#allocation2 + $0x88] sm:$0xff]
        %v276 = vld [vmem:[#allocation2 + $0x90] sm:$0xff]
        %v277 = vld [vmem:[#allocation2 + $0x98] sm:$0xff]
        %v278 = vld [vmem:[#allocation2 + $0xa0] sm:$0xff]
        %v279 = vld [vmem:[#allocation2 + $0xa8] sm:$0xff]
        %v280 = vld [vmem:[#allocation2 + $0xb0] sm:$0xff]
        %v281 = vld [vmem:[#allocation2 + $0xb8] sm:$0xff]
        %v282 = vld [vmem:[#allocation2 + $0xc0] sm:$0xff]
        %v283 = vld [vmem:[#allocation2 + $0xc8] sm:$0xff]
        %v284 = vld [vmem:[#allocation2 + $0xd0] sm:$0xff]
        %v285 = vld [vmem:[#allocation2 + $0xd8] sm:$0xff]
        %v286 = vld [vmem:[#allocation2 + $0xe0] sm:$0xff]
        %v287 = vld [vmem:[#allocation2 + $0xe8] sm:$0xff]
        %v288 = vld [vmem:[#allocation2 + $0xf0] sm:$0xff]
        %v289 = vld [vmem:[#allocation2 + $0xf8] sm:$0xff]
        %v290 = vld [vmem:[#allocation2 + $0x100] sm:$0xff]
        %v291 = vld [vmem:[#allocation2 + $0x108] sm:$0xff]
        %v292 = vld [vmem:[#allocation2 + $0x110] sm:$0xff]
        %v293 = vld [vmem:[#allocation2 + $0x118] sm:$0xff]
        %v294 = vld [vmem:[#allocation2 + $0x120] sm:$0xff]
        %v295 = vld [vmem:[#allocation2 + $0x128] sm:$0xff]
        %v296 = vld [vmem:[#allocation2 + $0x130] sm:$0xff]
        %v297 = vld [vmem:[#allocation2 + $0x138] sm:$0xff]
        %v298 = vld [vmem:[#allocation2 + $0x140] sm:$0xff]
        %v299 = vld [vmem:[#allocation2 + $0x148] sm:$0xff]
        %v300 = vld [vmem:[#allocation2 + $0x150] sm:$0xff]
        %v301 = vld [vmem:[#allocation2 + $0x158] sm:$0xff]
        %v302 = vld [vmem:[#allocation2 + $0x160] sm:$0xff]
        %v303 = vld [vmem:[#allocation2 + $0x168] sm:$0xff]
        %v304 = vld [vmem:[#allocation2 + $0x170] sm:$0xff]
        %v305 = vld [vmem:[#allocation2 + $0x178] sm:$0xff]
        %v306 = vld [vmem:[#allocation2 + $0x180] sm:$0xff]
        %v307 = vld [vmem:[#allocation2 + $0x188] sm:$0xff]
        %v308 = vld [vmem:[#allocation2 + $0x190] sm:$0xff]
        %v309 = vld [vmem:[#allocation2 + $0x198] sm:$0xff]
        %v310 = vld [vmem:[#allocation2 + $0x1a0] sm:$0xff]
        %v311 = vld [vmem:[#allocation2 + $0x1a8] sm:$0xff]
        %v312 = vld [vmem:[#allocation2 + $0x1b0] sm:$0xff]
        %v313 = vld [vmem:[#allocation2 + $0x1b8] sm:$0xff]
        %v314 = vld [vmem:[#allocation2 + $0x1c0] sm:$0xff]
        %v315 = vld [vmem:[#allocation2 + $0x1c8] sm:$0xff]
        %v316 = vld [vmem:[#allocation2 + $0x1d0] sm:$0xff]
        %v317 = vld [vmem:[#allocation2 + $0x1d8] sm:$0xff]
        %v318 = vld [vmem:[#allocation2 + $0x1e0] sm:$0xff]
        %v319 = vld [vmem:[#allocation2 + $0x1e8] sm:$0xff]
        %v320 = vld [vmem:[#allocation2 + $0x1f0] sm:$0xff]
        %v321 = vld [vmem:[#allocation2 + $0x1f8] sm:$0xff]
        %v322 = vld [vmem:[#allocation2 + $0x200] sm:$0xff]
        %v323 = vld [vmem:[#allocation2 + $0x208] sm:$0xff]
        %v324 = vld [vmem:[#allocation2 + $0x210] sm:$0xff]
        %v325 = vld [vmem:[#allocation2 + $0x218] sm:$0xff]
        %v326 = vld [vmem:[#allocation2 + $0x220] sm:$0xff]
        %v327 = vld [vmem:[#allocation2 + $0x228] sm:$0xff]
        %v328 = vld [vmem:[#allocation2 + $0x230] sm:$0xff]
        %v329 = vld [vmem:[#allocation2 + $0x238] sm:$0xff]
        %v330 = vld [vmem:[#allocation2 + $0x240] sm:$0xff]
        %v331 = vld [vmem:[#allocation2 + $0x248] sm:$0xff]
        %v332 = vld [vmem:[#allocation2 + $0x250] sm:$0xff]
        %v333 = vld [vmem:[#allocation2 + $0x258] sm:$0xff]
        %v334 = vld [vmem:[#allocation2 + $0x260] sm:$0xff]
        %v335 = vld [vmem:[#allocation2 + $0x268] sm:$0xff]
        %v336 = vld [vmem:[#allocation2 + $0x270] sm:$0xff]
        %v337 = vld [vmem:[#allocation2 + $0x278] sm:$0xff]
        %v338 = vld [vmem:[#allocation2 + $0x280] sm:$0xff]
        %v339 = vld [vmem:[#allocation2 + $0x288] sm:$0xff]
        %v340 = vld [vmem:[#allocation2 + $0x290] sm:$0xff]
        %v341 = vld [vmem:[#allocation2 + $0x298] sm:$0xff]
        %v342 = vld [vmem:[#allocation2 + $0x2a0] sm:$0xff]
        %v343 = vld [vmem:[#allocation2 + $0x2a8] sm:$0xff]
        %v344 = vld [vmem:[#allocation2 + $0x2b0] sm:$0xff]
        %v345 = vld [vmem:[#allocation2 + $0x2b8] sm:$0xff]
        %v346 = vld [vmem:[#allocation2 + $0x2c0] sm:$0xff]
        %v347 = vld [vmem:[#allocation2 + $0x2c8] sm:$0xff]
        %v348 = vld [vmem:[#allocation2 + $0x2d0] sm:$0xff]
        %v349 = vld [vmem:[#allocation2 + $0x2d8] sm:$0xff]
        %v350 = vld [vmem:[#allocation2 + $0x2e0] sm:$0xff]
        %v351 = vld [vmem:[#allocation2 + $0x2e8] sm:$0xff]
        %v352 = vld [vmem:[#allocation2 + $0x2f0] sm:$0xff]
        %v353 = vld [vmem:[#allocation2 + $0x2f8] sm:$0xff]
        %v354 = vld [vmem:[#allocation2 + $0x300] sm:$0xff]
        %v355 = vld [vmem:[#allocation2 + $0x308] sm:$0xff]
        %v356 = vld [vmem:[#allocation2 + $0x310] sm:$0xff]
        %v357 = vld [vmem:[#allocation2 + $0x318] sm:$0xff]
        %v358 = vld [vmem:[#allocation2 + $0x320] sm:$0xff]
        %v359 = vld [vmem:[#allocation2 + $0x328] sm:$0xff]
        %v360 = vld [vmem:[#allocation2 + $0x330] sm:$0xff]
        %v361 = vld [vmem:[#allocation2 + $0x338] sm:$0xff]
        %v362 = vld [vmem:[#allocation2 + $0x340] sm:$0xff]
        %v363 = vld [vmem:[#allocation2 + $0x348] sm:$0xff]
        %v364 = vld [vmem:[#allocation2 + $0x350] sm:$0xff]
        %v365 = vld [vmem:[#allocation2 + $0x358] sm:$0xff]
        %v366 = vld [vmem:[#allocation2 + $0x360] sm:$0xff]
        %v367 = vld [vmem:[#allocation2 + $0x368] sm:$0xff]
        %v368 = vld [vmem:[#allocation2 + $0x370] sm:$0xff]
        %v369 = vld [vmem:[#allocation2 + $0x378] sm:$0xff]
        %v370 = vld [vmem:[#allocation2 + $0x380] sm:$0xff]
        %v371 = vld [vmem:[#allocation2 + $0x388] sm:$0xff]
        %v372 = vld [vmem:[#allocation2 + $0x390] sm:$0xff]
        %v373 = vld [vmem:[#allocation2 + $0x398] sm:$0xff]
        %v374 = vld [vmem:[#allocation2 + $0x3a0] sm:$0xff]
        %v375 = vld [vmem:[#allocation2 + $0x3a8] sm:$0xff]
        %v376 = vld [vmem:[#allocation2 + $0x3b0] sm:$0xff]
        %v377 = vld [vmem:[#allocation2 + $0x3b8] sm:$0xff]
        %v378 = vld [vmem:[#allocation2 + $0x3c0] sm:$0xff]
        %v379 = vld [vmem:[#allocation2 + $0x3c8] sm:$0xff]
        %v380 = vld [vmem:[#allocation2 + $0x3d0] sm:$0xff]
        %v381 = vld [vmem:[#allocation2 + $0x3d8] sm:$0xff]
        %v382 = vld [vmem:[#allocation2 + $0x3e0] sm:$0xff]
        %v383 = vld [vmem:[#allocation2 + $0x3e8] sm:$0xff]
        %v384 = vld [vmem:[#allocation2 + $0x3f0] sm:$0xff]
        %v385 = vld [vmem:[#allocation2 + $0x3f8] sm:$0xff]
        %v386 = vld [vmem:[#allocation2 + $0x400] sm:$0xff]
        %v387 = vld [vmem:[#allocation2 + $0x408] sm:$0xff]
        %v388 = vld [vmem:[#allocation2 + $0x410] sm:$0xff]
        %v389 = vld [vmem:[#allocation2 + $0x418] sm:$0xff]
        %v390 = vld [vmem:[#allocation2 + $0x420] sm:$0xff]
        %v391 = vld [vmem:[#allocation2 + $0x428] sm:$0xff]
        %v392 = vld [vmem:[#allocation2 + $0x430] sm:$0xff]
        %v393 = vld [vmem:[#allocation2 + $0x438] sm:$0xff]
        %v394 = vld [vmem:[#allocation2 + $0x440] sm:$0xff]
        %v395 = vld [vmem:[#allocation2 + $0x448] sm:$0xff]
        %v396 = vld [vmem:[#allocation2 + $0x450] sm:$0xff]
        %v397 = vld [vmem:[#allocation2 + $0x458] sm:$0xff]
        %v398 = vld [vmem:[#allocation2 + $0x460] sm:$0xff]
        %v399 = vld [vmem:[#allocation2 + $0x468] sm:$0xff]
        %v400 = vld [vmem:[#allocation2 + $0x470] sm:$0xff]
        %v401 = vld [vmem:[#allocation2 + $0x478] sm:$0xff]
        %v402 = vld [vmem:[#allocation2 + $0x480] sm:$0xff]
        %v403 = vld [vmem:[#allocation2 + $0x488] sm:$0xff]
        %v404 = vld [vmem:[#allocation2 + $0x490] sm:$0xff]
        %v405 = vld [vmem:[#allocation2 + $0x498] sm:$0xff]
        %v406 = vld [vmem:[#allocation2 + $0x4a0] sm:$0xff]
        %v407 = vld [vmem:[#allocation2 + $0x4a8] sm:$0xff]
        %v408 = vld [vmem:[#allocation2 + $0x4b0] sm:$0xff]
        %v409 = vld [vmem:[#allocation2 + $0x4b8] sm:$0xff]
        %v410 = vld [vmem:[#allocation2 + $0x4c0] sm:$0xff]
        %v411 = vld [vmem:[#allocation2 + $0x4c8] sm:$0xff]
        %v412 = vld [vmem:[#allocation2 + $0x4d0] sm:$0xff]
        %v413 = vld [vmem:[#allocation2 + $0x4d8] sm:$0xff]
        %v414 = vld [vmem:[#allocation2 + $0x4e0] sm:$0xff]
        %v415 = vld [vmem:[#allocation2 + $0x4e8] sm:$0xff]
        %v416 = vld [vmem:[#allocation2 + $0x4f0] sm:$0xff]
        %v417 = vld [vmem:[#allocation2 + $0x4f8] sm:$0xff]
        %v418 = vld [vmem:[#allocation2 + $0x500] sm:$0xff]
        %v419 = vld [vmem:[#allocation2 + $0x508] sm:$0xff]
        %v420 = vld [vmem:[#allocation2 + $0x510] sm:$0xff]
        %v421 = vld [vmem:[#allocation2 + $0x518] sm:$0xff]
        %v422 = vld [vmem:[#allocation2 + $0x520] sm:$0xff]
        %v423 = vld [vmem:[#allocation2 + $0x528] sm:$0xff]
        %v424 = vld [vmem:[#allocation2 + $0x530] sm:$0xff]
        %v425 = vld [vmem:[#allocation2 + $0x538] sm:$0xff]
        %v426 = vld [vmem:[#allocation2 + $0x540] sm:$0xff]
        %v427 = vld [vmem:[#allocation2 + $0x548] sm:$0xff]
        %v428 = vld [vmem:[#allocation2 + $0x550] sm:$0xff]
        %v429 = vld [vmem:[#allocation2 + $0x558] sm:$0xff]
        %v430 = vld [vmem:[#allocation2 + $0x560] sm:$0xff]
        %v431 = vld [vmem:[#allocation2 + $0x568] sm:$0xff]
        %v432 = vld [vmem:[#allocation2 + $0x570] sm:$0xff]
        %v433 = vld [vmem:[#allocation2 + $0x578] sm:$0xff]
        %v434 = vld [vmem:[#allocation2 + $0x580] sm:$0xff]
        %v435 = vld [vmem:[#allocation2 + $0x588] sm:$0xff]
        %v436 = vld [vmem:[#allocation2 + $0x590] sm:$0xff]
        %v437 = vld [vmem:[#allocation2 + $0x598] sm:$0xff]
        %v438 = vld [vmem:[#allocation2 + $0x5a0] sm:$0xff]
        %v439 = vld [vmem:[#allocation2 + $0x5a8] sm:$0xff]
        %v440 = vld [vmem:[#allocation2 + $0x5b0] sm:$0xff]
        %v441 = vld [vmem:[#allocation2 + $0x5b8] sm:$0xff]
        %v442 = vld [vmem:[#allocation2 + $0x5c0] sm:$0xff]
        %v443 = vld [vmem:[#allocation2 + $0x5c8] sm:$0xff]
        %v444 = vld [vmem:[#allocation2 + $0x5d0] sm:$0xff]
        %v445 = vld [vmem:[#allocation2 + $0x5d8] sm:$0xff]
        %v446 = vld [vmem:[#allocation2 + $0x5e0] sm:$0xff]
        %v447 = vld [vmem:[#allocation2 + $0x5e8] sm:$0xff]
        %v448 = vld [vmem:[#allocation2 + $0x5f0] sm:$0xff]
        %v449 = vld [vmem:[#allocation2 + $0x5f8] sm:$0xff]
        %v450 = vld [vmem:[#allocation2 + $0x600] sm:$0xff]
        %v451 = vld [vmem:[#allocation2 + $0x608] sm:$0xff]
        %v452 = vld [vmem:[#allocation2 + $0x610] sm:$0xff]
        %v453 = vld [vmem:[#allocation2 + $0x618] sm:$0xff]
        %v454 = vld [vmem:[#allocation2 + $0x620] sm:$0xff]
        %v455 = vld [vmem:[#allocation2 + $0x628] sm:$0xff]
        %v456 = vld [vmem:[#allocation2 + $0x630] sm:$0xff]
        %v457 = vld [vmem:[#allocation2 + $0x638] sm:$0xff]
        %v458 = vld [vmem:[#allocation2 + $0x640] sm:$0xff]
        %v459 = vld [vmem:[#allocation2 + $0x648] sm:$0xff]
        %v460 = vld [vmem:[#allocation2 + $0x650] sm:$0xff]
        %v461 = vld [vmem:[#allocation2 + $0x658] sm:$0xff]
        %v462 = vld [vmem:[#allocation2 + $0x660] sm:$0xff]
        %v463 = vld [vmem:[#allocation2 + $0x668] sm:$0xff]
        %v464 = vld [vmem:[#allocation2 + $0x670] sm:$0xff]
        %v465 = vld [vmem:[#allocation2 + $0x678] sm:$0xff]
        %v466 = vld [vmem:[#allocation2 + $0x680] sm:$0xff]
        %v467 = vld [vmem:[#allocation2 + $0x688] sm:$0xff]
        %v468 = vld [vmem:[#allocation2 + $0x690] sm:$0xff]
        %v469 = vld [vmem:[#allocation2 + $0x698] sm:$0xff]
        %v470 = vld [vmem:[#allocation2 + $0x6a0] sm:$0xff]
        %v471 = vld [vmem:[#allocation2 + $0x6a8] sm:$0xff]
        %v472 = vld [vmem:[#allocation2 + $0x6b0] sm:$0xff]
        %v473 = vld [vmem:[#allocation2 + $0x6b8] sm:$0xff]
        %v474 = vld [vmem:[#allocation2 + $0x6c0] sm:$0xff]
        %v475 = vld [vmem:[#allocation2 + $0x6c8] sm:$0xff]
        %v476 = vld [vmem:[#allocation2 + $0x6d0] sm:$0xff]
        %v477 = vld [vmem:[#allocation2 + $0x6d8] sm:$0xff]
        %v478 = vld [vmem:[#allocation2 + $0x6e0] sm:$0xff]
        %v479 = vld [vmem:[#allocation2 + $0x6e8] sm:$0xff]
        %v480 = vld [vmem:[#allocation2 + $0x6f0] sm:$0xff]
        %v481 = vld [vmem:[#allocation2 + $0x6f8] sm:$0xff]
        %v482 = vld [vmem:[#allocation2 + $0x700] sm:$0xff]
        %v483 = vld [vmem:[#allocation2 + $0x708] sm:$0xff]
        %v484 = vld [vmem:[#allocation2 + $0x710] sm:$0xff]
        %v485 = vld [vmem:[#allocation2 + $0x718] sm:$0xff]
        %v486 = vld [vmem:[#allocation2 + $0x720] sm:$0xff]
        %v487 = vld [vmem:[#allocation2 + $0x728] sm:$0xff]
        %v488 = vld [vmem:[#allocation2 + $0x730] sm:$0xff]
        %v489 = vld [vmem:[#allocation2 + $0x738] sm:$0xff]
        %v490 = vld [vmem:[#allocation2 + $0x740] sm:$0xff]
        %v491 = vld [vmem:[#allocation2 + $0x748] sm:$0xff]
        %v492 = vld [vmem:[#allocation2 + $0x750] sm:$0xff]
        %v493 = vld [vmem:[#allocation2 + $0x758] sm:$0xff]
        %v494 = vld [vmem:[#allocation2 + $0x760] sm:$0xff]
        %v495 = vld [vmem:[#allocation2 + $0x768] sm:$0xff]
        %v496 = vld [vmem:[#allocation2 + $0x770] sm:$0xff]
        %v497 = vld [vmem:[#allocation2 + $0x778] sm:$0xff]
        %v498 = vld [vmem:[#allocation2 + $0x780] sm:$0xff]
        %v499 = vld [vmem:[#allocation2 + $0x788] sm:$0xff]
        %v500 = vld [vmem:[#allocation2 + $0x790] sm:$0xff]
        %v501 = vld [vmem:[#allocation2 + $0x798] sm:$0xff]
        %v502 = vld [vmem:[#allocation2 + $0x7a0] sm:$0xff]
        %v503 = vld [vmem:[#allocation2 + $0x7a8] sm:$0xff]
        %v504 = vld [vmem:[#allocation2 + $0x7b0] sm:$0xff]
        %v505 = vld [vmem:[#allocation2 + $0x7b8] sm:$0xff]
        %v506 = vld [vmem:[#allocation2 + $0x7c0] sm:$0xff]
        %v507 = vld [vmem:[#allocation2 + $0x7c8] sm:$0xff]
        %v508 = vld [vmem:[#allocation2 + $0x7d0] sm:$0xff]
        %v509 = vld [vmem:[#allocation2 + $0x7d8] sm:$0xff]
        %v510 = vld [vmem:[#allocation2 + $0x7e0] sm:$0xff]
        %v511 = vld [vmem:[#allocation2 + $0x7e8] sm:$0xff]
        %v512 = vld [vmem:[#allocation2 + $0x7f0] sm:$0xff]
        %v513 = vld [vmem:[#allocation2 + $0x7f8] sm:$0xff]
        %v514 = vld [vmem:[#allocation2 + $0x800] sm:$0xff]
        %v515 = vld [vmem:[#allocation2 + $0x808] sm:$0xff]
        %v516 = vld [vmem:[#allocation2 + $0x810] sm:$0xff]
        %v517 = vld [vmem:[#allocation2 + $0x818] sm:$0xff]
        %v518 = vld [vmem:[#allocation2 + $0x820] sm:$0xff]
        %v519 = vld [vmem:[#allocation2 + $0x828] sm:$0xff]
        %v520 = vld [vmem:[#allocation2 + $0x830] sm:$0xff]
        %v521 = vld [vmem:[#allocation2 + $0x838] sm:$0xff]
        %v522 = vld [vmem:[#allocation2 + $0x840] sm:$0xff]
        %v523 = vld [vmem:[#allocation2 + $0x848] sm:$0xff]
        %v524 = vld [vmem:[#allocation2 + $0x850] sm:$0xff]
        %v525 = vld [vmem:[#allocation2 + $0x858] sm:$0xff]
        %v526 = vld [vmem:[#allocation2 + $0x860] sm:$0xff]
        %v527 = vld [vmem:[#allocation2 + $0x868] sm:$0xff]
        %v528 = vld [vmem:[#allocation2 + $0x870] sm:$0xff]
        %v529 = vld [vmem:[#allocation2 + $0x878] sm:$0xff]
        %v530 = vld [vmem:[#allocation2 + $0x880] sm:$0xff]
        %v531 = vld [vmem:[#allocation2 + $0x888] sm:$0xff]
        %v532 = vld [vmem:[#allocation2 + $0x890] sm:$0xff]
        %v533 = vld [vmem:[#allocation2 + $0x898] sm:$0xff]
        %v534 = vld [vmem:[#allocation2 + $0x8a0] sm:$0xff]
        %v535 = vld [vmem:[#allocation2 + $0x8a8] sm:$0xff]
        %v536 = vld [vmem:[#allocation2 + $0x8b0] sm:$0xff]
        %v537 = vld [vmem:[#allocation2 + $0x8b8] sm:$0xff]
        %v538 = vld [vmem:[#allocation2 + $0x8c0] sm:$0xff]
        %v539 = vld [vmem:[#allocation2 + $0x8c8] sm:$0xff]
        %v540 = vld [vmem:[#allocation2 + $0x8d0] sm:$0xff]
        %v541 = vld [vmem:[#allocation2 + $0x8d8] sm:$0xff]
        %v542 = vld [vmem:[#allocation2 + $0x8e0] sm:$0xff]
        %v543 = vld [vmem:[#allocation2 + $0x8e8] sm:$0xff]
        %v544 = vld [vmem:[#allocation2 + $0x8f0] sm:$0xff]
        %v545 = vld [vmem:[#allocation2 + $0x8f8] sm:$0xff]
        %v546 = vld [vmem:[#allocation2 + $0x900] sm:$0xff]
        %v547 = vld [vmem:[#allocation2 + $0x908] sm:$0xff]
        %v548 = vld [vmem:[#allocation2 + $0x910] sm:$0xff]
        %v549 = vld [vmem:[#allocation2 + $0x918] sm:$0xff]
        %v550 = vld [vmem:[#allocation2 + $0x920] sm:$0xff]
        %v551 = vld [vmem:[#allocation2 + $0x928] sm:$0xff]
        %v552 = vld [vmem:[#allocation2 + $0x930] sm:$0xff]
        %v553 = vld [vmem:[#allocation2 + $0x938] sm:$0xff]
        %v554 = vld [vmem:[#allocation2 + $0x940] sm:$0xff]
        %v555 = vld [vmem:[#allocation2 + $0x948] sm:$0xff]
        %v556 = vld [vmem:[#allocation2 + $0x950] sm:$0xff]
        %v557 = vld [vmem:[#allocation2 + $0x958] sm:$0xff]
        %v558 = vld [vmem:[#allocation2 + $0x960] sm:$0xff]
        %v559 = vld [vmem:[#allocation2 + $0x968] sm:$0xff]
        %v560 = vld [vmem:[#allocation2 + $0x970] sm:$0xff]
        %v561 = vld [vmem:[#allocation2 + $0x978] sm:$0xff]
        %v562 = vld [vmem:[#allocation2 + $0x980] sm:$0xff]
        %v563 = vld [vmem:[#allocation2 + $0x988] sm:$0xff]
        %v564 = vld [vmem:[#allocation2 + $0x990] sm:$0xff]
        %v565 = vld [vmem:[#allocation2 + $0x998] sm:$0xff]
        %v566 = vld [vmem:[#allocation2 + $0x9a0] sm:$0xff]
        %v567 = vld [vmem:[#allocation2 + $0x9a8] sm:$0xff]
        %v568 = vld [vmem:[#allocation2 + $0x9b0] sm:$0xff]
        %v569 = vld [vmem:[#allocation2 + $0x9b8] sm:$0xff]
        %v570 = vld [vmem:[#allocation2 + $0x9c0] sm:$0xff]
        %v571 = vld [vmem:[#allocation2 + $0x9c8] sm:$0xff]
        %v572 = vld [vmem:[#allocation2 + $0x9d0] sm:$0xff]
        %v573 = vld [vmem:[#allocation2 + $0x9d8] sm:$0xff]
        %v574 = vld [vmem:[#allocation2 + $0x9e0] sm:$0xff]
        %v575 = vld [vmem:[#allocation2 + $0x9e8] sm:$0xff]
        %v576 = vld [vmem:[#allocation2 + $0x9f0] sm:$0xff]
        %v577 = vld [vmem:[#allocation2 + $0x9f8] sm:$0xff]
        %v578 = vld [vmem:[#allocation2 + $0xa00] sm:$0xff]
        %v579 = vld [vmem:[#allocation2 + $0xa08] sm:$0xff]
        %v580 = vld [vmem:[#allocation2 + $0xa10] sm:$0xff]
        %v581 = vld [vmem:[#allocation2 + $0xa18] sm:$0xff]
        %v582 = vld [vmem:[#allocation2 + $0xa20] sm:$0xff]
        %v583 = vld [vmem:[#allocation2 + $0xa28] sm:$0xff]
        %v584 = vld [vmem:[#allocation2 + $0xa30] sm:$0xff]
        %v585 = vld [vmem:[#allocation2 + $0xa38] sm:$0xff]
        %v586 = vld [vmem:[#allocation2 + $0xa40] sm:$0xff]
        %v587 = vld [vmem:[#allocation2 + $0xa48] sm:$0xff]
        %v588 = vld [vmem:[#allocation2 + $0xa50] sm:$0xff]
        %v589 = vld [vmem:[#allocation2 + $0xa58] sm:$0xff]
        %v590 = vld [vmem:[#allocation2 + $0xa60] sm:$0xff]
        %v591 = vld [vmem:[#allocation2 + $0xa68] sm:$0xff]
        %v592 = vld [vmem:[#allocation2 + $0xa70] sm:$0xff]
        %v593 = vld [vmem:[#allocation2 + $0xa78] sm:$0xff]
        %v594 = vld [vmem:[#allocation2 + $0xa80] sm:$0xff]
        %v595 = vld [vmem:[#allocation2 + $0xa88] sm:$0xff]
        %v596 = vld [vmem:[#allocation2 + $0xa90] sm:$0xff]
        %v597 = vld [vmem:[#allocation2 + $0xa98] sm:$0xff]
        %v598 = vld [vmem:[#allocation2 + $0xaa0] sm:$0xff]
        %v599 = vld [vmem:[#allocation2 + $0xaa8] sm:$0xff]
        %v600 = vld [vmem:[#allocation2 + $0xab0] sm:$0xff]
        %v601 = vld [vmem:[#allocation2 + $0xab8] sm:$0xff]
        %v602 = vld [vmem:[#allocation2 + $0xac0] sm:$0xff]
        %v603 = vld [vmem:[#allocation2 + $0xac8] sm:$0xff]
        %v604 = vld [vmem:[#allocation2 + $0xad0] sm:$0xff]
        %v605 = vld [vmem:[#allocation2 + $0xad8] sm:$0xff]
        %v606 = vld [vmem:[#allocation2 + $0xae0] sm:$0xff]
        %v607 = vld [vmem:[#allocation2 + $0xae8] sm:$0xff]
        %v608 = vld [vmem:[#allocation2 + $0xaf0] sm:$0xff]
        %v609 = vld [vmem:[#allocation2 + $0xaf8] sm:$0xff]
        %v610 = vld [vmem:[#allocation2 + $0xb00] sm:$0xff]
        %v611 = vld [vmem:[#allocation2 + $0xb08] sm:$0xff]
        %v612 = vld [vmem:[#allocation2 + $0xb10] sm:$0xff]
        %v613 = vld [vmem:[#allocation2 + $0xb18] sm:$0xff]
        %v614 = vld [vmem:[#allocation2 + $0xb20] sm:$0xff]
        %v615 = vld [vmem:[#allocation2 + $0xb28] sm:$0xff]
        %v616 = vld [vmem:[#allocation2 + $0xb30] sm:$0xff]
        %v617 = vld [vmem:[#allocation2 + $0xb38] sm:$0xff]
        %v618 = vld [vmem:[#allocation2 + $0xb40] sm:$0xff]
        %v619 = vld [vmem:[#allocation2 + $0xb48] sm:$0xff]
        %v620 = vld [vmem:[#allocation2 + $0xb50] sm:$0xff]
        %v621 = vld [vmem:[#allocation2 + $0xb58] sm:$0xff]
        %v622 = vld [vmem:[#allocation2 + $0xb60] sm:$0xff]
        %v623 = vld [vmem:[#allocation2 + $0xb68] sm:$0xff]
        %v624 = vld [vmem:[#allocation2 + $0xb70] sm:$0xff]
        %v625 = vld [vmem:[#allocation2 + $0xb78] sm:$0xff]
        %v626 = vld [vmem:[#allocation2 + $0xb80] sm:$0xff]
        %v627 = vld [vmem:[#allocation2 + $0xb88] sm:$0xff]
        %v628 = vld [vmem:[#allocation2 + $0xb90] sm:$0xff]
        %v629 = vld [vmem:[#allocation2 + $0xb98] sm:$0xff]
        %v630 = vld [vmem:[#allocation2 + $0xba0] sm:$0xff]
        %v631 = vld [vmem:[#allocation2 + $0xba8] sm:$0xff]
        %v632 = vld [vmem:[#allocation2 + $0xbb0] sm:$0xff]
        %v633 = vld [vmem:[#allocation2 + $0xbb8] sm:$0xff]
        %v634 = vld [vmem:[#allocation2 + $0xbc0] sm:$0xff]
        %v635 = vld [vmem:[#allocation2 + $0xbc8] sm:$0xff]
        %v636 = vld [vmem:[#allocation2 + $0xbd0] sm:$0xff]
        %v637 = vld [vmem:[#allocation2 + $0xbd8] sm:$0xff]
        %v638 = vld [vmem:[#allocation2 + $0xbe0] sm:$0xff]
        %v639 = vld [vmem:[#allocation2 + $0xbe8] sm:$0xff]
        %v640 = vld [vmem:[#allocation2 + $0xbf0] sm:$0xff]
        %v641 = vld [vmem:[#allocation2 + $0xbf8] sm:$0xff]
        %v642 = vld [vmem:[#allocation2 + $0xc00] sm:$0xff]
        %v643 = vld [vmem:[#allocation2 + $0xc08] sm:$0xff]
        %v644 = vld [vmem:[#allocation2 + $0xc10] sm:$0xff]
        %v645 = vld [vmem:[#allocation2 + $0xc18] sm:$0xff]
        %v646 = vld [vmem:[#allocation2 + $0xc20] sm:$0xff]
        %v647 = vld [vmem:[#allocation2 + $0xc28] sm:$0xff]
        %v648 = vld [vmem:[#allocation2 + $0xc30] sm:$0xff]
        %v649 = vld [vmem:[#allocation2 + $0xc38] sm:$0xff]
        %v650 = vld [vmem:[#allocation2 + $0xc40] sm:$0xff]
        %v651 = vld [vmem:[#allocation2 + $0xc48] sm:$0xff]
        %v652 = vld [vmem:[#allocation2 + $0xc50] sm:$0xff]
        %v653 = vld [vmem:[#allocation2 + $0xc58] sm:$0xff]
        %v654 = vld [vmem:[#allocation2 + $0xc60] sm:$0xff]
        %v655 = vld [vmem:[#allocation2 + $0xc68] sm:$0xff]
        %v656 = vld [vmem:[#allocation2 + $0xc70] sm:$0xff]
        %v657 = vld [vmem:[#allocation2 + $0xc78] sm:$0xff]
        %v658 = vld [vmem:[#allocation2 + $0xc80] sm:$0xff]
        %v659 = vld [vmem:[#allocation2 + $0xc88] sm:$0xff]
        %v660 = vld [vmem:[#allocation2 + $0xc90] sm:$0xff]
        %v661 = vld [vmem:[#allocation2 + $0xc98] sm:$0xff]
        %v662 = vld [vmem:[#allocation2 + $0xca0] sm:$0xff]
        %v663 = vld [vmem:[#allocation2 + $0xca8] sm:$0xff]
        %v664 = vld [vmem:[#allocation2 + $0xcb0] sm:$0xff]
        %v665 = vld [vmem:[#allocation2 + $0xcb8] sm:$0xff]
        %v666 = vld [vmem:[#allocation2 + $0xcc0] sm:$0xff]
        %v667 = vld [vmem:[#allocation2 + $0xcc8] sm:$0xff]
        %v668 = vld [vmem:[#allocation2 + $0xcd0] sm:$0xff]
        %v669 = vld [vmem:[#allocation2 + $0xcd8] sm:$0xff]
        %v670 = vld [vmem:[#allocation2 + $0xce0] sm:$0xff]
        %v671 = vld [vmem:[#allocation2 + $0xce8] sm:$0xff]
        %v672 = vld [vmem:[#allocation2 + $0xcf0] sm:$0xff]
        %v673 = vld [vmem:[#allocation2 + $0xcf8] sm:$0xff]
        %v674 = vld [vmem:[#allocation2 + $0xd00] sm:$0xff]
        %v675 = vld [vmem:[#allocation2 + $0xd08] sm:$0xff]
        %v676 = vld [vmem:[#allocation2 + $0xd10] sm:$0xff]
        %v677 = vld [vmem:[#allocation2 + $0xd18] sm:$0xff]
        %v678 = vld [vmem:[#allocation2 + $0xd20] sm:$0xff]
        %v679 = vld [vmem:[#allocation2 + $0xd28] sm:$0xff]
        %v680 = vld [vmem:[#allocation2 + $0xd30] sm:$0xff]
        %v681 = vld [vmem:[#allocation2 + $0xd38] sm:$0xff]
        %v682 = vld [vmem:[#allocation2 + $0xd40] sm:$0xff]
        %v683 = vld [vmem:[#allocation2 + $0xd48] sm:$0xff]
        %v684 = vld [vmem:[#allocation2 + $0xd50] sm:$0xff]
        %v685 = vld [vmem:[#allocation2 + $0xd58] sm:$0xff]
        %v686 = vld [vmem:[#allocation2 + $0xd60] sm:$0xff]
        %v687 = vld [vmem:[#allocation2 + $0xd68] sm:$0xff]
        %v688 = vld [vmem:[#allocation2 + $0xd70] sm:$0xff]
        %v689 = vld [vmem:[#allocation2 + $0xd78] sm:$0xff]
        %v690 = vld [vmem:[#allocation2 + $0xd80] sm:$0xff]
        %v691 = vld [vmem:[#allocation2 + $0xd88] sm:$0xff]
        %v692 = vld [vmem:[#allocation2 + $0xd90] sm:$0xff]
        %v693 = vld [vmem:[#allocation2 + $0xd98] sm:$0xff]
        %v694 = vld [vmem:[#allocation2 + $0xda0] sm:$0xff]
        %v695 = vld [vmem:[#allocation2 + $0xda8] sm:$0xff]
        %v696 = vld [vmem:[#allocation2 + $0xdb0] sm:$0xff]
        %v697 = vld [vmem:[#allocation2 + $0xdb8] sm:$0xff]
        %v698 = vld [vmem:[#allocation2 + $0xdc0] sm:$0xff]
        %v699 = vld [vmem:[#allocation2 + $0xdc8] sm:$0xff]
        %v700 = vld [vmem:[#allocation2 + $0xdd0] sm:$0xff]
        %v701 = vld [vmem:[#allocation2 + $0xdd8] sm:$0xff]
        %v702 = vld [vmem:[#allocation2 + $0xde0] sm:$0xff]
        %v703 = vld [vmem:[#allocation2 + $0xde8] sm:$0xff]
        %v704 = vld [vmem:[#allocation2 + $0xdf0] sm:$0xff]
        %v705 = vld [vmem:[#allocation2 + $0xdf8] sm:$0xff]
        %v706 = vld [vmem:[#allocation2 + $0xe00] sm:$0xff]
        %v707 = vld [vmem:[#allocation2 + $0xe08] sm:$0xff]
        %v708 = vld [vmem:[#allocation2 + $0xe10] sm:$0xff]
        %v709 = vld [vmem:[#allocation2 + $0xe18] sm:$0xff]
        %v710 = vld [vmem:[#allocation2 + $0xe20] sm:$0xff]
        %v711 = vld [vmem:[#allocation2 + $0xe28] sm:$0xff]
        %v712 = vld [vmem:[#allocation2 + $0xe30] sm:$0xff]
        %v713 = vld [vmem:[#allocation2 + $0xe38] sm:$0xff]
        %v714 = vld [vmem:[#allocation2 + $0xe40] sm:$0xff]
        %v715 = vld [vmem:[#allocation2 + $0xe48] sm:$0xff]
        %v716 = vld [vmem:[#allocation2 + $0xe50] sm:$0xff]
        %v717 = vld [vmem:[#allocation2 + $0xe58] sm:$0xff]
        %v718 = vld [vmem:[#allocation2 + $0xe60] sm:$0xff]
        %v719 = vld [vmem:[#allocation2 + $0xe68] sm:$0xff]
        %v720 = vld [vmem:[#allocation2 + $0xe70] sm:$0xff]
        %v721 = vld [vmem:[#allocation2 + $0xe78] sm:$0xff]
        %v722 = vld [vmem:[#allocation2 + $0xe80] sm:$0xff]
        %v723 = vld [vmem:[#allocation2 + $0xe88] sm:$0xff]
        %v724 = vld [vmem:[#allocation2 + $0xe90] sm:$0xff]
        %v725 = vld [vmem:[#allocation2 + $0xe98] sm:$0xff]
        %v726 = vld [vmem:[#allocation2 + $0xea0] sm:$0xff]
        %v727 = vld [vmem:[#allocation2 + $0xea8] sm:$0xff]
        %v728 = vld [vmem:[#allocation2 + $0xeb0] sm:$0xff]
        %v729 = vld [vmem:[#allocation2 + $0xeb8] sm:$0xff]
        %v730 = vld [vmem:[#allocation2 + $0xec0] sm:$0xff]
        %v731 = vld [vmem:[#allocation2 + $0xec8] sm:$0xff]
        %v732 = vld [vmem:[#allocation2 + $0xed0] sm:$0xff]
        %v733 = vld [vmem:[#allocation2 + $0xed8] sm:$0xff]
        %v734 = vld [vmem:[#allocation2 + $0xee0] sm:$0xff]
        %v735 = vld [vmem:[#allocation2 + $0xee8] sm:$0xff]
        %v736 = vld [vmem:[#allocation2 + $0xef0] sm:$0xff]
        %v737 = vld [vmem:[#allocation2 + $0xef8] sm:$0xff]
        %v738 = vld [vmem:[#allocation2 + $0xf00] sm:$0xff]
        %v739 = vld [vmem:[#allocation2 + $0xf08] sm:$0xff]
        %v740 = vld [vmem:[#allocation2 + $0xf10] sm:$0xff]
        %v741 = vld [vmem:[#allocation2 + $0xf18] sm:$0xff]
        %v742 = vld [vmem:[#allocation2 + $0xf20] sm:$0xff]
        %v743 = vld [vmem:[#allocation2 + $0xf28] sm:$0xff]
        %v744 = vld [vmem:[#allocation2 + $0xf30] sm:$0xff]
        %v745 = vld [vmem:[#allocation2 + $0xf38] sm:$0xff]
        %v746 = vld [vmem:[#allocation2 + $0xf40] sm:$0xff]
        %v747 = vld [vmem:[#allocation2 + $0xf48] sm:$0xff]
        %v748 = vld [vmem:[#allocation2 + $0xf50] sm:$0xff]
        %v749 = vld [vmem:[#allocation2 + $0xf58] sm:$0xff]
        %v750 = vld [vmem:[#allocation2 + $0xf60] sm:$0xff]
        %v751 = vld [vmem:[#allocation2 + $0xf68] sm:$0xff]
        %v752 = vld [vmem:[#allocation2 + $0xf70] sm:$0xff]
        %v753 = vld [vmem:[#allocation2 + $0xf78] sm:$0xff]
        %v754 = vld [vmem:[#allocation2 + $0xf80] sm:$0xff]
        %v755 = vld [vmem:[#allocation2 + $0xf88] sm:$0xff]
        %v756 = vld [vmem:[#allocation2 + $0xf90] sm:$0xff]
        %v757 = vld [vmem:[#allocation2 + $0xf98] sm:$0xff]
        %v758 = vld [vmem:[#allocation2 + $0xfa0] sm:$0xff]
        %v759 = vld [vmem:[#allocation2 + $0xfa8] sm:$0xff]
        %v760 = vld [vmem:[#allocation2 + $0xfb0] sm:$0xff]
        %v761 = vld [vmem:[#allocation2 + $0xfb8] sm:$0xff]
        %v762 = vld [vmem:[#allocation2 + $0xfc0] sm:$0xff]
        %v763 = vld [vmem:[#allocation2 + $0xfc8] sm:$0xff]
        %v764 = vld [vmem:[#allocation2 + $0xfd0] sm:$0xff]
        %v765 = vld [vmem:[#allocation2 + $0xfd8] sm:$0xff]
        %v766 = vld [vmem:[#allocation2 + $0xfe0] sm:$0xff]
        %v767 = vld [vmem:[#allocation2 + $0xfe8] sm:$0xff]
        %v768 = vld [vmem:[#allocation2 + $0xff0] sm:$0xff]
        %v769 = vld [vmem:[#allocation2 + $0xff8] sm:$0xff]
        %v770 = vld [vmem:[#allocation2 + $0x1000] sm:$0xff]
        %v771 = vld [vmem:[#allocation2 + $0x1008] sm:$0xff]
        %v772 = vld [vmem:[#allocation2 + $0x1010] sm:$0xff]
        %v773 = vld [vmem:[#allocation2 + $0x1018] sm:$0xff]
        %v774 = vld [vmem:[#allocation2 + $0x1020] sm:$0xff]
        %v775 = vld [vmem:[#allocation2 + $0x1028] sm:$0xff]
        %v776 = vld [vmem:[#allocation2 + $0x1030] sm:$0xff]
        %v777 = vld [vmem:[#allocation2 + $0x1038] sm:$0xff]
        %v778 = vld [vmem:[#allocation2 + $0x1040] sm:$0xff]
        %v779 = vld [vmem:[#allocation2 + $0x1048] sm:$0xff]
        %v780 = vld [vmem:[#allocation2 + $0x1050] sm:$0xff]
        %v781 = vld [vmem:[#allocation2 + $0x1058] sm:$0xff]
        %v782 = vld [vmem:[#allocation2 + $0x1060] sm:$0xff]
        %v783 = vld [vmem:[#allocation2 + $0x1068] sm:$0xff]
        %v784 = vld [vmem:[#allocation2 + $0x1070] sm:$0xff]
        %v785 = vld [vmem:[#allocation2 + $0x1078] sm:$0xff]
        %v786 = vld [vmem:[#allocation2 + $0x1080] sm:$0xff]
        %v787 = vld [vmem:[#allocation2 + $0x1088] sm:$0xff]
        %v788 = vld [vmem:[#allocation2 + $0x1090] sm:$0xff]
        %v789 = vld [vmem:[#allocation2 + $0x1098] sm:$0xff]
        %v790 = vld [vmem:[#allocation2 + $0x10a0] sm:$0xff]
        %v791 = vld [vmem:[#allocation2 + $0x10a8] sm:$0xff]
        %v792 = vld [vmem:[#allocation2 + $0x10b0] sm:$0xff]
        %v793 = vld [vmem:[#allocation2 + $0x10b8] sm:$0xff]
        %v794 = vld [vmem:[#allocation2 + $0x10c0] sm:$0xff]
        %v795 = vld [vmem:[#allocation2 + $0x10c8] sm:$0xff]
        %v796 = vld [vmem:[#allocation2 + $0x10d0] sm:$0xff]
        %v797 = vld [vmem:[#allocation2 + $0x10d8] sm:$0xff]
        %v798 = vld [vmem:[#allocation2 + $0x10e0] sm:$0xff]
        %v799 = vld [vmem:[#allocation2 + $0x10e8] sm:$0xff]
        %v800 = vld [vmem:[#allocation2 + $0x10f0] sm:$0xff]
        %v801 = vld [vmem:[#allocation2 + $0x10f8] sm:$0xff]
        %v802 = vld [vmem:[#allocation2 + $0x1100] sm:$0xff]
        %v803 = vld [vmem:[#allocation2 + $0x1108] sm:$0xff]
        %v804 = vld [vmem:[#allocation2 + $0x1110] sm:$0xff]
        %v805 = vld [vmem:[#allocation2 + $0x1118] sm:$0xff]
        %v806 = vld [vmem:[#allocation2 + $0x1120] sm:$0xff]
        %v807 = vld [vmem:[#allocation2 + $0x1128] sm:$0xff]
        %v808 = vld [vmem:[#allocation2 + $0x1130] sm:$0xff]
        %v809 = vld [vmem:[#allocation2 + $0x1138] sm:$0xff]
        %v810 = vld [vmem:[#allocation2 + $0x1140] sm:$0xff]
        %v811 = vld [vmem:[#allocation2 + $0x1148] sm:$0xff]
        %v812 = vld [vmem:[#allocation2 + $0x1150] sm:$0xff]
        %v813 = vld [vmem:[#allocation2 + $0x1158] sm:$0xff]
        %v814 = vld [vmem:[#allocation2 + $0x1160] sm:$0xff]
        %v815 = vld [vmem:[#allocation2 + $0x1168] sm:$0xff]
        %v816 = vld [vmem:[#allocation2 + $0x1170] sm:$0xff]
        %v817 = vld [vmem:[#allocation2 + $0x1178] sm:$0xff]
        %v818 = vld [vmem:[#allocation2 + $0x1180] sm:$0xff]
        %v819 = vld [vmem:[#allocation2 + $0x1188] sm:$0xff]
        %v820 = vld [vmem:[#allocation2 + $0x1190] sm:$0xff]
        %v821 = vld [vmem:[#allocation2 + $0x1198] sm:$0xff]
        %v822 = vld [vmem:[#allocation2 + $0x11a0] sm:$0xff]
        %v823 = vld [vmem:[#allocation2 + $0x11a8] sm:$0xff]
        %v824 = vld [vmem:[#allocation2 + $0x11b0] sm:$0xff]
        %v825 = vld [vmem:[#allocation2 + $0x11b8] sm:$0xff]
        %v826 = vld [vmem:[#allocation2 + $0x11c0] sm:$0xff]
        %v827 = vld [vmem:[#allocation2 + $0x11c8] sm:$0xff]
        %v828 = vld [vmem:[#allocation2 + $0x11d0] sm:$0xff]
        %v829 = vld [vmem:[#allocation2 + $0x11d8] sm:$0xff]
        %v830 = vld [vmem:[#allocation2 + $0x11e0] sm:$0xff]
        %v831 = vld [vmem:[#allocation2 + $0x11e8] sm:$0xff]
        %v832 = vld [vmem:[#allocation2 + $0x11f0] sm:$0xff]
        %v833 = vld [vmem:[#allocation2 + $0x11f8] sm:$0xff]
        %v834 = vld [vmem:[#allocation2 + $0x1200] sm:$0xff]
        %v835 = vld [vmem:[#allocation2 + $0x1208] sm:$0xff]
        %v836 = vld [vmem:[#allocation2 + $0x1210] sm:$0xff]
        %v837 = vld [vmem:[#allocation2 + $0x1218] sm:$0xff]
        %v838 = vld [vmem:[#allocation2 + $0x1220] sm:$0xff]
        %v839 = vld [vmem:[#allocation2 + $0x1228] sm:$0xff]
        %v840 = vld [vmem:[#allocation2 + $0x1230] sm:$0xff]
        %v841 = vld [vmem:[#allocation2 + $0x1238] sm:$0xff]
        %v842 = vld [vmem:[#allocation2 + $0x1240] sm:$0xff]
        %v843 = vld [vmem:[#allocation2 + $0x1248] sm:$0xff]
        %v844 = vld [vmem:[#allocation2 + $0x1250] sm:$0xff]
        %v845 = vld [vmem:[#allocation2 + $0x1258] sm:$0xff]
        %v846 = vld [vmem:[#allocation2 + $0x1260] sm:$0xff]
        %v847 = vld [vmem:[#allocation2 + $0x1268] sm:$0xff]
        %v848 = vld [vmem:[#allocation2 + $0x1270] sm:$0xff]
        %v849 = vld [vmem:[#allocation2 + $0x1278] sm:$0xff]
        %v850 = vld [vmem:[#allocation2 + $0x1280] sm:$0xff]
        %v851 = vld [vmem:[#allocation2 + $0x1288] sm:$0xff]
        %v852 = vld [vmem:[#allocation2 + $0x1290] sm:$0xff]
        %v853 = vld [vmem:[#allocation2 + $0x1298] sm:$0xff]
        %v854 = vld [vmem:[#allocation2 + $0x12a0] sm:$0xff]
        %v855 = vld [vmem:[#allocation2 + $0x12a8] sm:$0xff]
        %v856 = vld [vmem:[#allocation2 + $0x12b0] sm:$0xff]
        %v857 = vld [vmem:[#allocation2 + $0x12b8] sm:$0xff]
        %v858 = vld [vmem:[#allocation2 + $0x12c0] sm:$0xff]
        %v859 = vld [vmem:[#allocation2 + $0x12c8] sm:$0xff]
        %v860 = vld [vmem:[#allocation2 + $0x12d0] sm:$0xff]
        %v861 = vld [vmem:[#allocation2 + $0x12d8] sm:$0xff]
        %v862 = vld [vmem:[#allocation2 + $0x12e0] sm:$0xff]
        %v863 = vld [vmem:[#allocation2 + $0x12e8] sm:$0xff]
        %v864 = vld [vmem:[#allocation2 + $0x12f0] sm:$0xff]
        %v865 = vld [vmem:[#allocation2 + $0x12f8] sm:$0xff]
        %v866 = vld [vmem:[#allocation2 + $0x1300] sm:$0xff]
        %v867 = vld [vmem:[#allocation2 + $0x1308] sm:$0xff]
        %v868 = vld [vmem:[#allocation2 + $0x1310] sm:$0xff]
        %v869 = vld [vmem:[#allocation2 + $0x1318] sm:$0xff]
        %v870 = vld [vmem:[#allocation2 + $0x1320] sm:$0xff]
        %v871 = vld [vmem:[#allocation2 + $0x1328] sm:$0xff]
        %v872 = vld [vmem:[#allocation2 + $0x1330] sm:$0xff]
        %v873 = vld [vmem:[#allocation2 + $0x1338] sm:$0xff]
        %v874 = vld [vmem:[#allocation2 + $0x1340] sm:$0xff]
        %v875 = vld [vmem:[#allocation2 + $0x1348] sm:$0xff]
        %v876 = vld [vmem:[#allocation2 + $0x1350] sm:$0xff]
        %v877 = vld [vmem:[#allocation2 + $0x1358] sm:$0xff]
        %v878 = vld [vmem:[#allocation2 + $0x1360] sm:$0xff]
        %v879 = vld [vmem:[#allocation2 + $0x1368] sm:$0xff]
        %v880 = vld [vmem:[#allocation2 + $0x1370] sm:$0xff]
        %v881 = vld [vmem:[#allocation2 + $0x1378] sm:$0xff]
        %v882 = vld [vmem:[#allocation2 + $0x1380] sm:$0xff]
        %v883 = vld [vmem:[#allocation2 + $0x1388] sm:$0xff]
        %v884 = vld [vmem:[#allocation2 + $0x1390] sm:$0xff]
        %v885 = vld [vmem:[#allocation2 + $0x1398] sm:$0xff]
        %v886 = vld [vmem:[#allocation2 + $0x13a0] sm:$0xff]
        %v887 = vld [vmem:[#allocation2 + $0x13a8] sm:$0xff]
        %v888 = vld [vmem:[#allocation2 + $0x13b0] sm:$0xff]
        %v889 = vld [vmem:[#allocation2 + $0x13b8] sm:$0xff]
        %v890 = vld [vmem:[#allocation2 + $0x13c0] sm:$0xff]
        %v891 = vld [vmem:[#allocation2 + $0x13c8] sm:$0xff]
        %v892 = vld [vmem:[#allocation2 + $0x13d0] sm:$0xff]
        %v893 = vld [vmem:[#allocation2 + $0x13d8] sm:$0xff]
        %v894 = vld [vmem:[#allocation2 + $0x13e0] sm:$0xff]
        %v895 = vld [vmem:[#allocation2 + $0x13e8] sm:$0xff]
        %v896 = vld [vmem:[#allocation2 + $0x13f0] sm:$0xff]
        %v897 = vld [vmem:[#allocation2 + $0x13f8] sm:$0xff]
        %v898 = vld [vmem:[#allocation2 + $0x1400] sm:$0xff]
        %v899 = vld [vmem:[#allocation2 + $0x1408] sm:$0xff]
        %v900 = vld [vmem:[#allocation2 + $0x1410] sm:$0xff]
        %v901 = vld [vmem:[#allocation2 + $0x1418] sm:$0xff]
        %v902 = vld [vmem:[#allocation2 + $0x1420] sm:$0xff]
        %v903 = vld [vmem:[#allocation2 + $0x1428] sm:$0xff]
        %v904 = vld [vmem:[#allocation2 + $0x1430] sm:$0xff]
        %v905 = vld [vmem:[#allocation2 + $0x1438] sm:$0xff]
        %v906 = vld [vmem:[#allocation2 + $0x1440] sm:$0xff]
        %v907 = vld [vmem:[#allocation2 + $0x1448] sm:$0xff]
        %v908 = vld [vmem:[#allocation2 + $0x1450] sm:$0xff]
        %v909 = vld [vmem:[#allocation2 + $0x1458] sm:$0xff]
        %v910 = vld [vmem:[#allocation2 + $0x1460] sm:$0xff]
        %v911 = vld [vmem:[#allocation2 + $0x1468] sm:$0xff]
        %v912 = vld [vmem:[#allocation2 + $0x1470] sm:$0xff]
        %v913 = vld [vmem:[#allocation2 + $0x1478] sm:$0xff]
        %v914 = vld [vmem:[#allocation2 + $0x1480] sm:$0xff]
        %v915 = vld [vmem:[#allocation2 + $0x1488] sm:$0xff]
        %v916 = vld [vmem:[#allocation2 + $0x1490] sm:$0xff]
        %v917 = vld [vmem:[#allocation2 + $0x1498] sm:$0xff]
        %v918 = vld [vmem:[#allocation2 + $0x14a0] sm:$0xff]
        %v919 = vld [vmem:[#allocation2 + $0x14a8] sm:$0xff]
        %v920 = vld [vmem:[#allocation2 + $0x14b0] sm:$0xff]
        %v921 = vld [vmem:[#allocation2 + $0x14b8] sm:$0xff]
        %v922 = vld [vmem:[#allocation2 + $0x14c0] sm:$0xff]
        %v923 = vld [vmem:[#allocation2 + $0x14c8] sm:$0xff]
        %v924 = vld [vmem:[#allocation2 + $0x14d0] sm:$0xff]
        %v925 = vld [vmem:[#allocation2 + $0x14d8] sm:$0xff]
        %v926 = vld [vmem:[#allocation2 + $0x14e0] sm:$0xff]
        %v927 = vld [vmem:[#allocation2 + $0x14e8] sm:$0xff]
        %v928 = vld [vmem:[#allocation2 + $0x14f0] sm:$0xff]
        %v929 = vld [vmem:[#allocation2 + $0x14f8] sm:$0xff]
        %v930 = vld [vmem:[#allocation2 + $0x1500] sm:$0xff]
        %v931 = vld [vmem:[#allocation2 + $0x1508] sm:$0xff]
        %v932 = vld [vmem:[#allocation2 + $0x1510] sm:$0xff]
        %v933 = vld [vmem:[#allocation2 + $0x1518] sm:$0xff]
        %v934 = vld [vmem:[#allocation2 + $0x1520] sm:$0xff]
        %v935 = vld [vmem:[#allocation2 + $0x1528] sm:$0xff]
        %v936 = vld [vmem:[#allocation2 + $0x1530] sm:$0xff]
        %v937 = vld [vmem:[#allocation2 + $0x1538] sm:$0xff]
        %v938 = vld [vmem:[#allocation2 + $0x1540] sm:$0xff]
        %v939 = vld [vmem:[#allocation2 + $0x1548] sm:$0xff]
        %v940 = vld [vmem:[#allocation2 + $0x1550] sm:$0xff]
        %v941 = vld [vmem:[#allocation2 + $0x1558] sm:$0xff]
        %v942 = vld [vmem:[#allocation2 + $0x1560] sm:$0xff]
        %v943 = vld [vmem:[#allocation2 + $0x1568] sm:$0xff]
        %v944 = vld [vmem:[#allocation2 + $0x1570] sm:$0xff]
        %v945 = vld [vmem:[#allocation2 + $0x1578] sm:$0xff]
        %v946 = vld [vmem:[#allocation2 + $0x1580] sm:$0xff]
        %v947 = vld [vmem:[#allocation2 + $0x1588] sm:$0xff]
        %v948 = vld [vmem:[#allocation2 + $0x1590] sm:$0xff]
        %v949 = vld [vmem:[#allocation2 + $0x1598] sm:$0xff]
        %v950 = vld [vmem:[#allocation2 + $0x15a0] sm:$0xff]
        %v951 = vld [vmem:[#allocation2 + $0x15a8] sm:$0xff]
        %v952 = vld [vmem:[#allocation2 + $0x15b0] sm:$0xff]
        %v953 = vld [vmem:[#allocation2 + $0x15b8] sm:$0xff]
        %v954 = vld [vmem:[#allocation2 + $0x15c0] sm:$0xff]
        %v955 = vld [vmem:[#allocation2 + $0x15c8] sm:$0xff]
        %v956 = vld [vmem:[#allocation2 + $0x15d0] sm:$0xff]
        %v957 = vld [vmem:[#allocation2 + $0x15d8] sm:$0xff]
        %v958 = vld [vmem:[#allocation2 + $0x15e0] sm:$0xff]
        %v959 = vld [vmem:[#allocation2 + $0x15e8] sm:$0xff]
        %v960 = vld [vmem:[#allocation2 + $0x15f0] sm:$0xff]
        %v961 = vld [vmem:[#allocation2 + $0x15f8] sm:$0xff]
        %v962 = vld [vmem:[#allocation2 + $0x1600] sm:$0xff]
        %v963 = vld [vmem:[#allocation2 + $0x1608] sm:$0xff]
        %v964 = vld [vmem:[#allocation2 + $0x1610] sm:$0xff]
        %v965 = vld [vmem:[#allocation2 + $0x1618] sm:$0xff]
        %v966 = vld [vmem:[#allocation2 + $0x1620] sm:$0xff]
        %v967 = vld [vmem:[#allocation2 + $0x1628] sm:$0xff]
        %v968 = vld [vmem:[#allocation2 + $0x1630] sm:$0xff]
        %v969 = vld [vmem:[#allocation2 + $0x1638] sm:$0xff]
        %v970 = vld [vmem:[#allocation2 + $0x1640] sm:$0xff]
        %v971 = vld [vmem:[#allocation2 + $0x1648] sm:$0xff]
        %v972 = vld [vmem:[#allocation2 + $0x1650] sm:$0xff]
        %v973 = vld [vmem:[#allocation2 + $0x1658] sm:$0xff]
        %v974 = vld [vmem:[#allocation2 + $0x1660] sm:$0xff]
        %v975 = vld [vmem:[#allocation2 + $0x1668] sm:$0xff]
        %v976 = vld [vmem:[#allocation2 + $0x1670] sm:$0xff]
        %v977 = vld [vmem:[#allocation2 + $0x1678] sm:$0xff]
        %v978 = vld [vmem:[#allocation2 + $0x1680] sm:$0xff]
        %v979 = vld [vmem:[#allocation2 + $0x1688] sm:$0xff]
        %v980 = vld [vmem:[#allocation2 + $0x1690] sm:$0xff]
        %v981 = vld [vmem:[#allocation2 + $0x1698] sm:$0xff]
        %v982 = vld [vmem:[#allocation2 + $0x16a0] sm:$0xff]
        %v983 = vld [vmem:[#allocation2 + $0x16a8] sm:$0xff]
        %v984 = vld [vmem:[#allocation2 + $0x16b0] sm:$0xff]
        %v985 = vld [vmem:[#allocation2 + $0x16b8] sm:$0xff]
        %v986 = vld [vmem:[#allocation2 + $0x16c0] sm:$0xff]
        %v987 = vld [vmem:[#allocation2 + $0x16c8] sm:$0xff]
        %v988 = vld [vmem:[#allocation2 + $0x16d0] sm:$0xff]
        %v989 = vld [vmem:[#allocation2 + $0x16d8] sm:$0xff]
        %v990 = vld [vmem:[#allocation2 + $0x16e0] sm:$0xff]
        %v991 = vld [vmem:[#allocation2 + $0x16e8] sm:$0xff]
        %v992 = vld [vmem:[#allocation2 + $0x16f0] sm:$0xff]
        %v993 = vld [vmem:[#allocation2 + $0x16f8] sm:$0xff]
        %v994 = vld [vmem:[#allocation2 + $0x1700] sm:$0xff]
        %v995 = vld [vmem:[#allocation2 + $0x1708] sm:$0xff]
        %v996 = vld [vmem:[#allocation2 + $0x1710] sm:$0xff]
        %v997 = vld [vmem:[#allocation2 + $0x1718] sm:$0xff]
        %v998 = vld [vmem:[#allocation2 + $0x1720] sm:$0xff]
        %v999 = vld [vmem:[#allocation2 + $0x1728] sm:$0xff]
        %v1000 = vld [vmem:[#allocation2 + $0x1730] sm:$0xff]
        %v1001 = vld [vmem:[#allocation2 + $0x1738] sm:$0xff]
        %v1002 = vld [vmem:[#allocation2 + $0x1740] sm:$0xff]
        %v1003 = vld [vmem:[#allocation2 + $0x1748] sm:$0xff]
        %v1004 = vld [vmem:[#allocation2 + $0x1750] sm:$0xff]
        %v1005 = vld [vmem:[#allocation2 + $0x1758] sm:$0xff]
        %v1006 = vld [vmem:[#allocation2 + $0x1760] sm:$0xff]
        %v1007 = vld [vmem:[#allocation2 + $0x1768] sm:$0xff]
        %v1008 = vld [vmem:[#allocation2 + $0x1770] sm:$0xff]
        %v1009 = vld [vmem:[#allocation2 + $0x1778] sm:$0xff]
        %v1010 = vld [vmem:[#allocation2 + $0x1780] sm:$0xff]
        %v1011 = vld [vmem:[#allocation2 + $0x1788] sm:$0xff]
        %v1012 = vld [vmem:[#allocation2 + $0x1790] sm:$0xff]
        %v1013 = vld [vmem:[#allocation2 + $0x1798] sm:$0xff]
        %v1014 = vld [vmem:[#allocation2 + $0x17a0] sm:$0xff]
        %v1015 = vld [vmem:[#allocation2 + $0x17a8] sm:$0xff]
        %v1016 = vld [vmem:[#allocation2 + $0x17b0] sm:$0xff]
        %v1017 = vld [vmem:[#allocation2 + $0x17b8] sm:$0xff]
        %v1018 = vld [vmem:[#allocation2 + $0x17c0] sm:$0xff]
        %v1019 = vld [vmem:[#allocation2 + $0x17c8] sm:$0xff]
        %v1020 = vld [vmem:[#allocation2 + $0x17d0] sm:$0xff]
        %v1021 = vld [vmem:[#allocation2 + $0x17d8] sm:$0xff]
        %v1022 = vld [vmem:[#allocation2 + $0x17e0] sm:$0xff]
        %v1023 = vld [vmem:[#allocation2 + $0x17e8] sm:$0xff]
        %v1024 = vld [vmem:[#allocation2 + $0x17f0] sm:$0xff]
        %v1025 = vld [vmem:[#allocation2 + $0x17f8] sm:$0xff]
        %v1026 = vld [vmem:[#allocation2 + $0x1800] sm:$0xff]
        %v1027 = vld [vmem:[#allocation2 + $0x1808] sm:$0xff]
        %v1028 = vld [vmem:[#allocation2 + $0x1810] sm:$0xff]
        %v1029 = vld [vmem:[#allocation2 + $0x1818] sm:$0xff]
        %v1030 = vld [vmem:[#allocation2 + $0x1820] sm:$0xff]
        %v1031 = vld [vmem:[#allocation2 + $0x1828] sm:$0xff]
        %v1032 = vld [vmem:[#allocation2 + $0x1830] sm:$0xff]
        %v1033 = vld [vmem:[#allocation2 + $0x1838] sm:$0xff]
        %v1034 = vld [vmem:[#allocation2 + $0x1840] sm:$0xff]
        %v1035 = vld [vmem:[#allocation2 + $0x1848] sm:$0xff]
        %v1036 = vld [vmem:[#allocation2 + $0x1850] sm:$0xff]
        %v1037 = vld [vmem:[#allocation2 + $0x1858] sm:$0xff]
        %v1038 = vld [vmem:[#allocation2 + $0x1860] sm:$0xff]
        %v1039 = vld [vmem:[#allocation2 + $0x1868] sm:$0xff]
        %v1040 = vld [vmem:[#allocation2 + $0x1870] sm:$0xff]
        %v1041 = vld [vmem:[#allocation2 + $0x1878] sm:$0xff]
        %v1042 = vld [vmem:[#allocation2 + $0x1880] sm:$0xff]
        %v1043 = vld [vmem:[#allocation2 + $0x1888] sm:$0xff]
        %v1044 = vld [vmem:[#allocation2 + $0x1890] sm:$0xff]
        %v1045 = vld [vmem:[#allocation2 + $0x1898] sm:$0xff]
        %v1046 = vld [vmem:[#allocation2 + $0x18a0] sm:$0xff]
        %v1047 = vld [vmem:[#allocation2 + $0x18a8] sm:$0xff]
        %v1048 = vld [vmem:[#allocation2 + $0x18b0] sm:$0xff]
        %v1049 = vld [vmem:[#allocation2 + $0x18b8] sm:$0xff]
        %v1050 = vld [vmem:[#allocation2 + $0x18c0] sm:$0xff]
        %v1051 = vld [vmem:[#allocation2 + $0x18c8] sm:$0xff]
        %v1052 = vld [vmem:[#allocation2 + $0x18d0] sm:$0xff]
        %v1053 = vld [vmem:[#allocation2 + $0x18d8] sm:$0xff]
        %v1054 = vld [vmem:[#allocation2 + $0x18e0] sm:$0xff]
        %v1055 = vld [vmem:[#allocation2 + $0x18e8] sm:$0xff]
        %v1056 = vld [vmem:[#allocation2 + $0x18f0] sm:$0xff]
        %v1057 = vld [vmem:[#allocation2 + $0x18f8] sm:$0xff]
        %v1058 = vld [vmem:[#allocation2 + $0x1900] sm:$0xff]
        %v1059 = vld [vmem:[#allocation2 + $0x1908] sm:$0xff]
        %v1060 = vld [vmem:[#allocation2 + $0x1910] sm:$0xff]
        %v1061 = vld [vmem:[#allocation2 + $0x1918] sm:$0xff]
        %v1062 = vld [vmem:[#allocation2 + $0x1920] sm:$0xff]
        %v1063 = vld [vmem:[#allocation2 + $0x1928] sm:$0xff]
        %v1064 = vld [vmem:[#allocation2 + $0x1930] sm:$0xff]
        %v1065 = vld [vmem:[#allocation2 + $0x1938] sm:$0xff]
        %v1066 = vld [vmem:[#allocation2 + $0x1940] sm:$0xff]
        %v1067 = vld [vmem:[#allocation2 + $0x1948] sm:$0xff]
        %v1068 = vld [vmem:[#allocation2 + $0x1950] sm:$0xff]
        %v1069 = vld [vmem:[#allocation2 + $0x1958] sm:$0xff]
        %v1070 = vld [vmem:[#allocation2 + $0x1960] sm:$0xff]
        %v1071 = vld [vmem:[#allocation2 + $0x1968] sm:$0xff]
        %v1072 = vld [vmem:[#allocation2 + $0x1970] sm:$0xff]
        %v1073 = vld [vmem:[#allocation2 + $0x1978] sm:$0xff]
        %v1074 = vld [vmem:[#allocation2 + $0x1980] sm:$0xff]
        %v1075 = vld [vmem:[#allocation2 + $0x1988] sm:$0xff]
        %v1076 = vld [vmem:[#allocation2 + $0x1990] sm:$0xff]
        %v1077 = vld [vmem:[#allocation2 + $0x1998] sm:$0xff]
        %v1078 = vld [vmem:[#allocation2 + $0x19a0] sm:$0xff]
        %v1079 = vld [vmem:[#allocation2 + $0x19a8] sm:$0xff]
        %v1080 = vld [vmem:[#allocation2 + $0x19b0] sm:$0xff]
        %v1081 = vld [vmem:[#allocation2 + $0x19b8] sm:$0xff]
        %v1082 = vld [vmem:[#allocation2 + $0x19c0] sm:$0xff]
        %v1083 = vld [vmem:[#allocation2 + $0x19c8] sm:$0xff]
        %v1084 = vld [vmem:[#allocation2 + $0x19d0] sm:$0xff]
        %v1085 = vld [vmem:[#allocation2 + $0x19d8] sm:$0xff]
        %v1086 = vld [vmem:[#allocation2 + $0x19e0] sm:$0xff]
        %v1087 = vld [vmem:[#allocation2 + $0x19e8] sm:$0xff]
        %v1088 = vld [vmem:[#allocation2 + $0x19f0] sm:$0xff]
        %v1089 = vld [vmem:[#allocation2 + $0x19f8] sm:$0xff]
        %v1090 = vld [vmem:[#allocation2 + $0x1a00] sm:$0xff]
        %v1091 = vld [vmem:[#allocation2 + $0x1a08] sm:$0xff]
        %v1092 = vld [vmem:[#allocation2 + $0x1a10] sm:$0xff]
        %v1093 = vld [vmem:[#allocation2 + $0x1a18] sm:$0xff]
        %v1094 = vld [vmem:[#allocation2 + $0x1a20] sm:$0xff]
        %v1095 = vld [vmem:[#allocation2 + $0x1a28] sm:$0xff]
        %v1096 = vld [vmem:[#allocation2 + $0x1a30] sm:$0xff]
        %v1097 = vld [vmem:[#allocation2 + $0x1a38] sm:$0xff]
        %v1098 = vld [vmem:[#allocation2 + $0x1a40] sm:$0xff]
        %v1099 = vld [vmem:[#allocation2 + $0x1a48] sm:$0xff]
        %v1100 = vld [vmem:[#allocation2 + $0x1a50] sm:$0xff]
        %v1101 = vld [vmem:[#allocation2 + $0x1a58] sm:$0xff]
        %v1102 = vld [vmem:[#allocation2 + $0x1a60] sm:$0xff]
        %v1103 = vld [vmem:[#allocation2 + $0x1a68] sm:$0xff]
        %v1104 = vld [vmem:[#allocation2 + $0x1a70] sm:$0xff]
        %v1105 = vld [vmem:[#allocation2 + $0x1a78] sm:$0xff]
        %v1106 = vld [vmem:[#allocation2 + $0x1a80] sm:$0xff]
        %v1107 = vld [vmem:[#allocation2 + $0x1a88] sm:$0xff]
        %v1108 = vld [vmem:[#allocation2 + $0x1a90] sm:$0xff]
        %v1109 = vld [vmem:[#allocation2 + $0x1a98] sm:$0xff]
        %v1110 = vld [vmem:[#allocation2 + $0x1aa0] sm:$0xff]
        %v1111 = vld [vmem:[#allocation2 + $0x1aa8] sm:$0xff]
        %v1112 = vld [vmem:[#allocation2 + $0x1ab0] sm:$0xff]
        %v1113 = vld [vmem:[#allocation2 + $0x1ab8] sm:$0xff]
        %v1114 = vld [vmem:[#allocation2 + $0x1ac0] sm:$0xff]
        %v1115 = vld [vmem:[#allocation2 + $0x1ac8] sm:$0xff]
        %v1116 = vld [vmem:[#allocation2 + $0x1ad0] sm:$0xff]
        %v1117 = vld [vmem:[#allocation2 + $0x1ad8] sm:$0xff]
        %v1118 = vld [vmem:[#allocation2 + $0x1ae0] sm:$0xff]
        %v1119 = vld [vmem:[#allocation2 + $0x1ae8] sm:$0xff]
        %v1120 = vld [vmem:[#allocation2 + $0x1af0] sm:$0xff]
        %v1121 = vld [vmem:[#allocation2 + $0x1af8] sm:$0xff]
        %v1122 = vld [vmem:[#allocation2 + $0x1b00] sm:$0xff]
        %v1123 = vld [vmem:[#allocation2 + $0x1b08] sm:$0xff]
        %v1124 = vld [vmem:[#allocation2 + $0x1b10] sm:$0xff]
        %v1125 = vld [vmem:[#allocation2 + $0x1b18] sm:$0xff]
        %v1126 = vld [vmem:[#allocation2 + $0x1b20] sm:$0xff]
        %v1127 = vld [vmem:[#allocation2 + $0x1b28] sm:$0xff]
        %v1128 = vld [vmem:[#allocation2 + $0x1b30] sm:$0xff]
        %v1129 = vld [vmem:[#allocation2 + $0x1b38] sm:$0xff]
        %v1130 = vld [vmem:[#allocation2 + $0x1b40] sm:$0xff]
        %v1131 = vld [vmem:[#allocation2 + $0x1b48] sm:$0xff]
        %v1132 = vld [vmem:[#allocation2 + $0x1b50] sm:$0xff]
        %v1133 = vld [vmem:[#allocation2 + $0x1b58] sm:$0xff]
        %v1134 = vld [vmem:[#allocation2 + $0x1b60] sm:$0xff]
        %v1135 = vld [vmem:[#allocation2 + $0x1b68] sm:$0xff]
        %v1136 = vld [vmem:[#allocation2 + $0x1b70] sm:$0xff]
        %v1137 = vld [vmem:[#allocation2 + $0x1b78] sm:$0xff]
        %v1138 = vld [vmem:[#allocation2 + $0x1b80] sm:$0xff]
        %v1139 = vld [vmem:[#allocation2 + $0x1b88] sm:$0xff]
        %v1140 = vld [vmem:[#allocation2 + $0x1b90] sm:$0xff]
        %v1141 = vld [vmem:[#allocation2 + $0x1b98] sm:$0xff]
        %v1142 = vld [vmem:[#allocation2 + $0x1ba0] sm:$0xff]
        %v1143 = vld [vmem:[#allocation2 + $0x1ba8] sm:$0xff]
        %v1144 = vld [vmem:[#allocation2 + $0x1bb0] sm:$0xff]
        %v1145 = vld [vmem:[#allocation2 + $0x1bb8] sm:$0xff]
        %v1146 = vld [vmem:[#allocation2 + $0x1bc0] sm:$0xff]
        %v1147 = vld [vmem:[#allocation2 + $0x1bc8] sm:$0xff]
        %v1148 = vld [vmem:[#allocation2 + $0x1bd0] sm:$0xff]
        %v1149 = vld [vmem:[#allocation2 + $0x1bd8] sm:$0xff]
        %v1150 = vld [vmem:[#allocation2 + $0x1be0] sm:$0xff]
        %v1151 = vld [vmem:[#allocation2 + $0x1be8] sm:$0xff]
        %v1152 = vld [vmem:[#allocation2 + $0x1bf0] sm:$0xff]
        %v1153 = vld [vmem:[#allocation2 + $0x1bf8] sm:$0xff]
        %v1154 = vld [vmem:[#allocation2 + $0x1c00] sm:$0xff]
        %v1155 = vld [vmem:[#allocation2 + $0x1c08] sm:$0xff]
        %v1156 = vld [vmem:[#allocation2 + $0x1c10] sm:$0xff]
        %v1157 = vld [vmem:[#allocation2 + $0x1c18] sm:$0xff]
        %v1158 = vld [vmem:[#allocation2 + $0x1c20] sm:$0xff]
        %v1159 = vld [vmem:[#allocation2 + $0x1c28] sm:$0xff]
        %v1160 = vld [vmem:[#allocation2 + $0x1c30] sm:$0xff]
        %v1161 = vld [vmem:[#allocation2 + $0x1c38] sm:$0xff]
        %v1162 = vld [vmem:[#allocation2 + $0x1c40] sm:$0xff]
        %v1163 = vld [vmem:[#allocation2 + $0x1c48] sm:$0xff]
        %v1164 = vld [vmem:[#allocation2 + $0x1c50] sm:$0xff]
        %v1165 = vld [vmem:[#allocation2 + $0x1c58] sm:$0xff]
        %v1166 = vld [vmem:[#allocation2 + $0x1c60] sm:$0xff]
        %v1167 = vld [vmem:[#allocation2 + $0x1c68] sm:$0xff]
        %v1168 = vld [vmem:[#allocation2 + $0x1c70] sm:$0xff]
        %v1169 = vld [vmem:[#allocation2 + $0x1c78] sm:$0xff]
        %v1170 = vld [vmem:[#allocation2 + $0x1c80] sm:$0xff]
        %v1171 = vld [vmem:[#allocation2 + $0x1c88] sm:$0xff]
        %v1172 = vld [vmem:[#allocation2 + $0x1c90] sm:$0xff]
        %v1173 = vld [vmem:[#allocation2 + $0x1c98] sm:$0xff]
        %v1174 = vld [vmem:[#allocation2 + $0x1ca0] sm:$0xff]
        %v1175 = vld [vmem:[#allocation2 + $0x1ca8] sm:$0xff]
        %v1176 = vld [vmem:[#allocation2 + $0x1cb0] sm:$0xff]
        %v1177 = vld [vmem:[#allocation2 + $0x1cb8] sm:$0xff]
        %v1178 = vld [vmem:[#allocation2 + $0x1cc0] sm:$0xff]
        %v1179 = vld [vmem:[#allocation2 + $0x1cc8] sm:$0xff]
        %v1180 = vld [vmem:[#allocation2 + $0x1cd0] sm:$0xff]
        %v1181 = vld [vmem:[#allocation2 + $0x1cd8] sm:$0xff]
        %v1182 = vld [vmem:[#allocation2 + $0x1ce0] sm:$0xff]
        %v1183 = vld [vmem:[#allocation2 + $0x1ce8] sm:$0xff]
        %v1184 = vld [vmem:[#allocation2 + $0x1cf0] sm:$0xff]
        %v1185 = vld [vmem:[#allocation2 + $0x1cf8] sm:$0xff]
        %v1186 = vld [vmem:[#allocation2 + $0x1d00] sm:$0xff]
        %v1187 = vld [vmem:[#allocation2 + $0x1d08] sm:$0xff]
        %v1188 = vld [vmem:[#allocation2 + $0x1d10] sm:$0xff]
        %v1189 = vld [vmem:[#allocation2 + $0x1d18] sm:$0xff]
        %v1190 = vld [vmem:[#allocation2 + $0x1d20] sm:$0xff]
        %v1191 = vld [vmem:[#allocation2 + $0x1d28] sm:$0xff]
        %v1192 = vld [vmem:[#allocation2 + $0x1d30] sm:$0xff]
        %v1193 = vld [vmem:[#allocation2 + $0x1d38] sm:$0xff]
        %v1194 = vld [vmem:[#allocation2 + $0x1d40] sm:$0xff]
        %v1195 = vld [vmem:[#allocation2 + $0x1d48] sm:$0xff]
        %v1196 = vld [vmem:[#allocation2 + $0x1d50] sm:$0xff]
        %v1197 = vld [vmem:[#allocation2 + $0x1d58] sm:$0xff]
        %v1198 = vld [vmem:[#allocation2 + $0x1d60] sm:$0xff]
        %v1199 = vld [vmem:[#allocation2 + $0x1d68] sm:$0xff]
        %v1200 = vld [vmem:[#allocation2 + $0x1d70] sm:$0xff]
        %v1201 = vld [vmem:[#allocation2 + $0x1d78] sm:$0xff]
        %v1202 = vld [vmem:[#allocation2 + $0x1d80] sm:$0xff]
        %v1203 = vld [vmem:[#allocation2 + $0x1d88] sm:$0xff]
        %v1204 = vld [vmem:[#allocation2 + $0x1d90] sm:$0xff]
        %v1205 = vld [vmem:[#allocation2 + $0x1d98] sm:$0xff]
        %v1206 = vld [vmem:[#allocation2 + $0x1da0] sm:$0xff]
        %v1207 = vld [vmem:[#allocation2 + $0x1da8] sm:$0xff]
        %v1208 = vld [vmem:[#allocation2 + $0x1db0] sm:$0xff]
        %v1209 = vld [vmem:[#allocation2 + $0x1db8] sm:$0xff]
        %v1210 = vld [vmem:[#allocation2 + $0x1dc0] sm:$0xff]
        %v1211 = vld [vmem:[#allocation2 + $0x1dc8] sm:$0xff]
        %v1212 = vld [vmem:[#allocation2 + $0x1dd0] sm:$0xff]
        %v1213 = vld [vmem:[#allocation2 + $0x1dd8] sm:$0xff]
        %v1214 = vld [vmem:[#allocation2 + $0x1de0] sm:$0xff]
        %v1215 = vld [vmem:[#allocation2 + $0x1de8] sm:$0xff]
        %v1216 = vld [vmem:[#allocation2 + $0x1df0] sm:$0xff]
        %v1217 = vld [vmem:[#allocation2 + $0x1df8] sm:$0xff]
        %v1218 = vld [vmem:[#allocation2 + $0x1e00] sm:$0xff]
        %v1219 = vld [vmem:[#allocation2 + $0x1e08] sm:$0xff]
        %v1220 = vld [vmem:[#allocation2 + $0x1e10] sm:$0xff]
        %v1221 = vld [vmem:[#allocation2 + $0x1e18] sm:$0xff]
        %v1222 = vld [vmem:[#allocation2 + $0x1e20] sm:$0xff]
        %v1223 = vld [vmem:[#allocation2 + $0x1e28] sm:$0xff]
        %v1224 = vld [vmem:[#allocation2 + $0x1e30] sm:$0xff]
        %v1225 = vld [vmem:[#allocation2 + $0x1e38] sm:$0xff]
        %v1226 = vld [vmem:[#allocation2 + $0x1e40] sm:$0xff]
        %v1227 = vld [vmem:[#allocation2 + $0x1e48] sm:$0xff]
        %v1228 = vld [vmem:[#allocation2 + $0x1e50] sm:$0xff]
        %v1229 = vld [vmem:[#allocation2 + $0x1e58] sm:$0xff]
        %v1230 = vld [vmem:[#allocation2 + $0x1e60] sm:$0xff]
        %v1231 = vld [vmem:[#allocation2 + $0x1e68] sm:$0xff]
        %v1232 = vld [vmem:[#allocation2 + $0x1e70] sm:$0xff]
        %v1233 = vld [vmem:[#allocation2 + $0x1e78] sm:$0xff]
        %v1234 = vld [vmem:[#allocation2 + $0x1e80] sm:$0xff]
        %v1235 = vld [vmem:[#allocation2 + $0x1e88] sm:$0xff]
        %v1236 = vld [vmem:[#allocation2 + $0x1e90] sm:$0xff]
        %v1237 = vld [vmem:[#allocation2 + $0x1e98] sm:$0xff]
        %v1238 = vld [vmem:[#allocation2 + $0x1ea0] sm:$0xff]
        %v1239 = vld [vmem:[#allocation2 + $0x1ea8] sm:$0xff]
        %v1240 = vld [vmem:[#allocation2 + $0x1eb0] sm:$0xff]
        %v1241 = vld [vmem:[#allocation2 + $0x1eb8] sm:$0xff]
        %v1242 = vld [vmem:[#allocation2 + $0x1ec0] sm:$0xff]
        %v1243 = vld [vmem:[#allocation2 + $0x1ec8] sm:$0xff]
        %v1244 = vld [vmem:[#allocation2 + $0x1ed0] sm:$0xff]
        %v1245 = vld [vmem:[#allocation2 + $0x1ed8] sm:$0xff]
        %v1246 = vld [vmem:[#allocation2 + $0x1ee0] sm:$0xff]
        %v1247 = vld [vmem:[#allocation2 + $0x1ee8] sm:$0xff]
        %v1248 = vld [vmem:[#allocation2 + $0x1ef0] sm:$0xff]
        %v1249 = vld [vmem:[#allocation2 + $0x1ef8] sm:$0xff]
        %v1250 = vld [vmem:[#allocation2 + $0x1f00] sm:$0xff]
        %v1251 = vld [vmem:[#allocation2 + $0x1f08] sm:$0xff]
        %v1252 = vld [vmem:[#allocation2 + $0x1f10] sm:$0xff]
        %v1253 = vld [vmem:[#allocation2 + $0x1f18] sm:$0xff]
        %v1254 = vld [vmem:[#allocation2 + $0x1f20] sm:$0xff]
        %v1255 = vld [vmem:[#allocation2 + $0x1f28] sm:$0xff]
        %v1256 = vld [vmem:[#allocation2 + $0x1f30] sm:$0xff]
        %v1257 = vld [vmem:[#allocation2 + $0x1f38] sm:$0xff]
        %v1258 = vld [vmem:[#allocation2 + $0x1f40] sm:$0xff]
        %v1259 = vld [vmem:[#allocation2 + $0x1f48] sm:$0xff]
        %v1260 = vld [vmem:[#allocation2 + $0x1f50] sm:$0xff]
        %v1261 = vld [vmem:[#allocation2 + $0x1f58] sm:$0xff]
        %v1262 = vld [vmem:[#allocation2 + $0x1f60] sm:$0xff]
        %v1263 = vld [vmem:[#allocation2 + $0x1f68] sm:$0xff]
        %v1264 = vld [vmem:[#allocation2 + $0x1f70] sm:$0xff]
        %v1265 = vld [vmem:[#allocation2 + $0x1f78] sm:$0xff]
        %v1266 = vld [vmem:[#allocation2 + $0x1f80] sm:$0xff]
        %v1267 = vld [vmem:[#allocation2 + $0x1f88] sm:$0xff]
        %v1268 = vld [vmem:[#allocation2 + $0x1f90] sm:$0xff]
        %v1269 = vld [vmem:[#allocation2 + $0x1f98] sm:$0xff]
        %v1270 = vld [vmem:[#allocation2 + $0x1fa0] sm:$0xff]
        %v1271 = vld [vmem:[#allocation2 + $0x1fa8] sm:$0xff]
        %v1272 = vld [vmem:[#allocation2 + $0x1fb0] sm:$0xff]
        %v1273 = vld [vmem:[#allocation2 + $0x1fb8] sm:$0xff]
        %v1274 = vld [vmem:[#allocation2 + $0x1fc0] sm:$0xff]
        %v1275 = vld [vmem:[#allocation2 + $0x1fc8] sm:$0xff]
        %v1276 = vld [vmem:[#allocation2 + $0x1fd0] sm:$0xff]
        %v1277 = vld [vmem:[#allocation2 + $0x1fd8] sm:$0xff]
        %v1278 = vld [vmem:[#allocation2 + $0x1fe0] sm:$0xff]
        %v1279 = vld [vmem:[#allocation2 + $0x1fe8] sm:$0xff]
        %v1280 = vld [vmem:[#allocation2 + $0x1ff0] sm:$0xff]
        %v1281 = vld [vmem:[#allocation2 + $0x1ff8] sm:$0xff]
        %v1282 = vld [vmem:[#allocation2 + $0x2000] sm:$0xff]
        %v1283 = vld [vmem:[#allocation2 + $0x2008] sm:$0xff]
        %v1284 = vld [vmem:[#allocation2 + $0x2010] sm:$0xff]
        %v1285 = vld [vmem:[#allocation2 + $0x2018] sm:$0xff]
        %v1286 = vld [vmem:[#allocation2 + $0x2020] sm:$0xff]
        %v1287 = vld [vmem:[#allocation2 + $0x2028] sm:$0xff]
        %v1288 = vld [vmem:[#allocation2 + $0x2030] sm:$0xff]
        %v1289 = vld [vmem:[#allocation2 + $0x2038] sm:$0xff]
        %v1290 = vld [vmem:[#allocation2 + $0x2040] sm:$0xff]
        %v1291 = vld [vmem:[#allocation2 + $0x2048] sm:$0xff]
        %v1292 = vld [vmem:[#allocation2 + $0x2050] sm:$0xff]
        %v1293 = vld [vmem:[#allocation2 + $0x2058] sm:$0xff]
        %v1294 = vld [vmem:[#allocation2 + $0x2060] sm:$0xff]
        %v1295 = vld [vmem:[#allocation2 + $0x2068] sm:$0xff]
        %v1296 = vld [vmem:[#allocation2 + $0x2070] sm:$0xff]
        %v1297 = vld [vmem:[#allocation2 + $0x2078] sm:$0xff]
        %v1298 = vld [vmem:[#allocation2 + $0x2080] sm:$0xff]
        %v1299 = vld [vmem:[#allocation2 + $0x2088] sm:$0xff]
        %v1300 = vld [vmem:[#allocation2 + $0x2090] sm:$0xff]
        %v1301 = vld [vmem:[#allocation2 + $0x2098] sm:$0xff]
        %v1302 = vld [vmem:[#allocation2 + $0x20a0] sm:$0xff]
        %v1303 = vld [vmem:[#allocation2 + $0x20a8] sm:$0xff]
        %v1304 = vld [vmem:[#allocation2 + $0x20b0] sm:$0xff]
        %v1305 = vld [vmem:[#allocation2 + $0x20b8] sm:$0xff]
        %v1306 = vld [vmem:[#allocation2 + $0x20c0] sm:$0xff]
        %v1307 = vld [vmem:[#allocation2 + $0x20c8] sm:$0xff]
        %v1308 = vld [vmem:[#allocation2 + $0x20d0] sm:$0xff]
        %v1309 = vld [vmem:[#allocation2 + $0x20d8] sm:$0xff]
        %v1310 = vld [vmem:[#allocation2 + $0x20e0] sm:$0xff]
        %v1311 = vld [vmem:[#allocation2 + $0x20e8] sm:$0xff]
        %v1312 = vld [vmem:[#allocation2 + $0x20f0] sm:$0xff]
        %v1313 = vld [vmem:[#allocation2 + $0x20f8] sm:$0xff]
        %v1314 = vld [vmem:[#allocation2 + $0x2100] sm:$0xff]
        %v1315 = vld [vmem:[#allocation2 + $0x2108] sm:$0xff]
        %v1316 = vld [vmem:[#allocation2 + $0x2110] sm:$0xff]
        %v1317 = vld [vmem:[#allocation2 + $0x2118] sm:$0xff]
        %v1318 = vld [vmem:[#allocation2 + $0x2120] sm:$0xff]
        %v1319 = vld [vmem:[#allocation2 + $0x2128] sm:$0xff]
        %v1320 = vld [vmem:[#allocation2 + $0x2130] sm:$0xff]
        %v1321 = vld [vmem:[#allocation2 + $0x2138] sm:$0xff]
        %v1322 = vld [vmem:[#allocation2 + $0x2140] sm:$0xff]
        %v1323 = vld [vmem:[#allocation2 + $0x2148] sm:$0xff]
        %v1324 = vld [vmem:[#allocation2 + $0x2150] sm:$0xff]
        %v1325 = vld [vmem:[#allocation2 + $0x2158] sm:$0xff]
        %v1326 = vld [vmem:[#allocation2 + $0x2160] sm:$0xff]
        %v1327 = vld [vmem:[#allocation2 + $0x2168] sm:$0xff]
        %v1328 = vld [vmem:[#allocation2 + $0x2170] sm:$0xff]
        %v1329 = vld [vmem:[#allocation2 + $0x2178] sm:$0xff]
        %v1330 = vld [vmem:[#allocation2 + $0x2180] sm:$0xff]
        %v1331 = vld [vmem:[#allocation2 + $0x2188] sm:$0xff]
        %v1332 = vld [vmem:[#allocation2 + $0x2190] sm:$0xff]
        %v1333 = vld [vmem:[#allocation2 + $0x2198] sm:$0xff]
        %v1334 = vld [vmem:[#allocation2 + $0x21a0] sm:$0xff]
        %v1335 = vld [vmem:[#allocation2 + $0x21a8] sm:$0xff]
        %v1336 = vld [vmem:[#allocation2 + $0x21b0] sm:$0xff]
        %v1337 = vld [vmem:[#allocation2 + $0x21b8] sm:$0xff]
        %v1338 = vld [vmem:[#allocation2 + $0x21c0] sm:$0xff]
        %v1339 = vld [vmem:[#allocation2 + $0x21c8] sm:$0xff]
        %v1340 = vld [vmem:[#allocation2 + $0x21d0] sm:$0xff]
        %v1341 = vld [vmem:[#allocation2 + $0x21d8] sm:$0xff]
        %v1342 = vld [vmem:[#allocation2 + $0x21e0] sm:$0xff]
        %v1343 = vld [vmem:[#allocation2 + $0x21e8] sm:$0xff]
        %v1344 = vld [vmem:[#allocation2 + $0x21f0] sm:$0xff]
        %v1345 = vld [vmem:[#allocation2 + $0x21f8] sm:$0xff]
        %v1346 = vld [vmem:[#allocation2 + $0x2200] sm:$0xff]
        %v1347 = vld [vmem:[#allocation2 + $0x2208] sm:$0xff]
        %v1348 = vld [vmem:[#allocation2 + $0x2210] sm:$0xff]
        %v1349 = vld [vmem:[#allocation2 + $0x2218] sm:$0xff]
        %v1350 = vld [vmem:[#allocation2 + $0x2220] sm:$0xff]
        %v1351 = vld [vmem:[#allocation2 + $0x2228] sm:$0xff]
        %v1352 = vld [vmem:[#allocation2 + $0x2230] sm:$0xff]
        %v1353 = vld [vmem:[#allocation2 + $0x2238] sm:$0xff]
        %v1354 = vld [vmem:[#allocation2 + $0x2240] sm:$0xff]
        %v1355 = vld [vmem:[#allocation2 + $0x2248] sm:$0xff]
        %v1356 = vld [vmem:[#allocation2 + $0x2250] sm:$0xff]
        %v1357 = vld [vmem:[#allocation2 + $0x2258] sm:$0xff]
        %v1358 = vld [vmem:[#allocation2 + $0x2260] sm:$0xff]
        %v1359 = vld [vmem:[#allocation2 + $0x2268] sm:$0xff]
        %v1360 = vld [vmem:[#allocation2 + $0x2270] sm:$0xff]
        %v1361 = vld [vmem:[#allocation2 + $0x2278] sm:$0xff]
        %v1362 = vld [vmem:[#allocation2 + $0x2280] sm:$0xff]
        %v1363 = vld [vmem:[#allocation2 + $0x2288] sm:$0xff]
        %v1364 = vld [vmem:[#allocation2 + $0x2290] sm:$0xff]
        %v1365 = vld [vmem:[#allocation2 + $0x2298] sm:$0xff]
        %v1366 = vld [vmem:[#allocation2 + $0x22a0] sm:$0xff]
        %v1367 = vld [vmem:[#allocation2 + $0x22a8] sm:$0xff]
        %v1368 = vld [vmem:[#allocation2 + $0x22b0] sm:$0xff]
        %v1369 = vld [vmem:[#allocation2 + $0x22b8] sm:$0xff]
        %v1370 = vld [vmem:[#allocation2 + $0x22c0] sm:$0xff]
        %v1371 = vld [vmem:[#allocation2 + $0x22c8] sm:$0xff]
        %v1372 = vld [vmem:[#allocation2 + $0x22d0] sm:$0xff]
        %v1373 = vld [vmem:[#allocation2 + $0x22d8] sm:$0xff]
        %v1374 = vld [vmem:[#allocation2 + $0x22e0] sm:$0xff]
        %v1375 = vld [vmem:[#allocation2 + $0x22e8] sm:$0xff]
        %v1376 = vld [vmem:[#allocation2 + $0x22f0] sm:$0xff]
        %v1377 = vld [vmem:[#allocation2 + $0x22f8] sm:$0xff]
        %v1378 = vld [vmem:[#allocation2 + $0x2300] sm:$0xff]
        %v1379 = vld [vmem:[#allocation2 + $0x2308] sm:$0xff]
        %v1380 = vld [vmem:[#allocation2 + $0x2310] sm:$0xff]
        %v1381 = vld [vmem:[#allocation2 + $0x2318] sm:$0xff]
        %v1382 = vld [vmem:[#allocation2 + $0x2320] sm:$0xff]
        %v1383 = vld [vmem:[#allocation2 + $0x2328] sm:$0xff]
        %v1384 = vld [vmem:[#allocation2 + $0x2330] sm:$0xff]
        %v1385 = vld [vmem:[#allocation2 + $0x2338] sm:$0xff]
        %v1386 = vld [vmem:[#allocation2 + $0x2340] sm:$0xff]
        %v1387 = vld [vmem:[#allocation2 + $0x2348] sm:$0xff]
        %v1388 = vld [vmem:[#allocation2 + $0x2350] sm:$0xff]
        %v1389 = vld [vmem:[#allocation2 + $0x2358] sm:$0xff]
        %v1390 = vld [vmem:[#allocation2 + $0x2360] sm:$0xff]
        %v1391 = vld [vmem:[#allocation2 + $0x2368] sm:$0xff]
        %v1392 = vld [vmem:[#allocation2 + $0x2370] sm:$0xff]
        %v1393 = vld [vmem:[#allocation2 + $0x2378] sm:$0xff]
        %v1394 = vld [vmem:[#allocation2 + $0x2380] sm:$0xff]
        %v1395 = vld [vmem:[#allocation2 + $0x2388] sm:$0xff]
        %v1396 = vld [vmem:[#allocation2 + $0x2390] sm:$0xff]
        %v1397 = vld [vmem:[#allocation2 + $0x2398] sm:$0xff]
        %v1398 = vld [vmem:[#allocation2 + $0x23a0] sm:$0xff]
        %v1399 = vld [vmem:[#allocation2 + $0x23a8] sm:$0xff]
        %v1400 = vld [vmem:[#allocation2 + $0x23b0] sm:$0xff]
        %v1401 = vld [vmem:[#allocation2 + $0x23b8] sm:$0xff]
        %v1402 = vld [vmem:[#allocation2 + $0x23c0] sm:$0xff]
        %v1403 = vld [vmem:[#allocation2 + $0x23c8] sm:$0xff]
        %v1404 = vld [vmem:[#allocation2 + $0x23d0] sm:$0xff]
        %v1405 = vld [vmem:[#allocation2 + $0x23d8] sm:$0xff]
        %v1406 = vld [vmem:[#allocation2 + $0x23e0] sm:$0xff]
        %v1407 = vld [vmem:[#allocation2 + $0x23e8] sm:$0xff]
        %v1408 = vld [vmem:[#allocation2 + $0x23f0] sm:$0xff]
        %v1409 = vld [vmem:[#allocation2 + $0x23f8] sm:$0xff]
        %v1410 = vld [vmem:[#allocation2 + $0x2400] sm:$0xff]
        %v1411 = vld [vmem:[#allocation2 + $0x2408] sm:$0xff]
        %v1412 = vld [vmem:[#allocation2 + $0x2410] sm:$0xff]
        %v1413 = vld [vmem:[#allocation2 + $0x2418] sm:$0xff]
        %v1414 = vld [vmem:[#allocation2 + $0x2420] sm:$0xff]
        %v1415 = vld [vmem:[#allocation2 + $0x2428] sm:$0xff]
        %v1416 = vld [vmem:[#allocation2 + $0x2430] sm:$0xff]
        %v1417 = vld [vmem:[#allocation2 + $0x2438] sm:$0xff]
        %v1418 = vld [vmem:[#allocation2 + $0x2440] sm:$0xff]
        %v1419 = vld [vmem:[#allocation2 + $0x2448] sm:$0xff]
        %v1420 = vld [vmem:[#allocation2 + $0x2450] sm:$0xff]
        %v1421 = vld [vmem:[#allocation2 + $0x2458] sm:$0xff]
        %v1422 = vld [vmem:[#allocation2 + $0x2460] sm:$0xff]
        %v1423 = vld [vmem:[#allocation2 + $0x2468] sm:$0xff]
        %v1424 = vld [vmem:[#allocation2 + $0x2470] sm:$0xff]
        %v1425 = vld [vmem:[#allocation2 + $0x2478] sm:$0xff]
        %v1426 = vld [vmem:[#allocation2 + $0x2480] sm:$0xff]
        %v1427 = vld [vmem:[#allocation2 + $0x2488] sm:$0xff]
        %v1428 = vld [vmem:[#allocation2 + $0x2490] sm:$0xff]
        %v1429 = vld [vmem:[#allocation2 + $0x2498] sm:$0xff]
        %v1430 = vld [vmem:[#allocation2 + $0x24a0] sm:$0xff]
        %v1431 = vld [vmem:[#allocation2 + $0x24a8] sm:$0xff]
        %v1432 = vld [vmem:[#allocation2 + $0x24b0] sm:$0xff]
        %v1433 = vld [vmem:[#allocation2 + $0x24b8] sm:$0xff]
        %v1434 = vld [vmem:[#allocation2 + $0x24c0] sm:$0xff]
        %v1435 = vld [vmem:[#allocation2 + $0x24c8] sm:$0xff]
        %v1436 = vld [vmem:[#allocation2 + $0x24d0] sm:$0xff]
        %v1437 = vld [vmem:[#allocation2 + $0x24d8] sm:$0xff]
        %v1438 = vld [vmem:[#allocation2 + $0x24e0] sm:$0xff]
        %v1439 = vld [vmem:[#allocation2 + $0x24e8] sm:$0xff]
        %v1440 = vld [vmem:[#allocation2 + $0x24f0] sm:$0xff]
        %v1441 = vld [vmem:[#allocation2 + $0x24f8] sm:$0xff]
        %v1442 = vld [vmem:[#allocation2 + $0x2500] sm:$0xff]
        %v1443 = vld [vmem:[#allocation2 + $0x2508] sm:$0xff]
        %v1444 = vld [vmem:[#allocation2 + $0x2510] sm:$0xff]
        %v1445 = vld [vmem:[#allocation2 + $0x2518] sm:$0xff]
        %v1446 = vld [vmem:[#allocation2 + $0x2520] sm:$0xff]
        %v1447 = vld [vmem:[#allocation2 + $0x2528] sm:$0xff]
        %v1448 = vld [vmem:[#allocation2 + $0x2530] sm:$0xff]
        %v1449 = vld [vmem:[#allocation2 + $0x2538] sm:$0xff]
        %v1450 = vld [vmem:[#allocation2 + $0x2540] sm:$0xff]
        %v1451 = vld [vmem:[#allocation2 + $0x2548] sm:$0xff]
        %v1452 = vld [vmem:[#allocation2 + $0x2550] sm:$0xff]
        %v1453 = vld [vmem:[#allocation2 + $0x2558] sm:$0xff]
        %v1454 = vld [vmem:[#allocation2 + $0x2560] sm:$0xff]
        %v1455 = vld [vmem:[#allocation2 + $0x2568] sm:$0xff]
        %v1456 = vld [vmem:[#allocation2 + $0x2570] sm:$0xff]
        %v1457 = vld [vmem:[#allocation2 + $0x2578] sm:$0xff]
        %v1458 = vld [vmem:[#allocation2 + $0x2580] sm:$0xff]
        %v1459 = vld [vmem:[#allocation2 + $0x2588] sm:$0xff]
        %v1460 = vld [vmem:[#allocation2 + $0x2590] sm:$0xff]
        %v1461 = vld [vmem:[#allocation2 + $0x2598] sm:$0xff]
        %v1462 = vld [vmem:[#allocation2 + $0x25a0] sm:$0xff]
        %v1463 = vld [vmem:[#allocation2 + $0x25a8] sm:$0xff]
        %v1464 = vld [vmem:[#allocation2 + $0x25b0] sm:$0xff]
        %v1465 = vld [vmem:[#allocation2 + $0x25b8] sm:$0xff]
        %v1466 = vld [vmem:[#allocation2 + $0x25c0] sm:$0xff]
        %v1467 = vld [vmem:[#allocation2 + $0x25c8] sm:$0xff]
        %v1468 = vld [vmem:[#allocation2 + $0x25d0] sm:$0xff]
        %v1469 = vld [vmem:[#allocation2 + $0x25d8] sm:$0xff]
        %v1470 = vld [vmem:[#allocation2 + $0x25e0] sm:$0xff]
        %v1471 = vld [vmem:[#allocation2 + $0x25e8] sm:$0xff]
        %v1472 = vld [vmem:[#allocation2 + $0x25f0] sm:$0xff]
        %v1473 = vld [vmem:[#allocation2 + $0x25f8] sm:$0xff]
        %v1474 = vld [vmem:[#allocation2 + $0x2600] sm:$0xff]
        %v1475 = vld [vmem:[#allocation2 + $0x2608] sm:$0xff]
        %v1476 = vld [vmem:[#allocation2 + $0x2610] sm:$0xff]
        %v1477 = vld [vmem:[#allocation2 + $0x2618] sm:$0xff]
        %v1478 = vld [vmem:[#allocation2 + $0x2620] sm:$0xff]
        %v1479 = vld [vmem:[#allocation2 + $0x2628] sm:$0xff]
        %v1480 = vld [vmem:[#allocation2 + $0x2630] sm:$0xff]
        %v1481 = vld [vmem:[#allocation2 + $0x2638] sm:$0xff]
        %v1482 = vld [vmem:[#allocation2 + $0x2640] sm:$0xff]
        %v1483 = vld [vmem:[#allocation2 + $0x2648] sm:$0xff]
        %v1484 = vld [vmem:[#allocation2 + $0x2650] sm:$0xff]
        %v1485 = vld [vmem:[#allocation2 + $0x2658] sm:$0xff]
        %v1486 = vld [vmem:[#allocation2 + $0x2660] sm:$0xff]
        %v1487 = vld [vmem:[#allocation2 + $0x2668] sm:$0xff]
        %v1488 = vld [vmem:[#allocation2 + $0x2670] sm:$0xff]
        %v1489 = vld [vmem:[#allocation2 + $0x2678] sm:$0xff]
        %v1490 = vld [vmem:[#allocation2 + $0x2680] sm:$0xff]
        %v1491 = vld [vmem:[#allocation2 + $0x2688] sm:$0xff]
        %v1492 = vld [vmem:[#allocation2 + $0x2690] sm:$0xff]
        %v1493 = vld [vmem:[#allocation2 + $0x2698] sm:$0xff]
        %v1494 = vld [vmem:[#allocation2 + $0x26a0] sm:$0xff]
        %v1495 = vld [vmem:[#allocation2 + $0x26a8] sm:$0xff]
        %v1496 = vld [vmem:[#allocation2 + $0x26b0] sm:$0xff]
        %v1497 = vld [vmem:[#allocation2 + $0x26b8] sm:$0xff]
        %v1498 = vld [vmem:[#allocation2 + $0x26c0] sm:$0xff]
        %v1499 = vld [vmem:[#allocation2 + $0x26c8] sm:$0xff]
        %v1500 = vld [vmem:[#allocation2 + $0x26d0] sm:$0xff]
        %v1501 = vld [vmem:[#allocation2 + $0x26d8] sm:$0xff]
        %v1502 = vld [vmem:[#allocation2 + $0x26e0] sm:$0xff]
        %v1503 = vld [vmem:[#allocation2 + $0x26e8] sm:$0xff]
        %v1504 = vld [vmem:[#allocation2 + $0x26f0] sm:$0xff]
        %v1505 = vld [vmem:[#allocation2 + $0x26f8] sm:$0xff]
        %v1506 = vld [vmem:[#allocation2 + $0x2700] sm:$0xff]
        %v1507 = vld [vmem:[#allocation2 + $0x2708] sm:$0xff]
        %v1508 = vld [vmem:[#allocation2 + $0x2710] sm:$0xff]
        %v1509 = vld [vmem:[#allocation2 + $0x2718] sm:$0xff]
        %v1510 = vld [vmem:[#allocation2 + $0x2720] sm:$0xff]
        %v1511 = vld [vmem:[#allocation2 + $0x2728] sm:$0xff]
        %v1512 = vld [vmem:[#allocation2 + $0x2730] sm:$0xff]
        %v1513 = vld [vmem:[#allocation2 + $0x2738] sm:$0xff]
        %v1514 = vld [vmem:[#allocation2 + $0x2740] sm:$0xff]
        %v1515 = vld [vmem:[#allocation2 + $0x2748] sm:$0xff]
        %v1516 = vld [vmem:[#allocation2 + $0x2750] sm:$0xff]
        %v1517 = vld [vmem:[#allocation2 + $0x2758] sm:$0xff]
        %v1518 = vld [vmem:[#allocation2 + $0x2760] sm:$0xff]
        %v1519 = vld [vmem:[#allocation2 + $0x2768] sm:$0xff]
        %v1520 = vld [vmem:[#allocation2 + $0x2770] sm:$0xff]
        %v1521 = vld [vmem:[#allocation2 + $0x2778] sm:$0xff]
        %v1522 = vld [vmem:[#allocation2 + $0x2780] sm:$0xff]
        %v1523 = vld [vmem:[#allocation2 + $0x2788] sm:$0xff]
        %v1524 = vld [vmem:[#allocation2 + $0x2790] sm:$0xff]
        %v1525 = vld [vmem:[#allocation2 + $0x2798] sm:$0xff]
        %v1526 = vld [vmem:[#allocation2 + $0x27a0] sm:$0xff]
        %v1527 = vld [vmem:[#allocation2 + $0x27a8] sm:$0xff]
        %v1528 = vld [vmem:[#allocation2 + $0x27b0] sm:$0xff]
        %v1529 = vld [vmem:[#allocation2 + $0x27b8] sm:$0xff]
        %v1530 = vld [vmem:[#allocation2 + $0x27c0] sm:$0xff]
        %v1531 = vld [vmem:[#allocation2 + $0x27c8] sm:$0xff]
        %v1532 = vld [vmem:[#allocation2 + $0x27d0] sm:$0xff]
        %v1533 = vld [vmem:[#allocation2 + $0x27d8] sm:$0xff]
        %v1534 = vld [vmem:[#allocation2 + $0x27e0] sm:$0xff]
        %v1535 = vld [vmem:[#allocation2 + $0x27e8] sm:$0xff]
        %v1536 = vld [vmem:[#allocation2 + $0x27f0] sm:$0xff]
        %v1537 = vld [vmem:[#allocation2 + $0x27f8] sm:$0xff]
        %1538 = vmatpush.msra.mxu0 %v408
        %1539 = vmatpush.msra.mxu0 %v398
        %1540 = vmatpush.msra.mxu0 %v388
        %1541 = vmatpush.msra.mxu0 %v378
        %1542 = vmatpush.msra.mxu0 %v368
        %1543 = vmatpush.msra.mxu0 %v358
        %1544 = vmatpush.msra.mxu0 %v348
        %1545 = vmatpush.msra.mxu0 %v338
        %1546 = vmatpush.msra.mxu0 %v328
        %1547 = vmatpush.msra.mxu0 %v318
        %1548 = vmatpush.msra.mxu0 %v308
        %1549 = vmatpush.msra.mxu0 %v298
        %1550 = vmatpush.msra.mxu0 %v288
        %1551 = vmatpush.msra.mxu0 %v278
        %1552 = vmatpush.msra.mxu0 %v268
        %1553 = vmatpush.msra.mxu0 %v258
        %1554 = vmatmul.f32.gmra.mxu0 %v223
        %v1555 = vpop.f32.mrf.mxu0
        %v1556 = vadd.f32 0.0, %v1555
        %1557 = vdwg.mxu0
        %1558 = vmatpush.msra.mxu0 %v568
        %1559 = vmatpush.msra.mxu0 %v558
        %1560 = vmatpush.msra.mxu0 %v548
        %1561 = vmatpush.msra.mxu0 %v538
        %1562 = vmatpush.msra.mxu0 %v528
        %1563 = vmatpush.msra.mxu0 %v518
        %1564 = vmatpush.msra.mxu0 %v508
        %1565 = vmatpush.msra.mxu0 %v498
        %1566 = vmatpush.msra.mxu0 %v488
        %1567 = vmatpush.msra.mxu0 %v478
        %1568 = vmatpush.msra.mxu0 %v468
        %1569 = vmatpush.msra.mxu0 %v458
        %1570 = vmatpush.msra.mxu0 %v448
        %1571 = vmatpush.msra.mxu0 %v438
        %1572 = vmatpush.msra.mxu0 %v428
        %1573 = vmatpush.msra.mxu0 %v418
        %1574 = vmatmul.f32.gmra.mxu0 %v224
        %v1575 = vpop.f32.mrf.mxu0
        %v1576 = vadd.f32 %v1556, %v1575
        %1577 = vdwg.mxu0
        %1578 = vmatpush.msra.mxu0 %v728
        %1579 = vmatpush.msra.mxu0 %v718
        %1580 = vmatpush.msra.mxu0 %v708
        %1581 = vmatpush.msra.mxu0 %v698
        %1582 = vmatpush.msra.mxu0 %v688
        %1583 = vmatpush.msra.mxu0 %v678
        %1584 = vmatpush.msra.mxu0 %v668
        %1585 = vmatpush.msra.mxu0 %v658
        %1586 = vmatpush.msra.mxu0 %v648
        %1587 = vmatpush.msra.mxu0 %v638
        %1588 = vmatpush.msra.mxu0 %v628
        %1589 = vmatpush.msra.mxu0 %v618
        %1590 = vmatpush.msra.mxu0 %v608
        %1591 = vmatpush.msra.mxu0 %v598
        %1592 = vmatpush.msra.mxu0 %v588
        %1593 = vmatpush.msra.mxu0 %v578
        %1594 = vmatmul.f32.gmra.mxu0 %v234
        %v1595 = vpop.f32.mrf.mxu0
        %v1596 = vadd.f32 %v1576, %v1595
        %1597 = vdwg.mxu0
        %1598 = vmatpush.msra.mxu0 %v888
        %1599 = vmatpush.msra.mxu0 %v878
        %1600 = vmatpush.msra.mxu0 %v868
        %1601 = vmatpush.msra.mxu0 %v858
        %1602 = vmatpush.msra.mxu0 %v848
        %1603 = vmatpush.msra.mxu0 %v838
        %1604 = vmatpush.msra.mxu0 %v828
        %1605 = vmatpush.msra.mxu0 %v818
        %1606 = vmatpush.msra.mxu0 %v808
        %1607 = vmatpush.msra.mxu0 %v798
        %1608 = vmatpush.msra.mxu0 %v788
        %1609 = vmatpush.msra.mxu0 %v778
        %1610 = vmatpush.msra.mxu0 %v768
        %1611 = vmatpush.msra.mxu0 %v758
        %1612 = vmatpush.msra.mxu0 %v748
        %1613 = vmatpush.msra.mxu0 %v738
        %1614 = vmatmul.f32.gmra.mxu0 %v237
        %v1615 = vpop.f32.mrf.mxu0
        %v1616 = vadd.f32 %v1596, %v1615
        %1617 = vdwg.mxu0
        %1618 = vmatpush.msra.mxu0 %v1048
        %1619 = vmatpush.msra.mxu0 %v1038
        %1620 = vmatpush.msra.mxu0 %v1028
        %1621 = vmatpush.msra.mxu0 %v1018
        %1622 = vmatpush.msra.mxu0 %v1008
        %1623 = vmatpush.msra.mxu0 %v998
        %1624 = vmatpush.msra.mxu0 %v988
        %1625 = vmatpush.msra.mxu0 %v978
        %1626 = vmatpush.msra.mxu0 %v968
        %1627 = vmatpush.msra.mxu0 %v958
        %1628 = vmatpush.msra.mxu0 %v948
        %1629 = vmatpush.msra.mxu0 %v938
        %1630 = vmatpush.msra.mxu0 %v928
        %1631 = vmatpush.msra.mxu0 %v918
        %1632 = vmatpush.msra.mxu0 %v908
        %1633 = vmatpush.msra.mxu0 %v898
        %1634 = vmatmul.f32.gmra.mxu0 %v243
        %v1635 = vpop.f32.mrf.mxu0
        %v1636 = vadd.f32 %v1616, %v1635
        %1637 = vdwg.mxu0
        %1638 = vmatpush.msra.mxu0 %v1208
        %1639 = vmatpush.msra.mxu0 %v1198
        %1640 = vmatpush.msra.mxu0 %v1188
        %1641 = vmatpush.msra.mxu0 %v1178
        %1642 = vmatpush.msra.mxu0 %v1168
        %1643 = vmatpush.msra.mxu0 %v1158
        %1644 = vmatpush.msra.mxu0 %v1148
        %1645 = vmatpush.msra.mxu0 %v1138
        %1646 = vmatpush.msra.mxu0 %v1128
        %1647 = vmatpush.msra.mxu0 %v1118
        %1648 = vmatpush.msra.mxu0 %v1108
        %1649 = vmatpush.msra.mxu0 %v1098
        %1650 = vmatpush.msra.mxu0 %v1088
        %1651 = vmatpush.msra.mxu0 %v1078
        %1652 = vmatpush.msra.mxu0 %v1068
        %1653 = vmatpush.msra.mxu0 %v1058
        %1654 = vmatmul.f32.gmra.mxu0 %v246
        %v1655 = vpop.f32.mrf.mxu0
        %v1656 = vadd.f32 %v1636, %v1655
        %1657 = vdwg.mxu0
        %1658 = vmatpush.msra.mxu0 %v1368
        %1659 = vmatpush.msra.mxu0 %v1358
        %1660 = vmatpush.msra.mxu0 %v1348
        %1661 = vmatpush.msra.mxu0 %v1338
        %1662 = vmatpush.msra.mxu0 %v1328
        %1663 = vmatpush.msra.mxu0 %v1318
        %1664 = vmatpush.msra.mxu0 %v1308
        %1665 = vmatpush.msra.mxu0 %v1298
        %1666 = vmatpush.msra.mxu0 %v1288
        %1667 = vmatpush.msra.mxu0 %v1278
        %1668 = vmatpush.msra.mxu0 %v1268
        %1669 = vmatpush.msra.mxu0 %v1258
        %1670 = vmatpush.msra.mxu0 %v1248
        %1671 = vmatpush.msra.mxu0 %v1238
        %1672 = vmatpush.msra.mxu0 %v1228
        %1673 = vmatpush.msra.mxu0 %v1218
        %1674 = vmatmul.f32.gmra.mxu0 %v252
        %v1675 = vpop.f32.mrf.mxu0
        %v1676 = vadd.f32 %v1656, %v1675
        %1677 = vdwg.mxu0
        %1678 = vmatpush.msra.mxu0 %v1528
        %1679 = vmatpush.msra.mxu0 %v1518
        %1680 = vmatpush.msra.mxu0 %v1508
        %1681 = vmatpush.msra.mxu0 %v1498
        %1682 = vmatpush.msra.mxu0 %v1488
        %1683 = vmatpush.msra.mxu0 %v1478
        %1684 = vmatpush.msra.mxu0 %v1468
        %1685 = vmatpush.msra.mxu0 %v1458
        %1686 = vmatpush.msra.mxu0 %v1448
        %1687 = vmatpush.msra.mxu0 %v1438
        %1688 = vmatpush.msra.mxu0 %v1428
        %1689 = vmatpush.msra.mxu0 %v1418
        %1690 = vmatpush.msra.mxu0 %v1408
        %1691 = vmatpush.msra.mxu0 %v1398
        %1692 = vmatpush.msra.mxu0 %v1388
        %1693 = vmatpush.msra.mxu0 %v1378
        %1694 = vmatmul.f32.gmra.mxu0 %v255
        %v1695 = vpop.f32.mrf.mxu0
        %v1696 = vadd.f32 %v1676, %v1695
        %1697 = vdwg.mxu0
        %1698 = vmatpush.msra.mxu0 %v409
        %1699 = vmatpush.msra.mxu0 %v399
        %1700 = vmatpush.msra.mxu0 %v389
        %1701 = vmatpush.msra.mxu0 %v379
        %1702 = vmatpush.msra.mxu0 %v369
        %1703 = vmatpush.msra.mxu0 %v359
        %1704 = vmatpush.msra.mxu0 %v349
        %1705 = vmatpush.msra.mxu0 %v339
        %1706 = vmatpush.msra.mxu0 %v329
        %1707 = vmatpush.msra.mxu0 %v319
        %1708 = vmatpush.msra.mxu0 %v309
        %1709 = vmatpush.msra.mxu0 %v299
        %1710 = vmatpush.msra.mxu0 %v289
        %1711 = vmatpush.msra.mxu0 %v279
        %1712 = vmatpush.msra.mxu0 %v269
        %1713 = vmatpush.msra.mxu0 %v259
        %1714 = vmatmul.f32.gmra.mxu0 %v223
        %v1715 = vpop.f32.mrf.mxu0
        %v1716 = vadd.f32 0.0, %v1715
        %1717 = vdwg.mxu0
        %1718 = vmatpush.msra.mxu0 %v569
        %1719 = vmatpush.msra.mxu0 %v559
        %1720 = vmatpush.msra.mxu0 %v549
        %1721 = vmatpush.msra.mxu0 %v539
        %1722 = vmatpush.msra.mxu0 %v529
        %1723 = vmatpush.msra.mxu0 %v519
        %1724 = vmatpush.msra.mxu0 %v509
        %1725 = vmatpush.msra.mxu0 %v499
        %1726 = vmatpush.msra.mxu0 %v489
        %1727 = vmatpush.msra.mxu0 %v479
        %1728 = vmatpush.msra.mxu0 %v469
        %1729 = vmatpush.msra.mxu0 %v459
        %1730 = vmatpush.msra.mxu0 %v449
        %1731 = vmatpush.msra.mxu0 %v439
        %1732 = vmatpush.msra.mxu0 %v429
        %1733 = vmatpush.msra.mxu0 %v419
        %1734 = vmatmul.f32.gmra.mxu0 %v224
        %v1735 = vpop.f32.mrf.mxu0
        %v1736 = vadd.f32 %v1716, %v1735
        %1737 = vdwg.mxu0
        %1738 = vmatpush.msra.mxu0 %v729
        %1739 = vmatpush.msra.mxu0 %v719
        %1740 = vmatpush.msra.mxu0 %v709
        %1741 = vmatpush.msra.mxu0 %v699
        %1742 = vmatpush.msra.mxu0 %v689
        %1743 = vmatpush.msra.mxu0 %v679
        %1744 = vmatpush.msra.mxu0 %v669
        %1745 = vmatpush.msra.mxu0 %v659
        %1746 = vmatpush.msra.mxu0 %v649
        %1747 = vmatpush.msra.mxu0 %v639
        %1748 = vmatpush.msra.mxu0 %v629
        %1749 = vmatpush.msra.mxu0 %v619
        %1750 = vmatpush.msra.mxu0 %v609
        %1751 = vmatpush.msra.mxu0 %v599
        %1752 = vmatpush.msra.mxu0 %v589
        %1753 = vmatpush.msra.mxu0 %v579
        %1754 = vmatmul.f32.gmra.mxu0 %v234
        %v1755 = vpop.f32.mrf.mxu0
        %v1756 = vadd.f32 %v1736, %v1755
        %1757 = vdwg.mxu0
        %1758 = vmatpush.msra.mxu0 %v889
        %1759 = vmatpush.msra.mxu0 %v879
        %1760 = vmatpush.msra.mxu0 %v869
        %1761 = vmatpush.msra.mxu0 %v859
        %1762 = vmatpush.msra.mxu0 %v849
        %1763 = vmatpush.msra.mxu0 %v839
        %1764 = vmatpush.msra.mxu0 %v829
        %1765 = vmatpush.msra.mxu0 %v819
        %1766 = vmatpush.msra.mxu0 %v809
        %1767 = vmatpush.msra.mxu0 %v799
        %1768 = vmatpush.msra.mxu0 %v789
        %1769 = vmatpush.msra.mxu0 %v779
        %1770 = vmatpush.msra.mxu0 %v769
        %1771 = vmatpush.msra.mxu0 %v759
        %1772 = vmatpush.msra.mxu0 %v749
        %1773 = vmatpush.msra.mxu0 %v739
        %1774 = vmatmul.f32.gmra.mxu0 %v237
        %v1775 = vpop.f32.mrf.mxu0
        %v1776 = vadd.f32 %v1756, %v1775
        %1777 = vdwg.mxu0
        %1778 = vmatpush.msra.mxu0 %v1049
        %1779 = vmatpush.msra.mxu0 %v1039
        %1780 = vmatpush.msra.mxu0 %v1029
        %1781 = vmatpush.msra.mxu0 %v1019
        %1782 = vmatpush.msra.mxu0 %v1009
        %1783 = vmatpush.msra.mxu0 %v999
        %1784 = vmatpush.msra.mxu0 %v989
        %1785 = vmatpush.msra.mxu0 %v979
        %1786 = vmatpush.msra.mxu0 %v969
        %1787 = vmatpush.msra.mxu0 %v959
        %1788 = vmatpush.msra.mxu0 %v949
        %1789 = vmatpush.msra.mxu0 %v939
        %1790 = vmatpush.msra.mxu0 %v929
        %1791 = vmatpush.msra.mxu0 %v919
        %1792 = vmatpush.msra.mxu0 %v909
        %1793 = vmatpush.msra.mxu0 %v899
        %1794 = vmatmul.f32.gmra.mxu0 %v243
        %v1795 = vpop.f32.mrf.mxu0
        %v1796 = vadd.f32 %v1776, %v1795
        %1797 = vdwg.mxu0
        %1798 = vmatpush.msra.mxu0 %v1209
        %1799 = vmatpush.msra.mxu0 %v1199
        %1800 = vmatpush.msra.mxu0 %v1189
        %1801 = vmatpush.msra.mxu0 %v1179
        %1802 = vmatpush.msra.mxu0 %v1169
        %1803 = vmatpush.msra.mxu0 %v1159
        %1804 = vmatpush.msra.mxu0 %v1149
        %1805 = vmatpush.msra.mxu0 %v1139
        %1806 = vmatpush.msra.mxu0 %v1129
        %1807 = vmatpush.msra.mxu0 %v1119
        %1808 = vmatpush.msra.mxu0 %v1109
        %1809 = vmatpush.msra.mxu0 %v1099
        %1810 = vmatpush.msra.mxu0 %v1089
        %1811 = vmatpush.msra.mxu0 %v1079
        %1812 = vmatpush.msra.mxu0 %v1069
        %1813 = vmatpush.msra.mxu0 %v1059
        %1814 = vmatmul.f32.gmra.mxu0 %v246
        %v1815 = vpop.f32.mrf.mxu0
        %v1816 = vadd.f32 %v1796, %v1815
        %1817 = vdwg.mxu0
        %1818 = vmatpush.msra.mxu0 %v1369
        %1819 = vmatpush.msra.mxu0 %v1359
        %1820 = vmatpush.msra.mxu0 %v1349
        %1821 = vmatpush.msra.mxu0 %v1339
        %1822 = vmatpush.msra.mxu0 %v1329
        %1823 = vmatpush.msra.mxu0 %v1319
        %1824 = vmatpush.msra.mxu0 %v1309
        %1825 = vmatpush.msra.mxu0 %v1299
        %1826 = vmatpush.msra.mxu0 %v1289
        %1827 = vmatpush.msra.mxu0 %v1279
        %1828 = vmatpush.msra.mxu0 %v1269
        %1829 = vmatpush.msra.mxu0 %v1259
        %1830 = vmatpush.msra.mxu0 %v1249
        %1831 = vmatpush.msra.mxu0 %v1239
        %1832 = vmatpush.msra.mxu0 %v1229
        %1833 = vmatpush.msra.mxu0 %v1219
        %1834 = vmatmul.f32.gmra.mxu0 %v252
        %v1835 = vpop.f32.mrf.mxu0
        %v1836 = vadd.f32 %v1816, %v1835
        %1837 = vdwg.mxu0
        %1838 = vmatpush.msra.mxu0 %v1529
        %1839 = vmatpush.msra.mxu0 %v1519
        %1840 = vmatpush.msra.mxu0 %v1509
        %1841 = vmatpush.msra.mxu0 %v1499
        %1842 = vmatpush.msra.mxu0 %v1489
        %1843 = vmatpush.msra.mxu0 %v1479
        %1844 = vmatpush.msra.mxu0 %v1469
        %1845 = vmatpush.msra.mxu0 %v1459
        %1846 = vmatpush.msra.mxu0 %v1449
        %1847 = vmatpush.msra.mxu0 %v1439
        %1848 = vmatpush.msra.mxu0 %v1429
        %1849 = vmatpush.msra.mxu0 %v1419
        %1850 = vmatpush.msra.mxu0 %v1409
        %1851 = vmatpush.msra.mxu0 %v1399
        %1852 = vmatpush.msra.mxu0 %v1389
        %1853 = vmatpush.msra.mxu0 %v1379
        %1854 = vmatmul.f32.gmra.mxu0 %v255
        %v1855 = vpop.f32.mrf.mxu0
        %v1856 = vadd.f32 %v1836, %v1855
        %1857 = vdwg.mxu0
        %1858 = vmatpush.msra.mxu0 %v410
        %1859 = vmatpush.msra.mxu0 %v400
        %1860 = vmatpush.msra.mxu0 %v390
        %1861 = vmatpush.msra.mxu0 %v380
        %1862 = vmatpush.msra.mxu0 %v370
        %1863 = vmatpush.msra.mxu0 %v360
        %1864 = vmatpush.msra.mxu0 %v350
        %1865 = vmatpush.msra.mxu0 %v340
        %1866 = vmatpush.msra.mxu0 %v330
        %1867 = vmatpush.msra.mxu0 %v320
        %1868 = vmatpush.msra.mxu0 %v310
        %1869 = vmatpush.msra.mxu0 %v300
        %1870 = vmatpush.msra.mxu0 %v290
        %1871 = vmatpush.msra.mxu0 %v280
        %1872 = vmatpush.msra.mxu0 %v270
        %1873 = vmatpush.msra.mxu0 %v260
        %1874 = vmatmul.f32.gmra.mxu0 %v223
        %v1875 = vpop.f32.mrf.mxu0
        %v1876 = vadd.f32 0.0, %v1875
        %1877 = vdwg.mxu0
        %1878 = vmatpush.msra.mxu0 %v570
        %1879 = vmatpush.msra.mxu0 %v560
        %1880 = vmatpush.msra.mxu0 %v550
        %1881 = vmatpush.msra.mxu0 %v540
        %1882 = vmatpush.msra.mxu0 %v530
        %1883 = vmatpush.msra.mxu0 %v520
        %1884 = vmatpush.msra.mxu0 %v510
        %1885 = vmatpush.msra.mxu0 %v500
        %1886 = vmatpush.msra.mxu0 %v490
        %1887 = vmatpush.msra.mxu0 %v480
        %1888 = vmatpush.msra.mxu0 %v470
        %1889 = vmatpush.msra.mxu0 %v460
        %1890 = vmatpush.msra.mxu0 %v450
        %1891 = vmatpush.msra.mxu0 %v440
        %1892 = vmatpush.msra.mxu0 %v430
        %1893 = vmatpush.msra.mxu0 %v420
        %1894 = vmatmul.f32.gmra.mxu0 %v224
        %v1895 = vpop.f32.mrf.mxu0
        %v1896 = vadd.f32 %v1876, %v1895
        %1897 = vdwg.mxu0
        %1898 = vmatpush.msra.mxu0 %v730
        %1899 = vmatpush.msra.mxu0 %v720
        %1900 = vmatpush.msra.mxu0 %v710
        %1901 = vmatpush.msra.mxu0 %v700
        %1902 = vmatpush.msra.mxu0 %v690
        %1903 = vmatpush.msra.mxu0 %v680
        %1904 = vmatpush.msra.mxu0 %v670
        %1905 = vmatpush.msra.mxu0 %v660
        %1906 = vmatpush.msra.mxu0 %v650
        %1907 = vmatpush.msra.mxu0 %v640
        %1908 = vmatpush.msra.mxu0 %v630
        %1909 = vmatpush.msra.mxu0 %v620
        %1910 = vmatpush.msra.mxu0 %v610
        %1911 = vmatpush.msra.mxu0 %v600
        %1912 = vmatpush.msra.mxu0 %v590
        %1913 = vmatpush.msra.mxu0 %v580
        %1914 = vmatmul.f32.gmra.mxu0 %v234
        %v1915 = vpop.f32.mrf.mxu0
        %v1916 = vadd.f32 %v1896, %v1915
        %1917 = vdwg.mxu0
        %1918 = vmatpush.msra.mxu0 %v890
        %1919 = vmatpush.msra.mxu0 %v880
        %1920 = vmatpush.msra.mxu0 %v870
        %1921 = vmatpush.msra.mxu0 %v860
        %1922 = vmatpush.msra.mxu0 %v850
        %1923 = vmatpush.msra.mxu0 %v840
        %1924 = vmatpush.msra.mxu0 %v830
        %1925 = vmatpush.msra.mxu0 %v820
        %1926 = vmatpush.msra.mxu0 %v810
        %1927 = vmatpush.msra.mxu0 %v800
        %1928 = vmatpush.msra.mxu0 %v790
        %1929 = vmatpush.msra.mxu0 %v780
        %1930 = vmatpush.msra.mxu0 %v770
        %1931 = vmatpush.msra.mxu0 %v760
        %1932 = vmatpush.msra.mxu0 %v750
        %1933 = vmatpush.msra.mxu0 %v740
        %1934 = vmatmul.f32.gmra.mxu0 %v237
        %v1935 = vpop.f32.mrf.mxu0
        %v1936 = vadd.f32 %v1916, %v1935
        %1937 = vdwg.mxu0
        %1938 = vmatpush.msra.mxu0 %v1050
        %1939 = vmatpush.msra.mxu0 %v1040
        %1940 = vmatpush.msra.mxu0 %v1030
        %1941 = vmatpush.msra.mxu0 %v1020
        %1942 = vmatpush.msra.mxu0 %v1010
        %1943 = vmatpush.msra.mxu0 %v1000
        %1944 = vmatpush.msra.mxu0 %v990
        %1945 = vmatpush.msra.mxu0 %v980
        %1946 = vmatpush.msra.mxu0 %v970
        %1947 = vmatpush.msra.mxu0 %v960
        %1948 = vmatpush.msra.mxu0 %v950
        %1949 = vmatpush.msra.mxu0 %v940
        %1950 = vmatpush.msra.mxu0 %v930
        %1951 = vmatpush.msra.mxu0 %v920
        %1952 = vmatpush.msra.mxu0 %v910
        %1953 = vmatpush.msra.mxu0 %v900
        %1954 = vmatmul.f32.gmra.mxu0 %v243
        %v1955 = vpop.f32.mrf.mxu0
        %v1956 = vadd.f32 %v1936, %v1955
        %1957 = vdwg.mxu0
        %1958 = vmatpush.msra.mxu0 %v1210
        %1959 = vmatpush.msra.mxu0 %v1200
        %1960 = vmatpush.msra.mxu0 %v1190
        %1961 = vmatpush.msra.mxu0 %v1180
        %1962 = vmatpush.msra.mxu0 %v1170
        %1963 = vmatpush.msra.mxu0 %v1160
        %1964 = vmatpush.msra.mxu0 %v1150
        %1965 = vmatpush.msra.mxu0 %v1140
        %1966 = vmatpush.msra.mxu0 %v1130
        %1967 = vmatpush.msra.mxu0 %v1120
        %1968 = vmatpush.msra.mxu0 %v1110
        %1969 = vmatpush.msra.mxu0 %v1100
        %1970 = vmatpush.msra.mxu0 %v1090
        %1971 = vmatpush.msra.mxu0 %v1080
        %1972 = vmatpush.msra.mxu0 %v1070
        %1973 = vmatpush.msra.mxu0 %v1060
        %1974 = vmatmul.f32.gmra.mxu0 %v246
        %v1975 = vpop.f32.mrf.mxu0
        %v1976 = vadd.f32 %v1956, %v1975
        %1977 = vdwg.mxu0
        %1978 = vmatpush.msra.mxu0 %v1370
        %1979 = vmatpush.msra.mxu0 %v1360
        %1980 = vmatpush.msra.mxu0 %v1350
        %1981 = vmatpush.msra.mxu0 %v1340
        %1982 = vmatpush.msra.mxu0 %v1330
        %1983 = vmatpush.msra.mxu0 %v1320
        %1984 = vmatpush.msra.mxu0 %v1310
        %1985 = vmatpush.msra.mxu0 %v1300
        %1986 = vmatpush.msra.mxu0 %v1290
        %1987 = vmatpush.msra.mxu0 %v1280
        %1988 = vmatpush.msra.mxu0 %v1270
        %1989 = vmatpush.msra.mxu0 %v1260
        %1990 = vmatpush.msra.mxu0 %v1250
        %1991 = vmatpush.msra.mxu0 %v1240
        %1992 = vmatpush.msra.mxu0 %v1230
        %1993 = vmatpush.msra.mxu0 %v1220
        %1994 = vmatmul.f32.gmra.mxu0 %v252
        %v1995 = vpop.f32.mrf.mxu0
        %v1996 = vadd.f32 %v1976, %v1995
        %1997 = vdwg.mxu0
        %1998 = vmatpush.msra.mxu0 %v1530
        %1999 = vmatpush.msra.mxu0 %v1520
        %2000 = vmatpush.msra.mxu0 %v1510
        %2001 = vmatpush.msra.mxu0 %v1500
        %2002 = vmatpush.msra.mxu0 %v1490
        %2003 = vmatpush.msra.mxu0 %v1480
        %2004 = vmatpush.msra.mxu0 %v1470
        %2005 = vmatpush.msra.mxu0 %v1460
        %2006 = vmatpush.msra.mxu0 %v1450
        %2007 = vmatpush.msra.mxu0 %v1440
        %2008 = vmatpush.msra.mxu0 %v1430
        %2009 = vmatpush.msra.mxu0 %v1420
        %2010 = vmatpush.msra.mxu0 %v1410
        %2011 = vmatpush.msra.mxu0 %v1400
        %2012 = vmatpush.msra.mxu0 %v1390
        %2013 = vmatpush.msra.mxu0 %v1380
        %2014 = vmatmul.f32.gmra.mxu0 %v255
        %v2015 = vpop.f32.mrf.mxu0
        %v2016 = vadd.f32 %v1996, %v2015
        %2017 = vdwg.mxu0
        %2018 = vmatpush.msra.mxu0 %v411
        %2019 = vmatpush.msra.mxu0 %v401
        %2020 = vmatpush.msra.mxu0 %v391
        %2021 = vmatpush.msra.mxu0 %v381
        %2022 = vmatpush.msra.mxu0 %v371
        %2023 = vmatpush.msra.mxu0 %v361
        %2024 = vmatpush.msra.mxu0 %v351
        %2025 = vmatpush.msra.mxu0 %v341
        %2026 = vmatpush.msra.mxu0 %v331
        %2027 = vmatpush.msra.mxu0 %v321
        %2028 = vmatpush.msra.mxu0 %v311
        %2029 = vmatpush.msra.mxu0 %v301
        %2030 = vmatpush.msra.mxu0 %v291
        %2031 = vmatpush.msra.mxu0 %v281
        %2032 = vmatpush.msra.mxu0 %v271
        %2033 = vmatpush.msra.mxu0 %v261
        %2034 = vmatmul.f32.gmra.mxu0 %v223
        %v2035 = vpop.f32.mrf.mxu0
        %v2036 = vadd.f32 0.0, %v2035
        %2037 = vdwg.mxu0
        %2038 = vmatpush.msra.mxu0 %v571
        %2039 = vmatpush.msra.mxu0 %v561
        %2040 = vmatpush.msra.mxu0 %v551
        %2041 = vmatpush.msra.mxu0 %v541
        %2042 = vmatpush.msra.mxu0 %v531
        %2043 = vmatpush.msra.mxu0 %v521
        %2044 = vmatpush.msra.mxu0 %v511
        %2045 = vmatpush.msra.mxu0 %v501
        %2046 = vmatpush.msra.mxu0 %v491
        %2047 = vmatpush.msra.mxu0 %v481
        %2048 = vmatpush.msra.mxu0 %v471
        %2049 = vmatpush.msra.mxu0 %v461
        %2050 = vmatpush.msra.mxu0 %v451
        %2051 = vmatpush.msra.mxu0 %v441
        %2052 = vmatpush.msra.mxu0 %v431
        %2053 = vmatpush.msra.mxu0 %v421
        %2054 = vmatmul.f32.gmra.mxu0 %v224
        %v2055 = vpop.f32.mrf.mxu0
        %v2056 = vadd.f32 %v2036, %v2055
        %2057 = vdwg.mxu0
        %2058 = vmatpush.msra.mxu0 %v731
        %2059 = vmatpush.msra.mxu0 %v721
        %2060 = vmatpush.msra.mxu0 %v711
        %2061 = vmatpush.msra.mxu0 %v701
        %2062 = vmatpush.msra.mxu0 %v691
        %2063 = vmatpush.msra.mxu0 %v681
        %2064 = vmatpush.msra.mxu0 %v671
        %2065 = vmatpush.msra.mxu0 %v661
        %2066 = vmatpush.msra.mxu0 %v651
        %2067 = vmatpush.msra.mxu0 %v641
        %2068 = vmatpush.msra.mxu0 %v631
        %2069 = vmatpush.msra.mxu0 %v621
        %2070 = vmatpush.msra.mxu0 %v611
        %2071 = vmatpush.msra.mxu0 %v601
        %2072 = vmatpush.msra.mxu0 %v591
        %2073 = vmatpush.msra.mxu0 %v581
        %2074 = vmatmul.f32.gmra.mxu0 %v234
        %v2075 = vpop.f32.mrf.mxu0
        %v2076 = vadd.f32 %v2056, %v2075
        %2077 = vdwg.mxu0
        %2078 = vmatpush.msra.mxu0 %v891
        %2079 = vmatpush.msra.mxu0 %v881
        %2080 = vmatpush.msra.mxu0 %v871
        %2081 = vmatpush.msra.mxu0 %v861
        %2082 = vmatpush.msra.mxu0 %v851
        %2083 = vmatpush.msra.mxu0 %v841
        %2084 = vmatpush.msra.mxu0 %v831
        %2085 = vmatpush.msra.mxu0 %v821
        %2086 = vmatpush.msra.mxu0 %v811
        %2087 = vmatpush.msra.mxu0 %v801
        %2088 = vmatpush.msra.mxu0 %v791
        %2089 = vmatpush.msra.mxu0 %v781
        %2090 = vmatpush.msra.mxu0 %v771
        %2091 = vmatpush.msra.mxu0 %v761
        %2092 = vmatpush.msra.mxu0 %v751
        %2093 = vmatpush.msra.mxu0 %v741
        %2094 = vmatmul.f32.gmra.mxu0 %v237
        %v2095 = vpop.f32.mrf.mxu0
        %v2096 = vadd.f32 %v2076, %v2095
        %2097 = vdwg.mxu0
        %2098 = vmatpush.msra.mxu0 %v1051
        %2099 = vmatpush.msra.mxu0 %v1041
        %2100 = vmatpush.msra.mxu0 %v1031
        %2101 = vmatpush.msra.mxu0 %v1021
        %2102 = vmatpush.msra.mxu0 %v1011
        %2103 = vmatpush.msra.mxu0 %v1001
        %2104 = vmatpush.msra.mxu0 %v991
        %2105 = vmatpush.msra.mxu0 %v981
        %2106 = vmatpush.msra.mxu0 %v971
        %2107 = vmatpush.msra.mxu0 %v961
        %2108 = vmatpush.msra.mxu0 %v951
        %2109 = vmatpush.msra.mxu0 %v941
        %2110 = vmatpush.msra.mxu0 %v931
        %2111 = vmatpush.msra.mxu0 %v921
        %2112 = vmatpush.msra.mxu0 %v911
        %2113 = vmatpush.msra.mxu0 %v901
        %2114 = vmatmul.f32.gmra.mxu0 %v243
        %v2115 = vpop.f32.mrf.mxu0
        %v2116 = vadd.f32 %v2096, %v2115
        %2117 = vdwg.mxu0
        %2118 = vmatpush.msra.mxu0 %v1211
        %2119 = vmatpush.msra.mxu0 %v1201
        %2120 = vmatpush.msra.mxu0 %v1191
        %2121 = vmatpush.msra.mxu0 %v1181
        %2122 = vmatpush.msra.mxu0 %v1171
        %2123 = vmatpush.msra.mxu0 %v1161
        %2124 = vmatpush.msra.mxu0 %v1151
        %2125 = vmatpush.msra.mxu0 %v1141
        %2126 = vmatpush.msra.mxu0 %v1131
        %2127 = vmatpush.msra.mxu0 %v1121
        %2128 = vmatpush.msra.mxu0 %v1111
        %2129 = vmatpush.msra.mxu0 %v1101
        %2130 = vmatpush.msra.mxu0 %v1091
        %2131 = vmatpush.msra.mxu0 %v1081
        %2132 = vmatpush.msra.mxu0 %v1071
        %2133 = vmatpush.msra.mxu0 %v1061
        %2134 = vmatmul.f32.gmra.mxu0 %v246
        %v2135 = vpop.f32.mrf.mxu0
        %v2136 = vadd.f32 %v2116, %v2135
        %2137 = vdwg.mxu0
        %2138 = vmatpush.msra.mxu0 %v1371
        %2139 = vmatpush.msra.mxu0 %v1361
        %2140 = vmatpush.msra.mxu0 %v1351
        %2141 = vmatpush.msra.mxu0 %v1341
        %2142 = vmatpush.msra.mxu0 %v1331
        %2143 = vmatpush.msra.mxu0 %v1321
        %2144 = vmatpush.msra.mxu0 %v1311
        %2145 = vmatpush.msra.mxu0 %v1301
        %2146 = vmatpush.msra.mxu0 %v1291
        %2147 = vmatpush.msra.mxu0 %v1281
        %2148 = vmatpush.msra.mxu0 %v1271
        %2149 = vmatpush.msra.mxu0 %v1261
        %2150 = vmatpush.msra.mxu0 %v1251
        %2151 = vmatpush.msra.mxu0 %v1241
        %2152 = vmatpush.msra.mxu0 %v1231
        %2153 = vmatpush.msra.mxu0 %v1221
        %2154 = vmatmul.f32.gmra.mxu0 %v252
        %v2155 = vpop.f32.mrf.mxu0
        %v2156 = vadd.f32 %v2136, %v2155
        %2157 = vdwg.mxu0
        %2158 = vmatpush.msra.mxu0 %v1531
        %2159 = vmatpush.msra.mxu0 %v1521
        %2160 = vmatpush.msra.mxu0 %v1511
        %2161 = vmatpush.msra.mxu0 %v1501
        %2162 = vmatpush.msra.mxu0 %v1491
        %2163 = vmatpush.msra.mxu0 %v1481
        %2164 = vmatpush.msra.mxu0 %v1471
        %2165 = vmatpush.msra.mxu0 %v1461
        %2166 = vmatpush.msra.mxu0 %v1451
        %2167 = vmatpush.msra.mxu0 %v1441
        %2168 = vmatpush.msra.mxu0 %v1431
        %2169 = vmatpush.msra.mxu0 %v1421
        %2170 = vmatpush.msra.mxu0 %v1411
        %2171 = vmatpush.msra.mxu0 %v1401
        %2172 = vmatpush.msra.mxu0 %v1391
        %2173 = vmatpush.msra.mxu0 %v1381
        %2174 = vmatmul.f32.gmra.mxu0 %v255
        %v2175 = vpop.f32.mrf.mxu0
        %v2176 = vadd.f32 %v2156, %v2175
        %2177 = vdwg.mxu0
        %2178 = vmatpush.msra.mxu0 %v412
        %2179 = vmatpush.msra.mxu0 %v402
        %2180 = vmatpush.msra.mxu0 %v392
        %2181 = vmatpush.msra.mxu0 %v382
        %2182 = vmatpush.msra.mxu0 %v372
        %2183 = vmatpush.msra.mxu0 %v362
        %2184 = vmatpush.msra.mxu0 %v352
        %2185 = vmatpush.msra.mxu0 %v342
        %2186 = vmatpush.msra.mxu0 %v332
        %2187 = vmatpush.msra.mxu0 %v322
        %2188 = vmatpush.msra.mxu0 %v312
        %2189 = vmatpush.msra.mxu0 %v302
        %2190 = vmatpush.msra.mxu0 %v292
        %2191 = vmatpush.msra.mxu0 %v282
        %2192 = vmatpush.msra.mxu0 %v272
        %2193 = vmatpush.msra.mxu0 %v262
        %2194 = vmatmul.f32.gmra.mxu0 %v223
        %v2195 = vpop.f32.mrf.mxu0
        %v2196 = vadd.f32 0.0, %v2195
        %2197 = vdwg.mxu0
        %2198 = vmatpush.msra.mxu0 %v572
        %2199 = vmatpush.msra.mxu0 %v562
        %2200 = vmatpush.msra.mxu0 %v552
        %2201 = vmatpush.msra.mxu0 %v542
        %2202 = vmatpush.msra.mxu0 %v532
        %2203 = vmatpush.msra.mxu0 %v522
        %2204 = vmatpush.msra.mxu0 %v512
        %2205 = vmatpush.msra.mxu0 %v502
        %2206 = vmatpush.msra.mxu0 %v492
        %2207 = vmatpush.msra.mxu0 %v482
        %2208 = vmatpush.msra.mxu0 %v472
        %2209 = vmatpush.msra.mxu0 %v462
        %2210 = vmatpush.msra.mxu0 %v452
        %2211 = vmatpush.msra.mxu0 %v442
        %2212 = vmatpush.msra.mxu0 %v432
        %2213 = vmatpush.msra.mxu0 %v422
        %2214 = vmatmul.f32.gmra.mxu0 %v224
        %v2215 = vpop.f32.mrf.mxu0
        %v2216 = vadd.f32 %v2196, %v2215
        %2217 = vdwg.mxu0
        %2218 = vmatpush.msra.mxu0 %v732
        %2219 = vmatpush.msra.mxu0 %v722
        %2220 = vmatpush.msra.mxu0 %v712
        %2221 = vmatpush.msra.mxu0 %v702
        %2222 = vmatpush.msra.mxu0 %v692
        %2223 = vmatpush.msra.mxu0 %v682
        %2224 = vmatpush.msra.mxu0 %v672
        %2225 = vmatpush.msra.mxu0 %v662
        %2226 = vmatpush.msra.mxu0 %v652
        %2227 = vmatpush.msra.mxu0 %v642
        %2228 = vmatpush.msra.mxu0 %v632
        %2229 = vmatpush.msra.mxu0 %v622
        %2230 = vmatpush.msra.mxu0 %v612
        %2231 = vmatpush.msra.mxu0 %v602
        %2232 = vmatpush.msra.mxu0 %v592
        %2233 = vmatpush.msra.mxu0 %v582
        %2234 = vmatmul.f32.gmra.mxu0 %v234
        %v2235 = vpop.f32.mrf.mxu0
        %v2236 = vadd.f32 %v2216, %v2235
        %2237 = vdwg.mxu0
        %2238 = vmatpush.msra.mxu0 %v892
        %2239 = vmatpush.msra.mxu0 %v882
        %2240 = vmatpush.msra.mxu0 %v872
        %2241 = vmatpush.msra.mxu0 %v862
        %2242 = vmatpush.msra.mxu0 %v852
        %2243 = vmatpush.msra.mxu0 %v842
        %2244 = vmatpush.msra.mxu0 %v832
        %2245 = vmatpush.msra.mxu0 %v822
        %2246 = vmatpush.msra.mxu0 %v812
        %2247 = vmatpush.msra.mxu0 %v802
        %2248 = vmatpush.msra.mxu0 %v792
        %2249 = vmatpush.msra.mxu0 %v782
        %2250 = vmatpush.msra.mxu0 %v772
        %2251 = vmatpush.msra.mxu0 %v762
        %2252 = vmatpush.msra.mxu0 %v752
        %2253 = vmatpush.msra.mxu0 %v742
        %2254 = vmatmul.f32.gmra.mxu0 %v237
        %v2255 = vpop.f32.mrf.mxu0
        %v2256 = vadd.f32 %v2236, %v2255
        %2257 = vdwg.mxu0
        %2258 = vmatpush.msra.mxu0 %v1052
        %2259 = vmatpush.msra.mxu0 %v1042
        %2260 = vmatpush.msra.mxu0 %v1032
        %2261 = vmatpush.msra.mxu0 %v1022
        %2262 = vmatpush.msra.mxu0 %v1012
        %2263 = vmatpush.msra.mxu0 %v1002
        %2264 = vmatpush.msra.mxu0 %v992
        %2265 = vmatpush.msra.mxu0 %v982
        %2266 = vmatpush.msra.mxu0 %v972
        %2267 = vmatpush.msra.mxu0 %v962
        %2268 = vmatpush.msra.mxu0 %v952
        %2269 = vmatpush.msra.mxu0 %v942
        %2270 = vmatpush.msra.mxu0 %v932
        %2271 = vmatpush.msra.mxu0 %v922
        %2272 = vmatpush.msra.mxu0 %v912
        %2273 = vmatpush.msra.mxu0 %v902
        %2274 = vmatmul.f32.gmra.mxu0 %v243
        %v2275 = vpop.f32.mrf.mxu0
        %v2276 = vadd.f32 %v2256, %v2275
        %2277 = vdwg.mxu0
        %2278 = vmatpush.msra.mxu0 %v1212
        %2279 = vmatpush.msra.mxu0 %v1202
        %2280 = vmatpush.msra.mxu0 %v1192
        %2281 = vmatpush.msra.mxu0 %v1182
        %2282 = vmatpush.msra.mxu0 %v1172
        %2283 = vmatpush.msra.mxu0 %v1162
        %2284 = vmatpush.msra.mxu0 %v1152
        %2285 = vmatpush.msra.mxu0 %v1142
        %2286 = vmatpush.msra.mxu0 %v1132
        %2287 = vmatpush.msra.mxu0 %v1122
        %2288 = vmatpush.msra.mxu0 %v1112
        %2289 = vmatpush.msra.mxu0 %v1102
        %2290 = vmatpush.msra.mxu0 %v1092
        %2291 = vmatpush.msra.mxu0 %v1082
        %2292 = vmatpush.msra.mxu0 %v1072
        %2293 = vmatpush.msra.mxu0 %v1062
        %2294 = vmatmul.f32.gmra.mxu0 %v246
        %v2295 = vpop.f32.mrf.mxu0
        %v2296 = vadd.f32 %v2276, %v2295
        %2297 = vdwg.mxu0
        %2298 = vmatpush.msra.mxu0 %v1372
        %2299 = vmatpush.msra.mxu0 %v1362
        %2300 = vmatpush.msra.mxu0 %v1352
        %2301 = vmatpush.msra.mxu0 %v1342
        %2302 = vmatpush.msra.mxu0 %v1332
        %2303 = vmatpush.msra.mxu0 %v1322
        %2304 = vmatpush.msra.mxu0 %v1312
        %2305 = vmatpush.msra.mxu0 %v1302
        %2306 = vmatpush.msra.mxu0 %v1292
        %2307 = vmatpush.msra.mxu0 %v1282
        %2308 = vmatpush.msra.mxu0 %v1272
        %2309 = vmatpush.msra.mxu0 %v1262
        %2310 = vmatpush.msra.mxu0 %v1252
        %2311 = vmatpush.msra.mxu0 %v1242
        %2312 = vmatpush.msra.mxu0 %v1232
        %2313 = vmatpush.msra.mxu0 %v1222
        %2314 = vmatmul.f32.gmra.mxu0 %v252
        %v2315 = vpop.f32.mrf.mxu0
        %v2316 = vadd.f32 %v2296, %v2315
        %2317 = vdwg.mxu0
        %2318 = vmatpush.msra.mxu0 %v1532
        %2319 = vmatpush.msra.mxu0 %v1522
        %2320 = vmatpush.msra.mxu0 %v1512
        %2321 = vmatpush.msra.mxu0 %v1502
        %2322 = vmatpush.msra.mxu0 %v1492
        %2323 = vmatpush.msra.mxu0 %v1482
        %2324 = vmatpush.msra.mxu0 %v1472
        %2325 = vmatpush.msra.mxu0 %v1462
        %2326 = vmatpush.msra.mxu0 %v1452
        %2327 = vmatpush.msra.mxu0 %v1442
        %2328 = vmatpush.msra.mxu0 %v1432
        %2329 = vmatpush.msra.mxu0 %v1422
        %2330 = vmatpush.msra.mxu0 %v1412
        %2331 = vmatpush.msra.mxu0 %v1402
        %2332 = vmatpush.msra.mxu0 %v1392
        %2333 = vmatpush.msra.mxu0 %v1382
        %2334 = vmatmul.f32.gmra.mxu0 %v255
        %v2335 = vpop.f32.mrf.mxu0
        %v2336 = vadd.f32 %v2316, %v2335
        %2337 = vdwg.mxu0
        %2338 = vmatpush.msra.mxu0 %v413
        %2339 = vmatpush.msra.mxu0 %v403
        %2340 = vmatpush.msra.mxu0 %v393
        %2341 = vmatpush.msra.mxu0 %v383
        %2342 = vmatpush.msra.mxu0 %v373
        %2343 = vmatpush.msra.mxu0 %v363
        %2344 = vmatpush.msra.mxu0 %v353
        %2345 = vmatpush.msra.mxu0 %v343
        %2346 = vmatpush.msra.mxu0 %v333
        %2347 = vmatpush.msra.mxu0 %v323
        %2348 = vmatpush.msra.mxu0 %v313
        %2349 = vmatpush.msra.mxu0 %v303
        %2350 = vmatpush.msra.mxu0 %v293
        %2351 = vmatpush.msra.mxu0 %v283
        %2352 = vmatpush.msra.mxu0 %v273
        %2353 = vmatpush.msra.mxu0 %v263
        %2354 = vmatmul.f32.gmra.mxu0 %v223
        %v2355 = vpop.f32.mrf.mxu0
        %v2356 = vadd.f32 0.0, %v2355
        %2357 = vdwg.mxu0
        %2358 = vmatpush.msra.mxu0 %v573
        %2359 = vmatpush.msra.mxu0 %v563
        %2360 = vmatpush.msra.mxu0 %v553
        %2361 = vmatpush.msra.mxu0 %v543
        %2362 = vmatpush.msra.mxu0 %v533
        %2363 = vmatpush.msra.mxu0 %v523
        %2364 = vmatpush.msra.mxu0 %v513
        %2365 = vmatpush.msra.mxu0 %v503
        %2366 = vmatpush.msra.mxu0 %v493
        %2367 = vmatpush.msra.mxu0 %v483
        %2368 = vmatpush.msra.mxu0 %v473
        %2369 = vmatpush.msra.mxu0 %v463
        %2370 = vmatpush.msra.mxu0 %v453
        %2371 = vmatpush.msra.mxu0 %v443
        %2372 = vmatpush.msra.mxu0 %v433
        %2373 = vmatpush.msra.mxu0 %v423
        %2374 = vmatmul.f32.gmra.mxu0 %v224
        %v2375 = vpop.f32.mrf.mxu0
        %v2376 = vadd.f32 %v2356, %v2375
        %2377 = vdwg.mxu0
        %2378 = vmatpush.msra.mxu0 %v733
        %2379 = vmatpush.msra.mxu0 %v723
        %2380 = vmatpush.msra.mxu0 %v713
        %2381 = vmatpush.msra.mxu0 %v703
        %2382 = vmatpush.msra.mxu0 %v693
        %2383 = vmatpush.msra.mxu0 %v683
        %2384 = vmatpush.msra.mxu0 %v673
        %2385 = vmatpush.msra.mxu0 %v663
        %2386 = vmatpush.msra.mxu0 %v653
        %2387 = vmatpush.msra.mxu0 %v643
        %2388 = vmatpush.msra.mxu0 %v633
        %2389 = vmatpush.msra.mxu0 %v623
        %2390 = vmatpush.msra.mxu0 %v613
        %2391 = vmatpush.msra.mxu0 %v603
        %2392 = vmatpush.msra.mxu0 %v593
        %2393 = vmatpush.msra.mxu0 %v583
        %2394 = vmatmul.f32.gmra.mxu0 %v234
        %v2395 = vpop.f32.mrf.mxu0
        %v2396 = vadd.f32 %v2376, %v2395
        %2397 = vdwg.mxu0
        %2398 = vmatpush.msra.mxu0 %v893
        %2399 = vmatpush.msra.mxu0 %v883
        %2400 = vmatpush.msra.mxu0 %v873
        %2401 = vmatpush.msra.mxu0 %v863
        %2402 = vmatpush.msra.mxu0 %v853
        %2403 = vmatpush.msra.mxu0 %v843
        %2404 = vmatpush.msra.mxu0 %v833
        %2405 = vmatpush.msra.mxu0 %v823
        %2406 = vmatpush.msra.mxu0 %v813
        %2407 = vmatpush.msra.mxu0 %v803
        %2408 = vmatpush.msra.mxu0 %v793
        %2409 = vmatpush.msra.mxu0 %v783
        %2410 = vmatpush.msra.mxu0 %v773
        %2411 = vmatpush.msra.mxu0 %v763
        %2412 = vmatpush.msra.mxu0 %v753
        %2413 = vmatpush.msra.mxu0 %v743
        %2414 = vmatmul.f32.gmra.mxu0 %v237
        %v2415 = vpop.f32.mrf.mxu0
        %v2416 = vadd.f32 %v2396, %v2415
        %2417 = vdwg.mxu0
        %2418 = vmatpush.msra.mxu0 %v1053
        %2419 = vmatpush.msra.mxu0 %v1043
        %2420 = vmatpush.msra.mxu0 %v1033
        %2421 = vmatpush.msra.mxu0 %v1023
        %2422 = vmatpush.msra.mxu0 %v1013
        %2423 = vmatpush.msra.mxu0 %v1003
        %2424 = vmatpush.msra.mxu0 %v993
        %2425 = vmatpush.msra.mxu0 %v983
        %2426 = vmatpush.msra.mxu0 %v973
        %2427 = vmatpush.msra.mxu0 %v963
        %2428 = vmatpush.msra.mxu0 %v953
        %2429 = vmatpush.msra.mxu0 %v943
        %2430 = vmatpush.msra.mxu0 %v933
        %2431 = vmatpush.msra.mxu0 %v923
        %2432 = vmatpush.msra.mxu0 %v913
        %2433 = vmatpush.msra.mxu0 %v903
        %2434 = vmatmul.f32.gmra.mxu0 %v243
        %v2435 = vpop.f32.mrf.mxu0
        %v2436 = vadd.f32 %v2416, %v2435
        %2437 = vdwg.mxu0
        %2438 = vmatpush.msra.mxu0 %v1213
        %2439 = vmatpush.msra.mxu0 %v1203
        %2440 = vmatpush.msra.mxu0 %v1193
        %2441 = vmatpush.msra.mxu0 %v1183
        %2442 = vmatpush.msra.mxu0 %v1173
        %2443 = vmatpush.msra.mxu0 %v1163
        %2444 = vmatpush.msra.mxu0 %v1153
        %2445 = vmatpush.msra.mxu0 %v1143
        %2446 = vmatpush.msra.mxu0 %v1133
        %2447 = vmatpush.msra.mxu0 %v1123
        %2448 = vmatpush.msra.mxu0 %v1113
        %2449 = vmatpush.msra.mxu0 %v1103
        %2450 = vmatpush.msra.mxu0 %v1093
        %2451 = vmatpush.msra.mxu0 %v1083
        %2452 = vmatpush.msra.mxu0 %v1073
        %2453 = vmatpush.msra.mxu0 %v1063
        %2454 = vmatmul.f32.gmra.mxu0 %v246
        %v2455 = vpop.f32.mrf.mxu0
        %v2456 = vadd.f32 %v2436, %v2455
        %2457 = vdwg.mxu0
        %2458 = vmatpush.msra.mxu0 %v1373
        %2459 = vmatpush.msra.mxu0 %v1363
        %2460 = vmatpush.msra.mxu0 %v1353
        %2461 = vmatpush.msra.mxu0 %v1343
        %2462 = vmatpush.msra.mxu0 %v1333
        %2463 = vmatpush.msra.mxu0 %v1323
        %2464 = vmatpush.msra.mxu0 %v1313
        %2465 = vmatpush.msra.mxu0 %v1303
        %2466 = vmatpush.msra.mxu0 %v1293
        %2467 = vmatpush.msra.mxu0 %v1283
        %2468 = vmatpush.msra.mxu0 %v1273
        %2469 = vmatpush.msra.mxu0 %v1263
        %2470 = vmatpush.msra.mxu0 %v1253
        %2471 = vmatpush.msra.mxu0 %v1243
        %2472 = vmatpush.msra.mxu0 %v1233
        %2473 = vmatpush.msra.mxu0 %v1223
        %2474 = vmatmul.f32.gmra.mxu0 %v252
        %v2475 = vpop.f32.mrf.mxu0
        %v2476 = vadd.f32 %v2456, %v2475
        %2477 = vdwg.mxu0
        %2478 = vmatpush.msra.mxu0 %v1533
        %2479 = vmatpush.msra.mxu0 %v1523
        %2480 = vmatpush.msra.mxu0 %v1513
        %2481 = vmatpush.msra.mxu0 %v1503
        %2482 = vmatpush.msra.mxu0 %v1493
        %2483 = vmatpush.msra.mxu0 %v1483
        %2484 = vmatpush.msra.mxu0 %v1473
        %2485 = vmatpush.msra.mxu0 %v1463
        %2486 = vmatpush.msra.mxu0 %v1453
        %2487 = vmatpush.msra.mxu0 %v1443
        %2488 = vmatpush.msra.mxu0 %v1433
        %2489 = vmatpush.msra.mxu0 %v1423
        %2490 = vmatpush.msra.mxu0 %v1413
        %2491 = vmatpush.msra.mxu0 %v1403
        %2492 = vmatpush.msra.mxu0 %v1393
        %2493 = vmatpush.msra.mxu0 %v1383
        %2494 = vmatmul.f32.gmra.mxu0 %v255
        %v2495 = vpop.f32.mrf.mxu0
        %v2496 = vadd.f32 %v2476, %v2495
        %2497 = vdwg.mxu0
        %2498 = vmatpush.msra.mxu0 %v414
        %2499 = vmatpush.msra.mxu0 %v404
        %2500 = vmatpush.msra.mxu0 %v394
        %2501 = vmatpush.msra.mxu0 %v384
        %2502 = vmatpush.msra.mxu0 %v374
        %2503 = vmatpush.msra.mxu0 %v364
        %2504 = vmatpush.msra.mxu0 %v354
        %2505 = vmatpush.msra.mxu0 %v344
        %2506 = vmatpush.msra.mxu0 %v334
        %2507 = vmatpush.msra.mxu0 %v324
        %2508 = vmatpush.msra.mxu0 %v314
        %2509 = vmatpush.msra.mxu0 %v304
        %2510 = vmatpush.msra.mxu0 %v294
        %2511 = vmatpush.msra.mxu0 %v284
        %2512 = vmatpush.msra.mxu0 %v274
        %2513 = vmatpush.msra.mxu0 %v264
        %2514 = vmatmul.f32.gmra.mxu0 %v223
        %v2515 = vpop.f32.mrf.mxu0
        %v2516 = vadd.f32 0.0, %v2515
        %2517 = vdwg.mxu0
        %2518 = vmatpush.msra.mxu0 %v574
        %2519 = vmatpush.msra.mxu0 %v564
        %2520 = vmatpush.msra.mxu0 %v554
        %2521 = vmatpush.msra.mxu0 %v544
        %2522 = vmatpush.msra.mxu0 %v534
        %2523 = vmatpush.msra.mxu0 %v524
        %2524 = vmatpush.msra.mxu0 %v514
        %2525 = vmatpush.msra.mxu0 %v504
        %2526 = vmatpush.msra.mxu0 %v494
        %2527 = vmatpush.msra.mxu0 %v484
        %2528 = vmatpush.msra.mxu0 %v474
        %2529 = vmatpush.msra.mxu0 %v464
        %2530 = vmatpush.msra.mxu0 %v454
        %2531 = vmatpush.msra.mxu0 %v444
        %2532 = vmatpush.msra.mxu0 %v434
        %2533 = vmatpush.msra.mxu0 %v424
        %2534 = vmatmul.f32.gmra.mxu0 %v224
        %v2535 = vpop.f32.mrf.mxu0
        %v2536 = vadd.f32 %v2516, %v2535
        %2537 = vdwg.mxu0
        %2538 = vmatpush.msra.mxu0 %v734
        %2539 = vmatpush.msra.mxu0 %v724
        %2540 = vmatpush.msra.mxu0 %v714
        %2541 = vmatpush.msra.mxu0 %v704
        %2542 = vmatpush.msra.mxu0 %v694
        %2543 = vmatpush.msra.mxu0 %v684
        %2544 = vmatpush.msra.mxu0 %v674
        %2545 = vmatpush.msra.mxu0 %v664
        %2546 = vmatpush.msra.mxu0 %v654
        %2547 = vmatpush.msra.mxu0 %v644
        %2548 = vmatpush.msra.mxu0 %v634
        %2549 = vmatpush.msra.mxu0 %v624
        %2550 = vmatpush.msra.mxu0 %v614
        %2551 = vmatpush.msra.mxu0 %v604
        %2552 = vmatpush.msra.mxu0 %v594
        %2553 = vmatpush.msra.mxu0 %v584
        %2554 = vmatmul.f32.gmra.mxu0 %v234
        %v2555 = vpop.f32.mrf.mxu0
        %v2556 = vadd.f32 %v2536, %v2555
        %2557 = vdwg.mxu0
        %2558 = vmatpush.msra.mxu0 %v894
        %2559 = vmatpush.msra.mxu0 %v884
        %2560 = vmatpush.msra.mxu0 %v874
        %2561 = vmatpush.msra.mxu0 %v864
        %2562 = vmatpush.msra.mxu0 %v854
        %2563 = vmatpush.msra.mxu0 %v844
        %2564 = vmatpush.msra.mxu0 %v834
        %2565 = vmatpush.msra.mxu0 %v824
        %2566 = vmatpush.msra.mxu0 %v814
        %2567 = vmatpush.msra.mxu0 %v804
        %2568 = vmatpush.msra.mxu0 %v794
        %2569 = vmatpush.msra.mxu0 %v784
        %2570 = vmatpush.msra.mxu0 %v774
        %2571 = vmatpush.msra.mxu0 %v764
        %2572 = vmatpush.msra.mxu0 %v754
        %2573 = vmatpush.msra.mxu0 %v744
        %2574 = vmatmul.f32.gmra.mxu0 %v237
        %v2575 = vpop.f32.mrf.mxu0
        %v2576 = vadd.f32 %v2556, %v2575
        %2577 = vdwg.mxu0
        %2578 = vmatpush.msra.mxu0 %v1054
        %2579 = vmatpush.msra.mxu0 %v1044
        %2580 = vmatpush.msra.mxu0 %v1034
        %2581 = vmatpush.msra.mxu0 %v1024
        %2582 = vmatpush.msra.mxu0 %v1014
        %2583 = vmatpush.msra.mxu0 %v1004
        %2584 = vmatpush.msra.mxu0 %v994
        %2585 = vmatpush.msra.mxu0 %v984
        %2586 = vmatpush.msra.mxu0 %v974
        %2587 = vmatpush.msra.mxu0 %v964
        %2588 = vmatpush.msra.mxu0 %v954
        %2589 = vmatpush.msra.mxu0 %v944
        %2590 = vmatpush.msra.mxu0 %v934
        %2591 = vmatpush.msra.mxu0 %v924
        %2592 = vmatpush.msra.mxu0 %v914
        %2593 = vmatpush.msra.mxu0 %v904
        %2594 = vmatmul.f32.gmra.mxu0 %v243
        %v2595 = vpop.f32.mrf.mxu0
        %v2596 = vadd.f32 %v2576, %v2595
        %2597 = vdwg.mxu0
        %2598 = vmatpush.msra.mxu0 %v1214
        %2599 = vmatpush.msra.mxu0 %v1204
        %2600 = vmatpush.msra.mxu0 %v1194
        %2601 = vmatpush.msra.mxu0 %v1184
        %2602 = vmatpush.msra.mxu0 %v1174
        %2603 = vmatpush.msra.mxu0 %v1164
        %2604 = vmatpush.msra.mxu0 %v1154
        %2605 = vmatpush.msra.mxu0 %v1144
        %2606 = vmatpush.msra.mxu0 %v1134
        %2607 = vmatpush.msra.mxu0 %v1124
        %2608 = vmatpush.msra.mxu0 %v1114
        %2609 = vmatpush.msra.mxu0 %v1104
        %2610 = vmatpush.msra.mxu0 %v1094
        %2611 = vmatpush.msra.mxu0 %v1084
        %2612 = vmatpush.msra.mxu0 %v1074
        %2613 = vmatpush.msra.mxu0 %v1064
        %2614 = vmatmul.f32.gmra.mxu0 %v246
        %v2615 = vpop.f32.mrf.mxu0
        %v2616 = vadd.f32 %v2596, %v2615
        %2617 = vdwg.mxu0
        %2618 = vmatpush.msra.mxu0 %v1374
        %2619 = vmatpush.msra.mxu0 %v1364
        %2620 = vmatpush.msra.mxu0 %v1354
        %2621 = vmatpush.msra.mxu0 %v1344
        %2622 = vmatpush.msra.mxu0 %v1334
        %2623 = vmatpush.msra.mxu0 %v1324
        %2624 = vmatpush.msra.mxu0 %v1314
        %2625 = vmatpush.msra.mxu0 %v1304
        %2626 = vmatpush.msra.mxu0 %v1294
        %2627 = vmatpush.msra.mxu0 %v1284
        %2628 = vmatpush.msra.mxu0 %v1274
        %2629 = vmatpush.msra.mxu0 %v1264
        %2630 = vmatpush.msra.mxu0 %v1254
        %2631 = vmatpush.msra.mxu0 %v1244
        %2632 = vmatpush.msra.mxu0 %v1234
        %2633 = vmatpush.msra.mxu0 %v1224
        %2634 = vmatmul.f32.gmra.mxu0 %v252
        %v2635 = vpop.f32.mrf.mxu0
        %v2636 = vadd.f32 %v2616, %v2635
        %2637 = vdwg.mxu0
        %2638 = vmatpush.msra.mxu0 %v1534
        %2639 = vmatpush.msra.mxu0 %v1524
        %2640 = vmatpush.msra.mxu0 %v1514
        %2641 = vmatpush.msra.mxu0 %v1504
        %2642 = vmatpush.msra.mxu0 %v1494
        %2643 = vmatpush.msra.mxu0 %v1484
        %2644 = vmatpush.msra.mxu0 %v1474
        %2645 = vmatpush.msra.mxu0 %v1464
        %2646 = vmatpush.msra.mxu0 %v1454
        %2647 = vmatpush.msra.mxu0 %v1444
        %2648 = vmatpush.msra.mxu0 %v1434
        %2649 = vmatpush.msra.mxu0 %v1424
        %2650 = vmatpush.msra.mxu0 %v1414
        %2651 = vmatpush.msra.mxu0 %v1404
        %2652 = vmatpush.msra.mxu0 %v1394
        %2653 = vmatpush.msra.mxu0 %v1384
        %2654 = vmatmul.f32.gmra.mxu0 %v255
        %v2655 = vpop.f32.mrf.mxu0
        %v2656 = vadd.f32 %v2636, %v2655
        %2657 = vdwg.mxu0
        %2658 = vmatpush.msra.mxu0 %v415
        %2659 = vmatpush.msra.mxu0 %v405
        %2660 = vmatpush.msra.mxu0 %v395
        %2661 = vmatpush.msra.mxu0 %v385
        %2662 = vmatpush.msra.mxu0 %v375
        %2663 = vmatpush.msra.mxu0 %v365
        %2664 = vmatpush.msra.mxu0 %v355
        %2665 = vmatpush.msra.mxu0 %v345
        %2666 = vmatpush.msra.mxu0 %v335
        %2667 = vmatpush.msra.mxu0 %v325
        %2668 = vmatpush.msra.mxu0 %v315
        %2669 = vmatpush.msra.mxu0 %v305
        %2670 = vmatpush.msra.mxu0 %v295
        %2671 = vmatpush.msra.mxu0 %v285
        %2672 = vmatpush.msra.mxu0 %v275
        %2673 = vmatpush.msra.mxu0 %v265
        %2674 = vmatmul.f32.gmra.mxu0 %v223
        %v2675 = vpop.f32.mrf.mxu0
        %v2676 = vadd.f32 0.0, %v2675
        %2677 = vdwg.mxu0
        %2678 = vmatpush.msra.mxu0 %v575
        %2679 = vmatpush.msra.mxu0 %v565
        %2680 = vmatpush.msra.mxu0 %v555
        %2681 = vmatpush.msra.mxu0 %v545
        %2682 = vmatpush.msra.mxu0 %v535
        %2683 = vmatpush.msra.mxu0 %v525
        %2684 = vmatpush.msra.mxu0 %v515
        %2685 = vmatpush.msra.mxu0 %v505
        %2686 = vmatpush.msra.mxu0 %v495
        %2687 = vmatpush.msra.mxu0 %v485
        %2688 = vmatpush.msra.mxu0 %v475
        %2689 = vmatpush.msra.mxu0 %v465
        %2690 = vmatpush.msra.mxu0 %v455
        %2691 = vmatpush.msra.mxu0 %v445
        %2692 = vmatpush.msra.mxu0 %v435
        %2693 = vmatpush.msra.mxu0 %v425
        %2694 = vmatmul.f32.gmra.mxu0 %v224
        %v2695 = vpop.f32.mrf.mxu0
        %v2696 = vadd.f32 %v2676, %v2695
        %2697 = vdwg.mxu0
        %2698 = vmatpush.msra.mxu0 %v735
        %2699 = vmatpush.msra.mxu0 %v725
        %2700 = vmatpush.msra.mxu0 %v715
        %2701 = vmatpush.msra.mxu0 %v705
        %2702 = vmatpush.msra.mxu0 %v695
        %2703 = vmatpush.msra.mxu0 %v685
        %2704 = vmatpush.msra.mxu0 %v675
        %2705 = vmatpush.msra.mxu0 %v665
        %2706 = vmatpush.msra.mxu0 %v655
        %2707 = vmatpush.msra.mxu0 %v645
        %2708 = vmatpush.msra.mxu0 %v635
        %2709 = vmatpush.msra.mxu0 %v625
        %2710 = vmatpush.msra.mxu0 %v615
        %2711 = vmatpush.msra.mxu0 %v605
        %2712 = vmatpush.msra.mxu0 %v595
        %2713 = vmatpush.msra.mxu0 %v585
        %2714 = vmatmul.f32.gmra.mxu0 %v234
        %v2715 = vpop.f32.mrf.mxu0
        %v2716 = vadd.f32 %v2696, %v2715
        %2717 = vdwg.mxu0
        %2718 = vmatpush.msra.mxu0 %v895
        %2719 = vmatpush.msra.mxu0 %v885
        %2720 = vmatpush.msra.mxu0 %v875
        %2721 = vmatpush.msra.mxu0 %v865
        %2722 = vmatpush.msra.mxu0 %v855
        %2723 = vmatpush.msra.mxu0 %v845
        %2724 = vmatpush.msra.mxu0 %v835
        %2725 = vmatpush.msra.mxu0 %v825
        %2726 = vmatpush.msra.mxu0 %v815
        %2727 = vmatpush.msra.mxu0 %v805
        %2728 = vmatpush.msra.mxu0 %v795
        %2729 = vmatpush.msra.mxu0 %v785
        %2730 = vmatpush.msra.mxu0 %v775
        %2731 = vmatpush.msra.mxu0 %v765
        %2732 = vmatpush.msra.mxu0 %v755
        %2733 = vmatpush.msra.mxu0 %v745
        %2734 = vmatmul.f32.gmra.mxu0 %v237
        %v2735 = vpop.f32.mrf.mxu0
        %v2736 = vadd.f32 %v2716, %v2735
        %2737 = vdwg.mxu0
        %2738 = vmatpush.msra.mxu0 %v1055
        %2739 = vmatpush.msra.mxu0 %v1045
        %2740 = vmatpush.msra.mxu0 %v1035
        %2741 = vmatpush.msra.mxu0 %v1025
        %2742 = vmatpush.msra.mxu0 %v1015
        %2743 = vmatpush.msra.mxu0 %v1005
        %2744 = vmatpush.msra.mxu0 %v995
        %2745 = vmatpush.msra.mxu0 %v985
        %2746 = vmatpush.msra.mxu0 %v975
        %2747 = vmatpush.msra.mxu0 %v965
        %2748 = vmatpush.msra.mxu0 %v955
        %2749 = vmatpush.msra.mxu0 %v945
        %2750 = vmatpush.msra.mxu0 %v935
        %2751 = vmatpush.msra.mxu0 %v925
        %2752 = vmatpush.msra.mxu0 %v915
        %2753 = vmatpush.msra.mxu0 %v905
        %2754 = vmatmul.f32.gmra.mxu0 %v243
        %v2755 = vpop.f32.mrf.mxu0
        %v2756 = vadd.f32 %v2736, %v2755
        %2757 = vdwg.mxu0
        %2758 = vmatpush.msra.mxu0 %v1215
        %2759 = vmatpush.msra.mxu0 %v1205
        %2760 = vmatpush.msra.mxu0 %v1195
        %2761 = vmatpush.msra.mxu0 %v1185
        %2762 = vmatpush.msra.mxu0 %v1175
        %2763 = vmatpush.msra.mxu0 %v1165
        %2764 = vmatpush.msra.mxu0 %v1155
        %2765 = vmatpush.msra.mxu0 %v1145
        %2766 = vmatpush.msra.mxu0 %v1135
        %2767 = vmatpush.msra.mxu0 %v1125
        %2768 = vmatpush.msra.mxu0 %v1115
        %2769 = vmatpush.msra.mxu0 %v1105
        %2770 = vmatpush.msra.mxu0 %v1095
        %2771 = vmatpush.msra.mxu0 %v1085
        %2772 = vmatpush.msra.mxu0 %v1075
        %2773 = vmatpush.msra.mxu0 %v1065
        %2774 = vmatmul.f32.gmra.mxu0 %v246
        %v2775 = vpop.f32.mrf.mxu0
        %v2776 = vadd.f32 %v2756, %v2775
        %2777 = vdwg.mxu0
        %2778 = vmatpush.msra.mxu0 %v1375
        %2779 = vmatpush.msra.mxu0 %v1365
        %2780 = vmatpush.msra.mxu0 %v1355
        %2781 = vmatpush.msra.mxu0 %v1345
        %2782 = vmatpush.msra.mxu0 %v1335
        %2783 = vmatpush.msra.mxu0 %v1325
        %2784 = vmatpush.msra.mxu0 %v1315
        %2785 = vmatpush.msra.mxu0 %v1305
        %2786 = vmatpush.msra.mxu0 %v1295
        %2787 = vmatpush.msra.mxu0 %v1285
        %2788 = vmatpush.msra.mxu0 %v1275
        %2789 = vmatpush.msra.mxu0 %v1265
        %2790 = vmatpush.msra.mxu0 %v1255
        %2791 = vmatpush.msra.mxu0 %v1245
        %2792 = vmatpush.msra.mxu0 %v1235
        %2793 = vmatpush.msra.mxu0 %v1225
        %2794 = vmatmul.f32.gmra.mxu0 %v252
        %v2795 = vpop.f32.mrf.mxu0
        %v2796 = vadd.f32 %v2776, %v2795
        %2797 = vdwg.mxu0
        %2798 = vmatpush.msra.mxu0 %v1535
        %2799 = vmatpush.msra.mxu0 %v1525
        %2800 = vmatpush.msra.mxu0 %v1515
        %2801 = vmatpush.msra.mxu0 %v1505
        %2802 = vmatpush.msra.mxu0 %v1495
        %2803 = vmatpush.msra.mxu0 %v1485
        %2804 = vmatpush.msra.mxu0 %v1475
        %2805 = vmatpush.msra.mxu0 %v1465
        %2806 = vmatpush.msra.mxu0 %v1455
        %2807 = vmatpush.msra.mxu0 %v1445
        %2808 = vmatpush.msra.mxu0 %v1435
        %2809 = vmatpush.msra.mxu0 %v1425
        %2810 = vmatpush.msra.mxu0 %v1415
        %2811 = vmatpush.msra.mxu0 %v1405
        %2812 = vmatpush.msra.mxu0 %v1395
        %2813 = vmatpush.msra.mxu0 %v1385
        %2814 = vmatmul.f32.gmra.mxu0 %v255
        %v2815 = vpop.f32.mrf.mxu0
        %v2816 = vadd.f32 %v2796, %v2815
        %2817 = vdwg.mxu0
        %2818 = vmatpush.msra.mxu0 %v416
        %2819 = vmatpush.msra.mxu0 %v406
        %2820 = vmatpush.msra.mxu0 %v396
        %2821 = vmatpush.msra.mxu0 %v386
        %2822 = vmatpush.msra.mxu0 %v376
        %2823 = vmatpush.msra.mxu0 %v366
        %2824 = vmatpush.msra.mxu0 %v356
        %2825 = vmatpush.msra.mxu0 %v346
        %2826 = vmatpush.msra.mxu0 %v336
        %2827 = vmatpush.msra.mxu0 %v326
        %2828 = vmatpush.msra.mxu0 %v316
        %2829 = vmatpush.msra.mxu0 %v306
        %2830 = vmatpush.msra.mxu0 %v296
        %2831 = vmatpush.msra.mxu0 %v286
        %2832 = vmatpush.msra.mxu0 %v276
        %2833 = vmatpush.msra.mxu0 %v266
        %2834 = vmatmul.f32.gmra.mxu0 %v223
        %v2835 = vpop.f32.mrf.mxu0
        %v2836 = vadd.f32 0.0, %v2835
        %2837 = vdwg.mxu0
        %2838 = vmatpush.msra.mxu0 %v576
        %2839 = vmatpush.msra.mxu0 %v566
        %2840 = vmatpush.msra.mxu0 %v556
        %2841 = vmatpush.msra.mxu0 %v546
        %2842 = vmatpush.msra.mxu0 %v536
        %2843 = vmatpush.msra.mxu0 %v526
        %2844 = vmatpush.msra.mxu0 %v516
        %2845 = vmatpush.msra.mxu0 %v506
        %2846 = vmatpush.msra.mxu0 %v496
        %2847 = vmatpush.msra.mxu0 %v486
        %2848 = vmatpush.msra.mxu0 %v476
        %2849 = vmatpush.msra.mxu0 %v466
        %2850 = vmatpush.msra.mxu0 %v456
        %2851 = vmatpush.msra.mxu0 %v446
        %2852 = vmatpush.msra.mxu0 %v436
        %2853 = vmatpush.msra.mxu0 %v426
        %2854 = vmatmul.f32.gmra.mxu0 %v224
        %v2855 = vpop.f32.mrf.mxu0
        %v2856 = vadd.f32 %v2836, %v2855
        %2857 = vdwg.mxu0
        %2858 = vmatpush.msra.mxu0 %v736
        %2859 = vmatpush.msra.mxu0 %v726
        %2860 = vmatpush.msra.mxu0 %v716
        %2861 = vmatpush.msra.mxu0 %v706
        %2862 = vmatpush.msra.mxu0 %v696
        %2863 = vmatpush.msra.mxu0 %v686
        %2864 = vmatpush.msra.mxu0 %v676
        %2865 = vmatpush.msra.mxu0 %v666
        %2866 = vmatpush.msra.mxu0 %v656
        %2867 = vmatpush.msra.mxu0 %v646
        %2868 = vmatpush.msra.mxu0 %v636
        %2869 = vmatpush.msra.mxu0 %v626
        %2870 = vmatpush.msra.mxu0 %v616
        %2871 = vmatpush.msra.mxu0 %v606
        %2872 = vmatpush.msra.mxu0 %v596
        %2873 = vmatpush.msra.mxu0 %v586
        %2874 = vmatmul.f32.gmra.mxu0 %v234
        %v2875 = vpop.f32.mrf.mxu0
        %v2876 = vadd.f32 %v2856, %v2875
        %2877 = vdwg.mxu0
        %2878 = vmatpush.msra.mxu0 %v896
        %2879 = vmatpush.msra.mxu0 %v886
        %2880 = vmatpush.msra.mxu0 %v876
        %2881 = vmatpush.msra.mxu0 %v866
        %2882 = vmatpush.msra.mxu0 %v856
        %2883 = vmatpush.msra.mxu0 %v846
        %2884 = vmatpush.msra.mxu0 %v836
        %2885 = vmatpush.msra.mxu0 %v826
        %2886 = vmatpush.msra.mxu0 %v816
        %2887 = vmatpush.msra.mxu0 %v806
        %2888 = vmatpush.msra.mxu0 %v796
        %2889 = vmatpush.msra.mxu0 %v786
        %2890 = vmatpush.msra.mxu0 %v776
        %2891 = vmatpush.msra.mxu0 %v766
        %2892 = vmatpush.msra.mxu0 %v756
        %2893 = vmatpush.msra.mxu0 %v746
        %2894 = vmatmul.f32.gmra.mxu0 %v237
        %v2895 = vpop.f32.mrf.mxu0
        %v2896 = vadd.f32 %v2876, %v2895
        %2897 = vdwg.mxu0
        %2898 = vmatpush.msra.mxu0 %v1056
        %2899 = vmatpush.msra.mxu0 %v1046
        %2900 = vmatpush.msra.mxu0 %v1036
        %2901 = vmatpush.msra.mxu0 %v1026
        %2902 = vmatpush.msra.mxu0 %v1016
        %2903 = vmatpush.msra.mxu0 %v1006
        %2904 = vmatpush.msra.mxu0 %v996
        %2905 = vmatpush.msra.mxu0 %v986
        %2906 = vmatpush.msra.mxu0 %v976
        %2907 = vmatpush.msra.mxu0 %v966
        %2908 = vmatpush.msra.mxu0 %v956
        %2909 = vmatpush.msra.mxu0 %v946
        %2910 = vmatpush.msra.mxu0 %v936
        %2911 = vmatpush.msra.mxu0 %v926
        %2912 = vmatpush.msra.mxu0 %v916
        %2913 = vmatpush.msra.mxu0 %v906
        %2914 = vmatmul.f32.gmra.mxu0 %v243
        %v2915 = vpop.f32.mrf.mxu0
        %v2916 = vadd.f32 %v2896, %v2915
        %2917 = vdwg.mxu0
        %2918 = vmatpush.msra.mxu0 %v1216
        %2919 = vmatpush.msra.mxu0 %v1206
        %2920 = vmatpush.msra.mxu0 %v1196
        %2921 = vmatpush.msra.mxu0 %v1186
        %2922 = vmatpush.msra.mxu0 %v1176
        %2923 = vmatpush.msra.mxu0 %v1166
        %2924 = vmatpush.msra.mxu0 %v1156
        %2925 = vmatpush.msra.mxu0 %v1146
        %2926 = vmatpush.msra.mxu0 %v1136
        %2927 = vmatpush.msra.mxu0 %v1126
        %2928 = vmatpush.msra.mxu0 %v1116
        %2929 = vmatpush.msra.mxu0 %v1106
        %2930 = vmatpush.msra.mxu0 %v1096
        %2931 = vmatpush.msra.mxu0 %v1086
        %2932 = vmatpush.msra.mxu0 %v1076
        %2933 = vmatpush.msra.mxu0 %v1066
        %2934 = vmatmul.f32.gmra.mxu0 %v246
        %v2935 = vpop.f32.mrf.mxu0
        %v2936 = vadd.f32 %v2916, %v2935
        %2937 = vdwg.mxu0
        %2938 = vmatpush.msra.mxu0 %v1376
        %2939 = vmatpush.msra.mxu0 %v1366
        %2940 = vmatpush.msra.mxu0 %v1356
        %2941 = vmatpush.msra.mxu0 %v1346
        %2942 = vmatpush.msra.mxu0 %v1336
        %2943 = vmatpush.msra.mxu0 %v1326
        %2944 = vmatpush.msra.mxu0 %v1316
        %2945 = vmatpush.msra.mxu0 %v1306
        %2946 = vmatpush.msra.mxu0 %v1296
        %2947 = vmatpush.msra.mxu0 %v1286
        %2948 = vmatpush.msra.mxu0 %v1276
        %2949 = vmatpush.msra.mxu0 %v1266
        %2950 = vmatpush.msra.mxu0 %v1256
        %2951 = vmatpush.msra.mxu0 %v1246
        %2952 = vmatpush.msra.mxu0 %v1236
        %2953 = vmatpush.msra.mxu0 %v1226
        %2954 = vmatmul.f32.gmra.mxu0 %v252
        %v2955 = vpop.f32.mrf.mxu0
        %v2956 = vadd.f32 %v2936, %v2955
        %2957 = vdwg.mxu0
        %2958 = vmatpush.msra.mxu0 %v1536
        %2959 = vmatpush.msra.mxu0 %v1526
        %2960 = vmatpush.msra.mxu0 %v1516
        %2961 = vmatpush.msra.mxu0 %v1506
        %2962 = vmatpush.msra.mxu0 %v1496
        %2963 = vmatpush.msra.mxu0 %v1486
        %2964 = vmatpush.msra.mxu0 %v1476
        %2965 = vmatpush.msra.mxu0 %v1466
        %2966 = vmatpush.msra.mxu0 %v1456
        %2967 = vmatpush.msra.mxu0 %v1446
        %2968 = vmatpush.msra.mxu0 %v1436
        %2969 = vmatpush.msra.mxu0 %v1426
        %2970 = vmatpush.msra.mxu0 %v1416
        %2971 = vmatpush.msra.mxu0 %v1406
        %2972 = vmatpush.msra.mxu0 %v1396
        %2973 = vmatpush.msra.mxu0 %v1386
        %2974 = vmatmul.f32.gmra.mxu0 %v255
        %v2975 = vpop.f32.mrf.mxu0
        %v2976 = vadd.f32 %v2956, %v2975
        %2977 = vdwg.mxu0
        %2978 = vmatpush.msra.mxu0 %v417
        %2979 = vmatpush.msra.mxu0 %v407
        %2980 = vmatpush.msra.mxu0 %v397
        %2981 = vmatpush.msra.mxu0 %v387
        %2982 = vmatpush.msra.mxu0 %v377
        %2983 = vmatpush.msra.mxu0 %v367
        %2984 = vmatpush.msra.mxu0 %v357
        %2985 = vmatpush.msra.mxu0 %v347
        %2986 = vmatpush.msra.mxu0 %v337
        %2987 = vmatpush.msra.mxu0 %v327
        %2988 = vmatpush.msra.mxu0 %v317
        %2989 = vmatpush.msra.mxu0 %v307
        %2990 = vmatpush.msra.mxu0 %v297
        %2991 = vmatpush.msra.mxu0 %v287
        %2992 = vmatpush.msra.mxu0 %v277
        %2993 = vmatpush.msra.mxu0 %v267
        %2994 = vmatmul.f32.gmra.mxu0 %v223
        %v2995 = vpop.f32.mrf.mxu0
        %v2996 = vadd.f32 0.0, %v2995
        %2997 = vdwg.mxu0
        %2998 = vmatpush.msra.mxu0 %v577
        %2999 = vmatpush.msra.mxu0 %v567
        %3000 = vmatpush.msra.mxu0 %v557
        %3001 = vmatpush.msra.mxu0 %v547
        %3002 = vmatpush.msra.mxu0 %v537
        %3003 = vmatpush.msra.mxu0 %v527
        %3004 = vmatpush.msra.mxu0 %v517
        %3005 = vmatpush.msra.mxu0 %v507
        %3006 = vmatpush.msra.mxu0 %v497
        %3007 = vmatpush.msra.mxu0 %v487
        %3008 = vmatpush.msra.mxu0 %v477
        %3009 = vmatpush.msra.mxu0 %v467
        %3010 = vmatpush.msra.mxu0 %v457
        %3011 = vmatpush.msra.mxu0 %v447
        %3012 = vmatpush.msra.mxu0 %v437
        %3013 = vmatpush.msra.mxu0 %v427
        %3014 = vmatmul.f32.gmra.mxu0 %v224
        %v3015 = vpop.f32.mrf.mxu0
        %v3016 = vadd.f32 %v2996, %v3015
        %3017 = vdwg.mxu0
        %3018 = vmatpush.msra.mxu0 %v737
        %3019 = vmatpush.msra.mxu0 %v727
        %3020 = vmatpush.msra.mxu0 %v717
        %3021 = vmatpush.msra.mxu0 %v707
        %3022 = vmatpush.msra.mxu0 %v697
        %3023 = vmatpush.msra.mxu0 %v687
        %3024 = vmatpush.msra.mxu0 %v677
        %3025 = vmatpush.msra.mxu0 %v667
        %3026 = vmatpush.msra.mxu0 %v657
        %3027 = vmatpush.msra.mxu0 %v647
        %3028 = vmatpush.msra.mxu0 %v637
        %3029 = vmatpush.msra.mxu0 %v627
        %3030 = vmatpush.msra.mxu0 %v617
        %3031 = vmatpush.msra.mxu0 %v607
        %3032 = vmatpush.msra.mxu0 %v597
        %3033 = vmatpush.msra.mxu0 %v587
        %3034 = vmatmul.f32.gmra.mxu0 %v234
        %v3035 = vpop.f32.mrf.mxu0
        %v3036 = vadd.f32 %v3016, %v3035
        %3037 = vdwg.mxu0
        %3038 = vmatpush.msra.mxu0 %v897
        %3039 = vmatpush.msra.mxu0 %v887
        %3040 = vmatpush.msra.mxu0 %v877
        %3041 = vmatpush.msra.mxu0 %v867
        %3042 = vmatpush.msra.mxu0 %v857
        %3043 = vmatpush.msra.mxu0 %v847
        %3044 = vmatpush.msra.mxu0 %v837
        %3045 = vmatpush.msra.mxu0 %v827
        %3046 = vmatpush.msra.mxu0 %v817
        %3047 = vmatpush.msra.mxu0 %v807
        %3048 = vmatpush.msra.mxu0 %v797
        %3049 = vmatpush.msra.mxu0 %v787
        %3050 = vmatpush.msra.mxu0 %v777
        %3051 = vmatpush.msra.mxu0 %v767
        %3052 = vmatpush.msra.mxu0 %v757
        %3053 = vmatpush.msra.mxu0 %v747
        %3054 = vmatmul.f32.gmra.mxu0 %v237
        %v3055 = vpop.f32.mrf.mxu0
        %v3056 = vadd.f32 %v3036, %v3055
        %3057 = vdwg.mxu0
        %3058 = vmatpush.msra.mxu0 %v1057
        %3059 = vmatpush.msra.mxu0 %v1047
        %3060 = vmatpush.msra.mxu0 %v1037
        %3061 = vmatpush.msra.mxu0 %v1027
        %3062 = vmatpush.msra.mxu0 %v1017
        %3063 = vmatpush.msra.mxu0 %v1007
        %3064 = vmatpush.msra.mxu0 %v997
        %3065 = vmatpush.msra.mxu0 %v987
        %3066 = vmatpush.msra.mxu0 %v977
        %3067 = vmatpush.msra.mxu0 %v967
        %3068 = vmatpush.msra.mxu0 %v957
        %3069 = vmatpush.msra.mxu0 %v947
        %3070 = vmatpush.msra.mxu0 %v937
        %3071 = vmatpush.msra.mxu0 %v927
        %3072 = vmatpush.msra.mxu0 %v917
        %3073 = vmatpush.msra.mxu0 %v907
        %3074 = vmatmul.f32.gmra.mxu0 %v243
        %v3075 = vpop.f32.mrf.mxu0
        %v3076 = vadd.f32 %v3056, %v3075
        %3077 = vdwg.mxu0
        %3078 = vmatpush.msra.mxu0 %v1217
        %3079 = vmatpush.msra.mxu0 %v1207
        %3080 = vmatpush.msra.mxu0 %v1197
        %3081 = vmatpush.msra.mxu0 %v1187
        %3082 = vmatpush.msra.mxu0 %v1177
        %3083 = vmatpush.msra.mxu0 %v1167
        %3084 = vmatpush.msra.mxu0 %v1157
        %3085 = vmatpush.msra.mxu0 %v1147
        %3086 = vmatpush.msra.mxu0 %v1137
        %3087 = vmatpush.msra.mxu0 %v1127
        %3088 = vmatpush.msra.mxu0 %v1117
        %3089 = vmatpush.msra.mxu0 %v1107
        %3090 = vmatpush.msra.mxu0 %v1097
        %3091 = vmatpush.msra.mxu0 %v1087
        %3092 = vmatpush.msra.mxu0 %v1077
        %3093 = vmatpush.msra.mxu0 %v1067
        %3094 = vmatmul.f32.gmra.mxu0 %v246
        %v3095 = vpop.f32.mrf.mxu0
        %v3096 = vadd.f32 %v3076, %v3095
        %3097 = vdwg.mxu0
        %3098 = vmatpush.msra.mxu0 %v1377
        %3099 = vmatpush.msra.mxu0 %v1367
        %3100 = vmatpush.msra.mxu0 %v1357
        %3101 = vmatpush.msra.mxu0 %v1347
        %3102 = vmatpush.msra.mxu0 %v1337
        %3103 = vmatpush.msra.mxu0 %v1327
        %3104 = vmatpush.msra.mxu0 %v1317
        %3105 = vmatpush.msra.mxu0 %v1307
        %3106 = vmatpush.msra.mxu0 %v1297
        %3107 = vmatpush.msra.mxu0 %v1287
        %3108 = vmatpush.msra.mxu0 %v1277
        %3109 = vmatpush.msra.mxu0 %v1267
        %3110 = vmatpush.msra.mxu0 %v1257
        %3111 = vmatpush.msra.mxu0 %v1247
        %3112 = vmatpush.msra.mxu0 %v1237
        %3113 = vmatpush.msra.mxu0 %v1227
        %3114 = vmatmul.f32.gmra.mxu0 %v252
        %v3115 = vpop.f32.mrf.mxu0
        %v3116 = vadd.f32 %v3096, %v3115
        %3117 = vdwg.mxu0
        %3118 = vmatpush.msra.mxu0 %v1537
        %3119 = vmatpush.msra.mxu0 %v1527
        %3120 = vmatpush.msra.mxu0 %v1517
        %3121 = vmatpush.msra.mxu0 %v1507
        %3122 = vmatpush.msra.mxu0 %v1497
        %3123 = vmatpush.msra.mxu0 %v1487
        %3124 = vmatpush.msra.mxu0 %v1477
        %3125 = vmatpush.msra.mxu0 %v1467
        %3126 = vmatpush.msra.mxu0 %v1457
        %3127 = vmatpush.msra.mxu0 %v1447
        %3128 = vmatpush.msra.mxu0 %v1437
        %3129 = vmatpush.msra.mxu0 %v1427
        %3130 = vmatpush.msra.mxu0 %v1417
        %3131 = vmatpush.msra.mxu0 %v1407
        %3132 = vmatpush.msra.mxu0 %v1397
        %3133 = vmatpush.msra.mxu0 %v1387
        %3134 = vmatmul.f32.gmra.mxu0 %v255
        %v3135 = vpop.f32.mrf.mxu0
        %v3136 = vadd.f32 %v3116, %v3135
        %3137 = vdwg.mxu0
        %v3138 = vmul.f32 %v1696, %v1696
        %v3139 = vmul.f32 %v1856, %v1856
        %v3140 = vmul.f32 %v2016, %v2016
        %v3141 = vmul.f32 %v2176, %v2176
        %v3142 = vmul.f32 %v2336, %v2336
        %v3143 = vmul.f32 %v2496, %v2496
        %v3144 = vmul.f32 %v2656, %v2656
        %v3145 = vmul.f32 %v2816, %v2816
        %v3146 = vmul.f32 %v2976, %v2976
        %v3147 = vmul.f32 %v3136, %v3136
        %v3148 = vadd.f32 %v3138, %v3143
        %v3149 = vadd.f32 %v3139, %v3144
        %v3150 = vadd.f32 %v3140, %v3145
        %v3151 = vadd.f32 %v3141, %v3146
        %v3152 = vadd.f32 %v3142, %v3147
        %v3153 = vrsqrt.pop %v3148
        %v3154 = vmul.f32 %v3153, %v3148
        %v3155 = vmul.f32 %v3154, %v3153
        %v3156 = vmul.f32 0.5, %v3155
        %v3157 = vsub.f32 1.5, %v3156
        %v3158 = vmul.f32 %v3153, %v3157
        %v3159 = vmul.f32 %v3148, %v3158
        %vm3160 = vcmp.eq.f32.partialorder %v3148, inf
        %v3161 = vsel %vm3160, %v3148, %v3159
        %vm3162 = vcmp.eq.f32.partialorder %v3148, 0.0
        %v3163 = vand.u32 %v3148, 2147483648
        %v3164 = vsel %vm3162, %v3163, %v3161
        %v3165 = vrsqrt.pop %v3149
        %v3166 = vmul.f32 %v3165, %v3149
        %v3167 = vmul.f32 %v3166, %v3165
        %v3168 = vmul.f32 0.5, %v3167
        %v3169 = vsub.f32 1.5, %v3168
        %v3170 = vmul.f32 %v3165, %v3169
        %v3171 = vmul.f32 %v3149, %v3170
        %vm3172 = vcmp.eq.f32.partialorder %v3149, inf
        %v3173 = vsel %vm3172, %v3149, %v3171
        %vm3174 = vcmp.eq.f32.partialorder %v3149, 0.0
        %v3175 = vand.u32 %v3149, 2147483648
        %v3176 = vsel %vm3174, %v3175, %v3173
        %v3177 = vrsqrt.pop %v3150
        %v3178 = vmul.f32 %v3177, %v3150
        %v3179 = vmul.f32 %v3178, %v3177
        %v3180 = vmul.f32 0.5, %v3179
        %v3181 = vsub.f32 1.5, %v3180
        %v3182 = vmul.f32 %v3177, %v3181
        %v3183 = vmul.f32 %v3150, %v3182
        %vm3184 = vcmp.eq.f32.partialorder %v3150, inf
        %v3185 = vsel %vm3184, %v3150, %v3183
        %vm3186 = vcmp.eq.f32.partialorder %v3150, 0.0
        %v3187 = vand.u32 %v3150, 2147483648
        %v3188 = vsel %vm3186, %v3187, %v3185
        %v3189 = vrsqrt.pop %v3151
        %v3190 = vmul.f32 %v3189, %v3151
        %v3191 = vmul.f32 %v3190, %v3189
        %v3192 = vmul.f32 0.5, %v3191
        %v3193 = vsub.f32 1.5, %v3192
        %v3194 = vmul.f32 %v3189, %v3193
        %v3195 = vmul.f32 %v3151, %v3194
        %vm3196 = vcmp.eq.f32.partialorder %v3151, inf
        %v3197 = vsel %vm3196, %v3151, %v3195
        %vm3198 = vcmp.eq.f32.partialorder %v3151, 0.0
        %v3199 = vand.u32 %v3151, 2147483648
        %v3200 = vsel %vm3198, %v3199, %v3197
        %v3201 = vrsqrt.pop %v3152
        %v3202 = vmul.f32 %v3201, %v3152
        %v3203 = vmul.f32 %v3202, %v3201
        %v3204 = vmul.f32 0.5, %v3203
        %v3205 = vsub.f32 1.5, %v3204
        %v3206 = vmul.f32 %v3201, %v3205
        %v3207 = vmul.f32 %v3152, %v3206
        %vm3208 = vcmp.eq.f32.partialorder %v3152, inf
        %v3209 = vsel %vm3208, %v3152, %v3207
        %vm3210 = vcmp.eq.f32.partialorder %v3152, 0.0
        %v3211 = vand.u32 %v3152, 2147483648
        %v3212 = vsel %vm3210, %v3211, %v3209
        %v3213 = vld [vmem:[#allocation5] sm:$0xff]
        %v3214 = vld [vmem:[#allocation5 + $0x8] sm:$0xff]
        %v3215 = vld [vmem:[#allocation5 + $0x10] sm:$0xff]
        %v3216 = vld [vmem:[#allocation5 + $0x18] sm:$0xff]
        %v3217 = vld [vmem:[#allocation5 + $0x20] sm:$0xff]
        %v3218 = vld [vmem:[#allocation5 + $0x28] sm:$0xff]
        %v3219 = vld [vmem:[#allocation5 + $0x30] sm:$0xff]
        %v3220 = vld [vmem:[#allocation5 + $0x38] sm:$0xff]
        %v3221 = vld [vmem:[#allocation5 + $0x40] sm:$0xff]
        %v3222 = vld [vmem:[#allocation5 + $0x48] sm:$0xff]
        %v3223 = vld [vmem:[#allocation5 + $0x50] sm:$0xff]
        %v3224 = vld [vmem:[#allocation5 + $0x58] sm:$0xff]
        %v3225 = vld [vmem:[#allocation5 + $0x60] sm:$0xff]
        %v3226 = vld [vmem:[#allocation5 + $0x68] sm:$0xff]
        %v3227 = vld [vmem:[#allocation5 + $0x70] sm:$0xff]
        %v3228 = vld [vmem:[#allocation5 + $0x78] sm:$0xff]
        %v3229 = vld [vmem:[#allocation5 + $0x80] sm:$0xff]
        %v3230 = vld [vmem:[#allocation5 + $0x88] sm:$0xff]
        %v3231 = vld [vmem:[#allocation5 + $0x90] sm:$0xff]
        %v3232 = vld [vmem:[#allocation5 + $0x98] sm:$0xff]
        %v3233 = vld [vmem:[#allocation5 + $0xa0] sm:$0xff]
        %v3234 = vld [vmem:[#allocation5 + $0xa8] sm:$0xff]
        %v3235 = vld [vmem:[#allocation5 + $0xb0] sm:$0xff]
        %v3236 = vld [vmem:[#allocation5 + $0xb8] sm:$0xff]
        %v3237 = vld [vmem:[#allocation5 + $0xc0] sm:$0xff]
        %v3238 = vld [vmem:[#allocation5 + $0xc8] sm:$0xff]
        %v3239 = vld [vmem:[#allocation5 + $0xd0] sm:$0xff]
        %v3240 = vld [vmem:[#allocation5 + $0xd8] sm:$0xff]
        %v3241 = vld [vmem:[#allocation5 + $0xe0] sm:$0xff]
        %v3242 = vld [vmem:[#allocation5 + $0xe8] sm:$0xff]
        %v3243 = vld [vmem:[#allocation5 + $0xf0] sm:$0xff]
        %v3244 = vld [vmem:[#allocation5 + $0xf8] sm:$0xff]
        %v3245 = vld [vmem:[#allocation5 + $0x100] sm:$0xff]
        %v3246 = vld [vmem:[#allocation5 + $0x108] sm:$0xff]
        %v3247 = vld [vmem:[#allocation5 + $0x110] sm:$0xff]
        %v3248 = vld [vmem:[#allocation5 + $0x118] sm:$0xff]
        %v3249 = vld [vmem:[#allocation5 + $0x120] sm:$0xff]
        %v3250 = vld [vmem:[#allocation5 + $0x128] sm:$0xff]
        %v3251 = vld [vmem:[#allocation5 + $0x130] sm:$0xff]
        %v3252 = vld [vmem:[#allocation5 + $0x138] sm:$0xff]
        %v3253 = vld [vmem:[#allocation5 + $0x140] sm:$0xff]
        %v3254 = vld [vmem:[#allocation5 + $0x148] sm:$0xff]
        %v3255 = vld [vmem:[#allocation5 + $0x150] sm:$0xff]
        %v3256 = vld [vmem:[#allocation5 + $0x158] sm:$0xff]
        %v3257 = vld [vmem:[#allocation5 + $0x160] sm:$0xff]
        %v3258 = vld [vmem:[#allocation5 + $0x168] sm:$0xff]
        %v3259 = vld [vmem:[#allocation5 + $0x170] sm:$0xff]
        %v3260 = vld [vmem:[#allocation5 + $0x178] sm:$0xff]
        %v3261 = vld [vmem:[#allocation5 + $0x180] sm:$0xff]
        %v3262 = vld [vmem:[#allocation5 + $0x188] sm:$0xff]
        %v3263 = vld [vmem:[#allocation5 + $0x190] sm:$0xff]
        %v3264 = vld [vmem:[#allocation5 + $0x198] sm:$0xff]
        %v3265 = vld [vmem:[#allocation5 + $0x1a0] sm:$0xff]
        %v3266 = vld [vmem:[#allocation5 + $0x1a8] sm:$0xff]
        %v3267 = vld [vmem:[#allocation5 + $0x1b0] sm:$0xff]
        %v3268 = vld [vmem:[#allocation5 + $0x1b8] sm:$0xff]
        %v3269 = vld [vmem:[#allocation5 + $0x1c0] sm:$0xff]
        %v3270 = vld [vmem:[#allocation5 + $0x1c8] sm:$0xff]
        %v3271 = vld [vmem:[#allocation5 + $0x1d0] sm:$0xff]
        %v3272 = vld [vmem:[#allocation5 + $0x1d8] sm:$0xff]
        %v3273 = vld [vmem:[#allocation5 + $0x1e0] sm:$0xff]
        %v3274 = vld [vmem:[#allocation5 + $0x1e8] sm:$0xff]
        %v3275 = vld [vmem:[#allocation5 + $0x1f0] sm:$0xff]
        %v3276 = vld [vmem:[#allocation5 + $0x1f8] sm:$0xff]
        %v3277 = vld [vmem:[#allocation5 + $0x200] sm:$0xff]
        %v3278 = vld [vmem:[#allocation5 + $0x208] sm:$0xff]
        %v3279 = vld [vmem:[#allocation5 + $0x210] sm:$0xff]
        %v3280 = vld [vmem:[#allocation5 + $0x218] sm:$0xff]
        %v3281 = vld [vmem:[#allocation5 + $0x220] sm:$0xff]
        %v3282 = vld [vmem:[#allocation5 + $0x228] sm:$0xff]
        %v3283 = vld [vmem:[#allocation5 + $0x230] sm:$0xff]
        %v3284 = vld [vmem:[#allocation5 + $0x238] sm:$0xff]
        %v3285 = vld [vmem:[#allocation5 + $0x240] sm:$0xff]
        %v3286 = vld [vmem:[#allocation5 + $0x248] sm:$0xff]
        %v3287 = vld [vmem:[#allocation5 + $0x250] sm:$0xff]
        %v3288 = vld [vmem:[#allocation5 + $0x258] sm:$0xff]
        %v3289 = vld [vmem:[#allocation5 + $0x260] sm:$0xff]
        %v3290 = vld [vmem:[#allocation5 + $0x268] sm:$0xff]
        %v3291 = vld [vmem:[#allocation5 + $0x270] sm:$0xff]
        %v3292 = vld [vmem:[#allocation5 + $0x278] sm:$0xff]
        %3293 = vmatpush.msra.mxu0 %v3228
        %3294 = vmatpush.msra.mxu0 %v3227
        %3295 = vmatpush.msra.mxu0 %v3226
        %3296 = vmatpush.msra.mxu0 %v3225
        %3297 = vmatpush.msra.mxu0 %v3224
        %3298 = vmatpush.msra.mxu0 %v3223
        %3299 = vmatpush.msra.mxu0 %v3222
        %3300 = vmatpush.msra.mxu0 %v3221
        %3301 = vmatpush.msra.mxu0 %v3220
        %3302 = vmatpush.msra.mxu0 %v3219
        %3303 = vmatpush.msra.mxu0 %v3218
        %3304 = vmatpush.msra.mxu0 %v3217
        %3305 = vmatpush.msra.mxu0 %v3216
        %3306 = vmatpush.msra.mxu0 %v3215
        %3307 = vmatpush.msra.mxu0 %v3214
        %3308 = vmatpush.msra.mxu0 %v3213
        %3309 = vmatmul.f32.gmra.mxu0 %v3164
        %v3310 = vpop.f32.mrf.mxu0
        %v3311 = vadd.f32 0.0, %v3310
        %3312 = vdwg.mxu0
        %3313 = vmatpush.msra.mxu0 %v3244
        %3314 = vmatpush.msra.mxu0 %v3243
        %3315 = vmatpush.msra.mxu0 %v3242
        %3316 = vmatpush.msra.mxu0 %v3241
        %3317 = vmatpush.msra.mxu0 %v3240
        %3318 = vmatpush.msra.mxu0 %v3239
        %3319 = vmatpush.msra.mxu0 %v3238
        %3320 = vmatpush.msra.mxu0 %v3237
        %3321 = vmatpush.msra.mxu0 %v3236
        %3322 = vmatpush.msra.mxu0 %v3235
        %3323 = vmatpush.msra.mxu0 %v3234
        %3324 = vmatpush.msra.mxu0 %v3233
        %3325 = vmatpush.msra.mxu0 %v3232
        %3326 = vmatpush.msra.mxu0 %v3231
        %3327 = vmatpush.msra.mxu0 %v3230
        %3328 = vmatpush.msra.mxu0 %v3229
        %3329 = vmatmul.f32.gmra.mxu0 %v3176
        %v3330 = vpop.f32.mrf.mxu0
        %v3331 = vadd.f32 %v3311, %v3330
        %3332 = vdwg.mxu0
        %3333 = vmatpush.msra.mxu0 %v3260
        %3334 = vmatpush.msra.mxu0 %v3259
        %3335 = vmatpush.msra.mxu0 %v3258
        %3336 = vmatpush.msra.mxu0 %v3257
        %3337 = vmatpush.msra.mxu0 %v3256
        %3338 = vmatpush.msra.mxu0 %v3255
        %3339 = vmatpush.msra.mxu0 %v3254
        %3340 = vmatpush.msra.mxu0 %v3253
        %3341 = vmatpush.msra.mxu0 %v3252
        %3342 = vmatpush.msra.mxu0 %v3251
        %3343 = vmatpush.msra.mxu0 %v3250
        %3344 = vmatpush.msra.mxu0 %v3249
        %3345 = vmatpush.msra.mxu0 %v3248
        %3346 = vmatpush.msra.mxu0 %v3247
        %3347 = vmatpush.msra.mxu0 %v3246
        %3348 = vmatpush.msra.mxu0 %v3245
        %3349 = vmatmul.f32.gmra.mxu0 %v3188
        %v3350 = vpop.f32.mrf.mxu0
        %v3351 = vadd.f32 %v3331, %v3350
        %3352 = vdwg.mxu0
        %3353 = vmatpush.msra.mxu0 %v3276
        %3354 = vmatpush.msra.mxu0 %v3275
        %3355 = vmatpush.msra.mxu0 %v3274
        %3356 = vmatpush.msra.mxu0 %v3273
        %3357 = vmatpush.msra.mxu0 %v3272
        %3358 = vmatpush.msra.mxu0 %v3271
        %3359 = vmatpush.msra.mxu0 %v3270
        %3360 = vmatpush.msra.mxu0 %v3269
        %3361 = vmatpush.msra.mxu0 %v3268
        %3362 = vmatpush.msra.mxu0 %v3267
        %3363 = vmatpush.msra.mxu0 %v3266
        %3364 = vmatpush.msra.mxu0 %v3265
        %3365 = vmatpush.msra.mxu0 %v3264
        %3366 = vmatpush.msra.mxu0 %v3263
        %3367 = vmatpush.msra.mxu0 %v3262
        %3368 = vmatpush.msra.mxu0 %v3261
        %3369 = vmatmul.f32.gmra.mxu0 %v3200
        %v3370 = vpop.f32.mrf.mxu0
        %v3371 = vadd.f32 %v3351, %v3370
        %3372 = vdwg.mxu0
        %3373 = vmatpush.msra.mxu0 %v3292
        %3374 = vmatpush.msra.mxu0 %v3291
        %3375 = vmatpush.msra.mxu0 %v3290
        %3376 = vmatpush.msra.mxu0 %v3289
        %3377 = vmatpush.msra.mxu0 %v3288
        %3378 = vmatpush.msra.mxu0 %v3287
        %3379 = vmatpush.msra.mxu0 %v3286
        %3380 = vmatpush.msra.mxu0 %v3285
        %3381 = vmatpush.msra.mxu0 %v3284
        %3382 = vmatpush.msra.mxu0 %v3283
        %3383 = vmatpush.msra.mxu0 %v3282
        %3384 = vmatpush.msra.mxu0 %v3281
        %3385 = vmatpush.msra.mxu0 %v3280
        %3386 = vmatpush.msra.mxu0 %v3279
        %3387 = vmatpush.msra.mxu0 %v3278
        %3388 = vmatpush.msra.mxu0 %v3277
        %3389 = vmatmul.f32.gmra.mxu0 %v3212
        %v3390 = vpop.f32.mrf.mxu0
        %v3391 = vadd.f32 %v3371, %v3390
        %3392 = vdwg.mxu0
        %v3393 = vmax.f32 %v3391, 1e-05
        %v3394 = vlog2.pop %v3393
        %v3395 = vmul.f32 %v3394, 0.6931472
        %3396 = vst [vmem:[%s211] sm:$0xff] %v3395
        %s3397 = sand.u32 %s109, 1
        %s3398 = scalar_lea.sflag [#allocation4], %s3397
        %s3399 = sand.u32 %s109, 1
        %s3400 = smul.addr %s3399, 8
        %s3401 = scalar_lea.vmem [#allocation7], %s3400
        // Predicated region
        $region41: #{tpu_custom_call.1} parent=31 // pred_check
          %p3402 = pneg %p119
        $region42: #{tpu_custom_call.1} parent=31 // pred_check_branch
          %3404 = sbr.rel (%p3402) target = $region44
        $region43: #{tpu_custom_call.1} parent=31 // pred_region
          %3406 = vsyncadd %s3398, 0
          %s3407 = smul.addr %s23, 3
          %s3408 = sadd.s32 %s24, %s3407
          %s3409 = smul.addr %s3408, 8
          %s3410 = scalar_lea.hbm %s3, %s3409
          %s3412 = sshll.u32 %s3401, 4
          %s3413 = int_to_ptr.vmem [resolvable:$true] %s3412
          %s3414 = sshll.u32 %s3410, 4
          %s3415 = int_to_ptr.hbm [resolvable:$true] %s3414
          %3417 = dma.vmem_to_hbm [thread:$0]  %s3413, 128, %s3415, %s3398
        $region44: #{tpu_custom_call.1} parent=31 // pred_fallthru
          _
      $region32: #{tpu_custom_call.1} parent=5 // pred_fallthru
        _
      %p3418 = scmp.le.s32.totalorder 2, %s14
      // Predicated region
      $region45: #{tpu_custom_call.1} parent=5 // pred_check
        %p3419 = pneg %p3418
      $region46: #{tpu_custom_call.1} parent=5 // pred_check_branch
        %3421 = sbr.rel (%p3419) target = $region48
      $region47: #{tpu_custom_call.1} parent=5 // pred_region
        %s3422 = ssub.s32 %s14, 2
        // Predicated region
        $region49: #{tpu_custom_call.1} parent=47 // pred_check
          %p3423 = pneg %p125
        $region50: #{tpu_custom_call.1} parent=47 // pred_check_branch
          %3425 = sbr.rel (%p3423) target = $region52
        $region51: #{tpu_custom_call.1} parent=47 // pred_region
          %s3426 = sand.u32 %s110, 1
          %s3427 = scalar_lea.sflag [#allocation4], %s3426
          %s3428 = sand.u32 %s110, 1
          %s3429 = smul.addr %s3428, 8
          %s3430 = scalar_lea.vmem [#allocation7], %s3429
          %3432 = dma.done %s3427, 128
        $region52: #{tpu_custom_call.1} parent=47 // pred_fallthru
          _
      $region48: #{tpu_custom_call.1} parent=5 // pred_fallthru
        _
    $region6: #{tpu_custom_call.1} parent=1 // loop_footer
      %s18 = sadd.s32 1, %s14
    $region7: #{tpu_custom_call.1} parent=1 // loop_footer_branch
      %13 = sbr.rel target = $region3
    $region8: #{tpu_custom_call.1} parent=1 // loop_exit
      _
    %3433 = vsyncpa [#allocation3], 1
    %s3434 = scalar_lea.sflag [#allocation3], 1
    %3435 = vsyncpa %s3434, 1
    %3436 = vsyncpa [#allocation6], 1
    %3437 = vsyncpa [#allocation4], 1
    %s3438 = scalar_lea.sflag [#allocation4], 1
    %3439 = vsyncpa %s3438, 1

</llo_original>
